<compile_context>
chip_gen: v7x
topology: tpu7x:2x2x1
jax: 0.10.0
libtpu: 0.0.40
codegen_flags: <defaults>
</compile_context>

<pallas_src>
import jax
import jax.numpy as jnp
import numpy as np
from jax.experimental import pallas as pl
from jax.experimental.pallas import tpu as pltpu

H = W = 28            # forced by fc1 expecting 32 * 14 * 14 features after 2x2 pool
C_OUT = 32
KK = 9                # 3x3 kernel, 1 input channel -> 9 taps
POOL_HW = 14
NPOOL = POOL_HW * POOL_HW          # 196 pool windows
FEAT = C_OUT * NPOOL               # 6272
HID = 128
NCLS = 10


def _pick_tile(B):
    """Images per grid step: a divisor of B, <= 8, and chosen so the grid has
    >= 2 steps whenever B >= 2 (v7x megacore via the 'parallel' axis)."""
    cap = min(8, max(1, B // 2))
    t = cap
    while B % t:
        t -= 1
    return max(t, 1)


# ---------------------------------------------------------------------------
# ONE fused kernel: conv(3x3,pad=1)+bias+ReLU+2x2maxpool -> flatten -> fc1+ReLU -> fc2
# ---------------------------------------------------------------------------
def fused_cnn_kernel(p_ref, wc_ref, bc_ref, w1_ref, b1_ref, w2_ref, b2_ref,
                     o_ref, feat_ref):
    # p_ref : (4, 9, tb*196) bf16  im2col patches, axis0 = 2x2 pool-window pos
    # wc_ref: (32, 9)  bf16        flattened conv filters
    # bc_ref: (32, 1)  f32         conv bias
    # w1_ref: (6272, 128) bf16     fc1 weight (native c*196+p row order)
    # b1_ref: (1, 128) f32         fc1 bias
    # w2_ref: (128, 10) f32        fc2 weight
    # b2_ref: (1, 10)  f32         fc2 bias
    # o_ref : (tb, 10) f32         logits for this batch tile
    # feat_ref: (tb, 6272) f32     VMEM scratch holding the flattened features
    tb = o_ref.shape[0]
    wc = wc_ref[...]

    # --- conv + 2x2 maxpool, channel-major, entirely in vregs ---------------
    m = None
    for k in range(4):                                   # 4 pool-window positions
        z = jnp.dot(wc, p_ref[k],                        # (32, 9) @ (9, tb*196)
                    preferred_element_type=jnp.float32)  # lane-dense (32, tb*196)
        m = z if m is None else jnp.maximum(m, z)
    # bias is shared across the 2x2 window and ReLU is monotone, so
    # max_k relu(z_k + b) == relu(max_k z_k + b)
    act = jnp.maximum(m + bc_ref[...], 0.0)              # (32, tb*196) f32

    # --- flatten to PyTorch order feat[b, c*196 + p] (static slice stores) --
    for b in range(tb):
        for c in range(C_OUT):
            feat_ref[b:b + 1, c * NPOOL:(c + 1) * NPOOL] = \
                act[c:c + 1, b * NPOOL:(b + 1) * NPOOL]
    feat = feat_ref[...].astype(jnp.bfloat16)            # (tb, 6272)

    # --- fc1 + ReLU + fc2 ----------------------------------------------------
    h = jnp.dot(feat, w1_ref[...], preferred_element_type=jnp.float32)
    h = jnp.maximum(h + b1_ref[...], 0.0)                # (tb, 128) f32
    out = jnp.dot(h, w2_ref[...], preferred_element_type=jnp.float32) + b2_ref[...]
    o_ref[...] = out.astype(o_ref.dtype)                 # (tb, 10)


# ---------------------------------------------------------------------------
# Glue: im2col grouped by pool-window position (bf16), one-time param prep
# ---------------------------------------------------------------------------
def build_patches(x, tb):
    # x: (B, 1, 28, 28) -> (nt, 4, 9, tb*196) bf16
    #   axis1 = pool-window position k = dh*2+dw, axis2 = tap t = ki*3+kj,
    #   axis3 = (b_in_tile)*196 + ph*14 + pw.
    B = x.shape[0]
    nt = B // tb
    xp = jnp.pad(x[:, 0], ((0, 0), (1, 1), (1, 1))).astype(jnp.bfloat16)   # (B,30,30)
    taps = jnp.stack([xp[:, i:i + H, j:j + W]
                      for i in range(3) for j in range(3)], axis=1)        # (B,9,28,28)
    t6 = taps.reshape(B, KK, POOL_HW, 2, POOL_HW, 2)                       # (B,9,ph,dh,pw,dw)
    pt = t6.transpose(3, 5, 1, 0, 2, 4)                                    # (dh,dw,t,B,ph,pw)
    return pt.reshape(4, KK, nt, tb * NPOOL).transpose(2, 0, 1, 3)         # (nt,4,9,tb*196)


def prepare_params(params):
    """One-time, off-the-hot-path parameter preparation."""
    w_conv, b_conv, w_fc1, b_fc1, w_fc2, b_fc2 = params
    return (w_conv.reshape(C_OUT, KK).astype(jnp.bfloat16),   # (32, 9)
            b_conv.reshape(C_OUT, 1).astype(jnp.float32),     # (32, 1)
            w_fc1.T.astype(jnp.bfloat16),                     # (6272, 128) native c*196+p order
            b_fc1.reshape(1, HID).astype(jnp.float32),        # (1, 128)
            w_fc2.T.astype(jnp.float32),                      # (128, 10)
            b_fc2.reshape(1, NCLS).astype(jnp.float32))       # (1, 10)


@jax.jit
def simple_cnn_forward(x, prepared):
    # x: (B, 1, 28, 28) float32 (NCHW, like PyTorch)
    wc, bc, w1, b1, w2, b2 = prepared
    B = x.shape[0]
    tb = _pick_tile(B)
    nt = B // tb
    patches = build_patches(x, tb)                        # (nt, 4, 9, tb*196) bf16

    out = pl.pallas_call(
        fused_cnn_kernel,
        out_shape=jax.ShapeDtypeStruct((nt, tb, NCLS), jnp.float32),
        grid_spec=pltpu.PrefetchScalarGridSpec(
            num_scalar_prefetch=0,
            grid=(nt,),
            in_specs=[
                pl.BlockSpec((None, 4, KK, tb * NPOOL), lambda i: (i, 0, 0, 0)),
                pl.BlockSpec((C_OUT, KK), lambda i: (0, 0)),
                pl.BlockSpec((C_OUT, 1), lambda i: (0, 0)),
                pl.BlockSpec((FEAT, HID), lambda i: (0, 0)),
                pl.BlockSpec((1, HID), lambda i: (0, 0)),
                pl.BlockSpec((HID, NCLS), lambda i: (0, 0)),
                pl.BlockSpec((1, NCLS), lambda i: (0, 0)),
            ],
            out_specs=pl.BlockSpec((None, tb, NCLS), lambda i: (i, 0, 0)),
            scratch_shapes=[pltpu.VMEM((tb, FEAT), jnp.float32)],
        ),
        compiler_params=pltpu.CompilerParams(dimension_semantics=("parallel",)),
    )(patches, wc, bc, w1, b1, w2, b2)
    return out.reshape(B, NCLS)


# ---------------------------------------------------------------------------
# Pure-JAX f32 reference (correctness check only)
# ---------------------------------------------------------------------------
def reference_forward(x, params):
    w_conv, b_conv, w_fc1, b_fc1, w_fc2, b_fc2 = params
    conv = jax.lax.conv_general_dilated(
        x, w_conv, (1, 1), ((1, 1), (1, 1)),
        dimension_numbers=("NCHW", "OIHW", "NCHW"))
    conv = jax.nn.relu(conv + b_conv.reshape(1, C_OUT, 1, 1))
    pooled = jax.lax.reduce_window(conv, -jnp.inf, jax.lax.max,
                                   (1, 1, 2, 2), (1, 1, 2, 2), "VALID")
    feat = pooled.reshape(x.shape[0], FEAT)
    h = jax.nn.relu(feat @ w_fc1.T + b_fc1)
    return h @ w_fc2.T + b_fc2


def init_params(key):
    k = jax.random.split(key, 6)
    w_conv = 0.1 * jax.random.normal(k[0], (C_OUT, 1, 3, 3), jnp.float32)
    b_conv = 0.1 * jax.random.normal(k[1], (C_OUT,), jnp.float32)
    w_fc1 = 0.02 * jax.random.normal(k[2], (HID, FEAT), jnp.float32)
    b_fc1 = 0.02 * jax.random.normal(k[3], (HID,), jnp.float32)
    w_fc2 = 0.1 * jax.random.normal(k[4], (NCLS, HID), jnp.float32)
    b_fc2 = 0.1 * jax.random.normal(k[5], (NCLS,), jnp.float32)
    return (w_conv, b_conv, w_fc1, b_fc1, w_fc2, b_fc2)


if __name__ == "__main__":
    key = jax.random.PRNGKey(0)
    kx, kp = jax.random.split(key)
    # batch=2; 1x28x28 input is forced by fc1 = Linear(32*14*14, 128)
    x = jax.random.normal(kx, (2, 1, H, W), jnp.float32)
    params = init_params(kp)
    prepared = prepare_params(params)       # one-time reshape/transpose + bf16 cast

    out = simple_cnn_forward(x, prepared)
    out = jax.block_until_ready(out)

    ref = reference_forward(x, params)
    # bf16 conv + bf16 fc1 operands (f32 MXU accumulation) -> compare at ~1e-2 level
    np.testing.assert_allclose(np.asarray(out), np.asarray(ref), rtol=2e-2, atol=2e-2)

    assert out.shape == (2, NCLS) and out.dtype == jnp.float32
    print("KERNEL_OK")
</pallas_src>

<mosaic_0001>
module attributes {stable_mosaic.version = 11 : i64} {
  func.func @fused_cnn_kernel(%arg0: i32, %arg1: memref<1x4x9x196xbf16, #tpu.memory_space<vmem>>, %arg2: memref<32x9xbf16, #tpu.memory_space<vmem>>, %arg3: memref<32x1xf32, #tpu.memory_space<vmem>>, %arg4: memref<6272x128xbf16, #tpu.memory_space<vmem>>, %arg5: memref<1x128xf32, #tpu.memory_space<vmem>>, %arg6: memref<128x10xf32, #tpu.memory_space<vmem>>, %arg7: memref<1x10xf32, #tpu.memory_space<vmem>>, %arg8: memref<1x1x10xf32, #tpu.memory_space<vmem>>, %arg9: memref<1x6272xf32, #tpu.memory_space<vmem>>) attributes {dimension_semantics = [#tpu.dimension_semantics<parallel>], iteration_bounds = array<i64: 2>, scalar_prefetch = 0 : i64, scratch_operands = 1 : i64, tpu.core_type = #tpu.core_type<tc>, window_params = [{transform_indices = @transform_0, window_bounds = array<i64: 1, 4, 9, 196>}, {pipeline_mode = #tpu.pipeline_mode<synchronous>, transform_indices = @transform_1, window_bounds = array<i64: 32, 9>}, {pipeline_mode = #tpu.pipeline_mode<synchronous>, transform_indices = @transform_2, window_bounds = array<i64: 32, 1>}, {pipeline_mode = #tpu.pipeline_mode<synchronous>, transform_indices = @transform_3, window_bounds = array<i64: 6272, 128>}, {pipeline_mode = #tpu.pipeline_mode<synchronous>, transform_indices = @transform_4, window_bounds = array<i64: 1, 128>}, {pipeline_mode = #tpu.pipeline_mode<synchronous>, transform_indices = @transform_5, window_bounds = array<i64: 128, 10>}, {pipeline_mode = #tpu.pipeline_mode<synchronous>, transform_indices = @transform_6, window_bounds = array<i64: 1, 10>}, {transform_indices = @transform_7, window_bounds = array<i64: 1, 1, 10>}]} {
    %c0 = arith.constant 0 : index
    %c0_0 = arith.constant 0 : index
    %0 = vector.load %arg2[%c0, %c0_0] : memref<32x9xbf16, #tpu.memory_space<vmem>>, vector<32x9xbf16>
    %c0_1 = arith.constant 0 : index
    %c0_2 = arith.constant 0 : index
    %c0_3 = arith.constant 0 : index
    %c0_4 = arith.constant 0 : index
    %1 = vector.load %arg1[%c0_1, %c0_2, %c0_3, %c0_4] : memref<1x4x9x196xbf16, #tpu.memory_space<vmem>>, vector<1x1x9x196xbf16>
    %2 = vector.shape_cast %1 : vector<1x1x9x196xbf16> to vector<9x196xbf16>
    %cst = arith.constant dense<0.000000e+00> : vector<32x196xf32>
    %3 = tpu.matmul %0, %2, %cst {dimension_numbers = #tpu.dot_dimension_numbers<[1], [0], [0], [1], [0, 0, 1, 1], [], []>} : vector<32x9xbf16>, vector<9x196xbf16>, vector<32x196xf32> -> vector<32x196xf32>
    %c0_5 = arith.constant 0 : index
    %c1 = arith.constant 1 : index
    %c0_6 = arith.constant 0 : index
    %c0_7 = arith.constant 0 : index
    %4 = vector.load %arg1[%c0_5, %c1, %c0_6, %c0_7] : memref<1x4x9x196xbf16, #tpu.memory_space<vmem>>, vector<1x1x9x196xbf16>
    %5 = vector.shape_cast %4 : vector<1x1x9x196xbf16> to vector<9x196xbf16>
    %cst_8 = arith.constant dense<0.000000e+00> : vector<32x196xf32>
    %6 = tpu.matmul %0, %5, %cst_8 {dimension_numbers = #tpu.dot_dimension_numbers<[1], [0], [0], [1], [0, 0, 1, 1], [], []>} : vector<32x9xbf16>, vector<9x196xbf16>, vector<32x196xf32> -> vector<32x196xf32>
    %7 = arith.maximumf %3, %6 : vector<32x196xf32>
    %c0_9 = arith.constant 0 : index
    %c2 = arith.constant 2 : index
    %c0_10 = arith.constant 0 : index
    %c0_11 = arith.constant 0 : index
    %8 = vector.load %arg1[%c0_9, %c2, %c0_10, %c0_11] : memref<1x4x9x196xbf16, #tpu.memory_space<vmem>>, vector<1x1x9x196xbf16>
    %9 = vector.shape_cast %8 : vector<1x1x9x196xbf16> to vector<9x196xbf16>
    %cst_12 = arith.constant dense<0.000000e+00> : vector<32x196xf32>
    %10 = tpu.matmul %0, %9, %cst_12 {dimension_numbers = #tpu.dot_dimension_numbers<[1], [0], [0], [1], [0, 0, 1, 1], [], []>} : vector<32x9xbf16>, vector<9x196xbf16>, vector<32x196xf32> -> vector<32x196xf32>
    %11 = arith.maximumf %7, %10 : vector<32x196xf32>
    %c0_13 = arith.constant 0 : index
    %c3 = arith.constant 3 : index
    %c0_14 = arith.constant 0 : index
    %c0_15 = arith.constant 0 : index
    %12 = vector.load %arg1[%c0_13, %c3, %c0_14, %c0_15] : memref<1x4x9x196xbf16, #tpu.memory_space<vmem>>, vector<1x1x9x196xbf16>
    %13 = vector.shape_cast %12 : vector<1x1x9x196xbf16> to vector<9x196xbf16>
    %cst_16 = arith.constant dense<0.000000e+00> : vector<32x196xf32>
    %14 = tpu.matmul %0, %13, %cst_16 {dimension_numbers = #tpu.dot_dimension_numbers<[1], [0], [0], [1], [0, 0, 1, 1], [], []>} : vector<32x9xbf16>, vector<9x196xbf16>, vector<32x196xf32> -> vector<32x196xf32>
    %15 = arith.maximumf %11, %14 : vector<32x196xf32>
    %c0_17 = arith.constant 0 : index
    %c0_18 = arith.constant 0 : index
    %16 = vector.load %arg3[%c0_17, %c0_18] : memref<32x1xf32, #tpu.memory_space<vmem>>, vector<32x1xf32>
    %17 = vector.broadcast %16 : vector<32x1xf32> to vector<32x196xf32>
    %18 = arith.addf %15, %17 : vector<32x196xf32>
    %cst_19 = arith.constant 0.000000e+00 : f32
    %19 = vector.broadcast %cst_19 : f32 to vector<32x196xf32>
    %20 = arith.maximumf %18, %19 : vector<32x196xf32>
    %21 = vector.extract_strided_slice %20 {offsets = [0, 0], sizes = [1, 196], strides = [1, 1]} : vector<32x196xf32> to vector<1x196xf32>
    %c0_20 = arith.constant 0 : index
    %c0_21 = arith.constant 0 : index
    %22 = vector.load %arg9[%c0_20, %c0_21] : memref<1x6272xf32, #tpu.memory_space<vmem>>, vector<1x196xf32>
    tpu.vector_store %arg9[%c0_20, %c0_21], %21 {strides = array<i32>} : memref<1x6272xf32, #tpu.memory_space<vmem>>, vector<1x196xf32>,
    %23 = vector.extract_strided_slice %20 {offsets = [1, 0], sizes = [1, 196], strides = [1, 1]} : vector<32x196xf32> to vector<1x196xf32>
    %c0_22 = arith.constant 0 : index
    %c196 = arith.constant 196 : index
    %24 = vector.load %arg9[%c0_22, %c196] : memref<1x6272xf32, #tpu.memory_space<vmem>>, vector<1x196xf32>
    tpu.vector_store %arg9[%c0_22, %c196], %23 {strides = array<i32>} : memref<1x6272xf32, #tpu.memory_space<vmem>>, vector<1x196xf32>,
    %25 = vector.extract_strided_slice %20 {offsets = [2, 0], sizes = [1, 196], strides = [1, 1]} : vector<32x196xf32> to vector<1x196xf32>
    %c0_23 = arith.constant 0 : index
    %c392 = arith.constant 392 : index
    %26 = vector.load %arg9[%c0_23, %c392] : memref<1x6272xf32, #tpu.memory_space<vmem>>, vector<1x196xf32>
    tpu.vector_store %arg9[%c0_23, %c392], %25 {strides = array<i32>} : memref<1x6272xf32, #tpu.memory_space<vmem>>, vector<1x196xf32>,
    %27 = vector.extract_strided_slice %20 {offsets = [3, 0], sizes = [1, 196], strides = [1, 1]} : vector<32x196xf32> to vector<1x196xf32>
    %c0_24 = arith.constant 0 : index
    %c588 = arith.constant 588 : index
    %28 = vector.load %arg9[%c0_24, %c588] : memref<1x6272xf32, #tpu.memory_space<vmem>>, vector<1x196xf32>
    tpu.vector_store %arg9[%c0_24, %c588], %27 {strides = array<i32>} : memref<1x6272xf32, #tpu.memory_space<vmem>>, vector<1x196xf32>,
    %29 = vector.extract_strided_slice %20 {offsets = [4, 0], sizes = [1, 196], strides = [1, 1]} : vector<32x196xf32> to vector<1x196xf32>
    %c0_25 = arith.constant 0 : index
    %c784 = arith.constant 784 : index
    %30 = vector.load %arg9[%c0_25, %c784] : memref<1x6272xf32, #tpu.memory_space<vmem>>, vector<1x196xf32>
    tpu.vector_store %arg9[%c0_25, %c784], %29 {strides = array<i32>} : memref<1x6272xf32, #tpu.memory_space<vmem>>, vector<1x196xf32>,
    %31 = vector.extract_strided_slice %20 {offsets = [5, 0], sizes = [1, 196], strides = [1, 1]} : vector<32x196xf32> to vector<1x196xf32>
    %c0_26 = arith.constant 0 : index
    %c980 = arith.constant 980 : index
    %32 = vector.load %arg9[%c0_26, %c980] : memref<1x6272xf32, #tpu.memory_space<vmem>>, vector<1x196xf32>
    tpu.vector_store %arg9[%c0_26, %c980], %31 {strides = array<i32>} : memref<1x6272xf32, #tpu.memory_space<vmem>>, vector<1x196xf32>,
    %33 = vector.extract_strided_slice %20 {offsets = [6, 0], sizes = [1, 196], strides = [1, 1]} : vector<32x196xf32> to vector<1x196xf32>
    %c0_27 = arith.constant 0 : index
    %c1176 = arith.constant 1176 : index
    %34 = vector.load %arg9[%c0_27, %c1176] : memref<1x6272xf32, #tpu.memory_space<vmem>>, vector<1x196xf32>
    tpu.vector_store %arg9[%c0_27, %c1176], %33 {strides = array<i32>} : memref<1x6272xf32, #tpu.memory_space<vmem>>, vector<1x196xf32>,
    %35 = vector.extract_strided_slice %20 {offsets = [7, 0], sizes = [1, 196], strides = [1, 1]} : vector<32x196xf32> to vector<1x196xf32>
    %c0_28 = arith.constant 0 : index
    %c1372 = arith.constant 1372 : index
    %36 = vector.load %arg9[%c0_28, %c1372] : memref<1x6272xf32, #tpu.memory_space<vmem>>, vector<1x196xf32>
    tpu.vector_store %arg9[%c0_28, %c1372], %35 {strides = array<i32>} : memref<1x6272xf32, #tpu.memory_space<vmem>>, vector<1x196xf32>,
    %37 = vector.extract_strided_slice %20 {offsets = [8, 0], sizes = [1, 196], strides = [1, 1]} : vector<32x196xf32> to vector<1x196xf32>
    %c0_29 = arith.constant 0 : index
    %c1568 = arith.constant 1568 : index
    %38 = vector.load %arg9[%c0_29, %c1568] : memref<1x6272xf32, #tpu.memory_space<vmem>>, vector<1x196xf32>
    tpu.vector_store %arg9[%c0_29, %c1568], %37 {strides = array<i32>} : memref<1x6272xf32, #tpu.memory_space<vmem>>, vector<1x196xf32>,
    %39 = vector.extract_strided_slice %20 {offsets = [9, 0], sizes = [1, 196], strides = [1, 1]} : vector<32x196xf32> to vector<1x196xf32>
    %c0_30 = arith.constant 0 : index
    %c1764 = arith.constant 1764 : index
    %40 = vector.load %arg9[%c0_30, %c1764] : memref<1x6272xf32, #tpu.memory_space<vmem>>, vector<1x196xf32>
    tpu.vector_store %arg9[%c0_30, %c1764], %39 {strides = array<i32>} : memref<1x6272xf32, #tpu.memory_space<vmem>>, vector<1x196xf32>,
    %41 = vector.extract_strided_slice %20 {offsets = [10, 0], sizes = [1, 196], strides = [1, 1]} : vector<32x196xf32> to vector<1x196xf32>
    %c0_31 = arith.constant 0 : index
    %c1960 = arith.constant 1960 : index
    %42 = vector.load %arg9[%c0_31, %c1960] : memref<1x6272xf32, #tpu.memory_space<vmem>>, vector<1x196xf32>
    tpu.vector_store %arg9[%c0_31, %c1960], %41 {strides = array<i32>} : memref<1x6272xf32, #tpu.memory_space<vmem>>, vector<1x196xf32>,
    %43 = vector.extract_strided_slice %20 {offsets = [11, 0], sizes = [1, 196], strides = [1, 1]} : vector<32x196xf32> to vector<1x196xf32>
    %c0_32 = arith.constant 0 : index
    %c2156 = arith.constant 2156 : index
    %44 = vector.load %arg9[%c0_32, %c2156] : memref<1x6272xf32, #tpu.memory_space<vmem>>, vector<1x196xf32>
    tpu.vector_store %arg9[%c0_32, %c2156], %43 {strides = array<i32>} : memref<1x6272xf32, #tpu.memory_space<vmem>>, vector<1x196xf32>,
    %45 = vector.extract_strided_slice %20 {offsets = [12, 0], sizes = [1, 196], strides = [1, 1]} : vector<32x196xf32> to vector<1x196xf32>
    %c0_33 = arith.constant 0 : index
    %c2352 = arith.constant 2352 : index
    %46 = vector.load %arg9[%c0_33, %c2352] : memref<1x6272xf32, #tpu.memory_space<vmem>>, vector<1x196xf32>
    tpu.vector_store %arg9[%c0_33, %c2352], %45 {strides = array<i32>} : memref<1x6272xf32, #tpu.memory_space<vmem>>, vector<1x196xf32>,
    %47 = vector.extract_strided_slice %20 {offsets = [13, 0], sizes = [1, 196], strides = [1, 1]} : vector<32x196xf32> to vector<1x196xf32>
    %c0_34 = arith.constant 0 : index
    %c2548 = arith.constant 2548 : index
    %48 = vector.load %arg9[%c0_34, %c2548] : memref<1x6272xf32, #tpu.memory_space<vmem>>, vector<1x196xf32>
    tpu.vector_store %arg9[%c0_34, %c2548], %47 {strides = array<i32>} : memref<1x6272xf32, #tpu.memory_space<vmem>>, vector<1x196xf32>,
    %49 = vector.extract_strided_slice %20 {offsets = [14, 0], sizes = [1, 196], strides = [1, 1]} : vector<32x196xf32> to vector<1x196xf32>
    %c0_35 = arith.constant 0 : index
    %c2744 = arith.constant 2744 : index
    %50 = vector.load %arg9[%c0_35, %c2744] : memref<1x6272xf32, #tpu.memory_space<vmem>>, vector<1x196xf32>
    tpu.vector_store %arg9[%c0_35, %c2744], %49 {strides = array<i32>} : memref<1x6272xf32, #tpu.memory_space<vmem>>, vector<1x196xf32>,
    %51 = vector.extract_strided_slice %20 {offsets = [15, 0], sizes = [1, 196], strides = [1, 1]} : vector<32x196xf32> to vector<1x196xf32>
    %c0_36 = arith.constant 0 : index
    %c2940 = arith.constant 2940 : index
    %52 = vector.load %arg9[%c0_36, %c2940] : memref<1x6272xf32, #tpu.memory_space<vmem>>, vector<1x196xf32>
    tpu.vector_store %arg9[%c0_36, %c2940], %51 {strides = array<i32>} : memref<1x6272xf32, #tpu.memory_space<vmem>>, vector<1x196xf32>,
    %53 = vector.extract_strided_slice %20 {offsets = [16, 0], sizes = [1, 196], strides = [1, 1]} : vector<32x196xf32> to vector<1x196xf32>
    %c0_37 = arith.constant 0 : index
    %c3136 = arith.constant 3136 : index
    %54 = vector.load %arg9[%c0_37, %c3136] : memref<1x6272xf32, #tpu.memory_space<vmem>>, vector<1x196xf32>
    tpu.vector_store %arg9[%c0_37, %c3136], %53 {strides = array<i32>} : memref<1x6272xf32, #tpu.memory_space<vmem>>, vector<1x196xf32>,
    %55 = vector.extract_strided_slice %20 {offsets = [17, 0], sizes = [1, 196], strides = [1, 1]} : vector<32x196xf32> to vector<1x196xf32>
    %c0_38 = arith.constant 0 : index
    %c3332 = arith.constant 3332 : index
    %56 = vector.load %arg9[%c0_38, %c3332] : memref<1x6272xf32, #tpu.memory_space<vmem>>, vector<1x196xf32>
    tpu.vector_store %arg9[%c0_38, %c3332], %55 {strides = array<i32>} : memref<1x6272xf32, #tpu.memory_space<vmem>>, vector<1x196xf32>,
    %57 = vector.extract_strided_slice %20 {offsets = [18, 0], sizes = [1, 196], strides = [1, 1]} : vector<32x196xf32> to vector<1x196xf32>
    %c0_39 = arith.constant 0 : index
    %c3528 = arith.constant 3528 : index
    %58 = vector.load %arg9[%c0_39, %c3528] : memref<1x6272xf32, #tpu.memory_space<vmem>>, vector<1x196xf32>
    tpu.vector_store %arg9[%c0_39, %c3528], %57 {strides = array<i32>} : memref<1x6272xf32, #tpu.memory_space<vmem>>, vector<1x196xf32>,
    %59 = vector.extract_strided_slice %20 {offsets = [19, 0], sizes = [1, 196], strides = [1, 1]} : vector<32x196xf32> to vector<1x196xf32>
    %c0_40 = arith.constant 0 : index
    %c3724 = arith.constant 3724 : index
    %60 = vector.load %arg9[%c0_40, %c3724] : memref<1x6272xf32, #tpu.memory_space<vmem>>, vector<1x196xf32>
    tpu.vector_store %arg9[%c0_40, %c3724], %59 {strides = array<i32>} : memref<1x6272xf32, #tpu.memory_space<vmem>>, vector<1x196xf32>,
    %61 = vector.extract_strided_slice %20 {offsets = [20, 0], sizes = [1, 196], strides = [1, 1]} : vector<32x196xf32> to vector<1x196xf32>
    %c0_41 = arith.constant 0 : index
    %c3920 = arith.constant 3920 : index
    %62 = vector.load %arg9[%c0_41, %c3920] : memref<1x6272xf32, #tpu.memory_space<vmem>>, vector<1x196xf32>
    tpu.vector_store %arg9[%c0_41, %c3920], %61 {strides = array<i32>} : memref<1x6272xf32, #tpu.memory_space<vmem>>, vector<1x196xf32>,
    %63 = vector.extract_strided_slice %20 {offsets = [21, 0], sizes = [1, 196], strides = [1, 1]} : vector<32x196xf32> to vector<1x196xf32>
    %c0_42 = arith.constant 0 : index
    %c4116 = arith.constant 4116 : index
    %64 = vector.load %arg9[%c0_42, %c4116] : memref<1x6272xf32, #tpu.memory_space<vmem>>, vector<1x196xf32>
    tpu.vector_store %arg9[%c0_42, %c4116], %63 {strides = array<i32>} : memref<1x6272xf32, #tpu.memory_space<vmem>>, vector<1x196xf32>,
    %65 = vector.extract_strided_slice %20 {offsets = [22, 0], sizes = [1, 196], strides = [1, 1]} : vector<32x196xf32> to vector<1x196xf32>
    %c0_43 = arith.constant 0 : index
    %c4312 = arith.constant 4312 : index
    %66 = vector.load %arg9[%c0_43, %c4312] : memref<1x6272xf32, #tpu.memory_space<vmem>>, vector<1x196xf32>
    tpu.vector_store %arg9[%c0_43, %c4312], %65 {strides = array<i32>} : memref<1x6272xf32, #tpu.memory_space<vmem>>, vector<1x196xf32>,
    %67 = vector.extract_strided_slice %20 {offsets = [23, 0], sizes = [1, 196], strides = [1, 1]} : vector<32x196xf32> to vector<1x196xf32>
    %c0_44 = arith.constant 0 : index
    %c4508 = arith.constant 4508 : index
    %68 = vector.load %arg9[%c0_44, %c4508] : memref<1x6272xf32, #tpu.memory_space<vmem>>, vector<1x196xf32>
    tpu.vector_store %arg9[%c0_44, %c4508], %67 {strides = array<i32>} : memref<1x6272xf32, #tpu.memory_space<vmem>>, vector<1x196xf32>,
    %69 = vector.extract_strided_slice %20 {offsets = [24, 0], sizes = [1, 196], strides = [1, 1]} : vector<32x196xf32> to vector<1x196xf32>
    %c0_45 = arith.constant 0 : index
    %c4704 = arith.constant 4704 : index
    %70 = vector.load %arg9[%c0_45, %c4704] : memref<1x6272xf32, #tpu.memory_space<vmem>>, vector<1x196xf32>
    tpu.vector_store %arg9[%c0_45, %c4704], %69 {strides = array<i32>} : memref<1x6272xf32, #tpu.memory_space<vmem>>, vector<1x196xf32>,
    %71 = vector.extract_strided_slice %20 {offsets = [25, 0], sizes = [1, 196], strides = [1, 1]} : vector<32x196xf32> to vector<1x196xf32>
    %c0_46 = arith.constant 0 : index
    %c4900 = arith.constant 4900 : index
    %72 = vector.load %arg9[%c0_46, %c4900] : memref<1x6272xf32, #tpu.memory_space<vmem>>, vector<1x196xf32>
    tpu.vector_store %arg9[%c0_46, %c4900], %71 {strides = array<i32>} : memref<1x6272xf32, #tpu.memory_space<vmem>>, vector<1x196xf32>,
    %73 = vector.extract_strided_slice %20 {offsets = [26, 0], sizes = [1, 196], strides = [1, 1]} : vector<32x196xf32> to vector<1x196xf32>
    %c0_47 = arith.constant 0 : index
    %c5096 = arith.constant 5096 : index
    %74 = vector.load %arg9[%c0_47, %c5096] : memref<1x6272xf32, #tpu.memory_space<vmem>>, vector<1x196xf32>
    tpu.vector_store %arg9[%c0_47, %c5096], %73 {strides = array<i32>} : memref<1x6272xf32, #tpu.memory_space<vmem>>, vector<1x196xf32>,
    %75 = vector.extract_strided_slice %20 {offsets = [27, 0], sizes = [1, 196], strides = [1, 1]} : vector<32x196xf32> to vector<1x196xf32>
    %c0_48 = arith.constant 0 : index
    %c5292 = arith.constant 5292 : index
    %76 = vector.load %arg9[%c0_48, %c5292] : memref<1x6272xf32, #tpu.memory_space<vmem>>, vector<1x196xf32>
    tpu.vector_store %arg9[%c0_48, %c5292], %75 {strides = array<i32>} : memref<1x6272xf32, #tpu.memory_space<vmem>>, vector<1x196xf32>,
    %77 = vector.extract_strided_slice %20 {offsets = [28, 0], sizes = [1, 196], strides = [1, 1]} : vector<32x196xf32> to vector<1x196xf32>
    %c0_49 = arith.constant 0 : index
    %c5488 = arith.constant 5488 : index
    %78 = vector.load %arg9[%c0_49, %c5488] : memref<1x6272xf32, #tpu.memory_space<vmem>>, vector<1x196xf32>
    tpu.vector_store %arg9[%c0_49, %c5488], %77 {strides = array<i32>} : memref<1x6272xf32, #tpu.memory_space<vmem>>, vector<1x196xf32>,
    %79 = vector.extract_strided_slice %20 {offsets = [29, 0], sizes = [1, 196], strides = [1, 1]} : vector<32x196xf32> to vector<1x196xf32>
    %c0_50 = arith.constant 0 : index
    %c5684 = arith.constant 5684 : index
    %80 = vector.load %arg9[%c0_50, %c5684] : memref<1x6272xf32, #tpu.memory_space<vmem>>, vector<1x196xf32>
    tpu.vector_store %arg9[%c0_50, %c5684], %79 {strides = array<i32>} : memref<1x6272xf32, #tpu.memory_space<vmem>>, vector<1x196xf32>,
    %81 = vector.extract_strided_slice %20 {offsets = [30, 0], sizes = [1, 196], strides = [1, 1]} : vector<32x196xf32> to vector<1x196xf32>
    %c0_51 = arith.constant 0 : index
    %c5880 = arith.constant 5880 : index
    %82 = vector.load %arg9[%c0_51, %c5880] : memref<1x6272xf32, #tpu.memory_space<vmem>>, vector<1x196xf32>
    tpu.vector_store %arg9[%c0_51, %c5880], %81 {strides = array<i32>} : memref<1x6272xf32, #tpu.memory_space<vmem>>, vector<1x196xf32>,
    %83 = vector.extract_strided_slice %20 {offsets = [31, 0], sizes = [1, 196], strides = [1, 1]} : vector<32x196xf32> to vector<1x196xf32>
    %c0_52 = arith.constant 0 : index
    %c6076 = arith.constant 6076 : index
    %84 = vector.load %arg9[%c0_52, %c6076] : memref<1x6272xf32, #tpu.memory_space<vmem>>, vector<1x196xf32>
    tpu.vector_store %arg9[%c0_52, %c6076], %83 {strides = array<i32>} : memref<1x6272xf32, #tpu.memory_space<vmem>>, vector<1x196xf32>,
    %c0_53 = arith.constant 0 : index
    %c0_54 = arith.constant 0 : index
    %85 = vector.load %arg9[%c0_53, %c0_54] : memref<1x6272xf32, #tpu.memory_space<vmem>>, vector<1x6272xf32>
    %86 = arith.truncf %85 : vector<1x6272xf32> to vector<1x6272xbf16>
    %c0_55 = arith.constant 0 : index
    %c0_56 = arith.constant 0 : index
    %87 = vector.load %arg4[%c0_55, %c0_56] : memref<6272x128xbf16, #tpu.memory_space<vmem>>, vector<6272x128xbf16>
    %cst_57 = arith.constant dense<0.000000e+00> : vector<1x128xf32>
    %88 = tpu.matmul %86, %87, %cst_57 {dimension_numbers = #tpu.dot_dimension_numbers<[1], [0], [0], [1], [0, 0, 1, 1], [], []>} : vector<1x6272xbf16>, vector<6272x128xbf16>, vector<1x128xf32> -> vector<1x128xf32>
    %c0_58 = arith.constant 0 : index
    %c0_59 = arith.constant 0 : index
    %89 = vector.load %arg5[%c0_58, %c0_59] : memref<1x128xf32, #tpu.memory_space<vmem>>, vector<1x128xf32>
    %90 = arith.addf %88, %89 : vector<1x128xf32>
    %cst_60 = arith.constant 0.000000e+00 : f32
    %91 = vector.broadcast %cst_60 : f32 to vector<1x128xf32>
    %92 = arith.maximumf %90, %91 : vector<1x128xf32>
    %c0_61 = arith.constant 0 : index
    %c0_62 = arith.constant 0 : index
    %93 = vector.load %arg6[%c0_61, %c0_62] : memref<128x10xf32, #tpu.memory_space<vmem>>, vector<128x10xf32>
    %cst_63 = arith.constant dense<0.000000e+00> : vector<1x10xf32>
    %94 = tpu.matmul %92, %93, %cst_63 {dimension_numbers = #tpu.dot_dimension_numbers<[1], [0], [0], [1], [0, 0, 1, 1], [], []>} : vector<1x128xf32>, vector<128x10xf32>, vector<1x10xf32> -> vector<1x10xf32>
    %c0_64 = arith.constant 0 : index
    %c0_65 = arith.constant 0 : index
    %95 = vector.load %arg7[%c0_64, %c0_65] : memref<1x10xf32, #tpu.memory_space<vmem>>, vector<1x10xf32>
    %96 = arith.addf %94, %95 : vector<1x10xf32>
    %c0_66 = arith.constant 0 : index
    %c0_67 = arith.constant 0 : index
    %c0_68 = arith.constant 0 : index
    %97 = vector.load %arg8[%c0_66, %c0_67, %c0_68] : memref<1x1x10xf32, #tpu.memory_space<vmem>>, vector<1x1x10xf32>
    %98 = vector.shape_cast %97 : vector<1x1x10xf32> to vector<1x10xf32>
    %99 = vector.shape_cast %96 : vector<1x10xf32> to vector<1x1x10xf32>
    tpu.vector_store %arg8[%c0_66, %c0_67, %c0_68], %99 {strides = array<i32>} : memref<1x1x10xf32, #tpu.memory_space<vmem>>, vector<1x1x10xf32>,
    return
  }
  func.func @transform_0(%arg0: i32) -> (i32, i32, i32, i32) {
    %c0_i32 = arith.constant 0 : i32
    %c0_i32_0 = arith.constant 0 : i32
    %c0_i32_1 = arith.constant 0 : i32
    %c0_i32_2 = arith.constant 0 : i32
    return %arg0, %c0_i32, %c0_i32_0, %c0_i32_1 : i32, i32, i32, i32
  }
  func.func @transform_1(%arg0: i32) -> (i32, i32) {
    %c0_i32 = arith.constant 0 : i32
    %c0_i32_0 = arith.constant 0 : i32
    %c0_i32_1 = arith.constant 0 : i32
    return %c0_i32, %c0_i32_0 : i32, i32
  }
  func.func @transform_2(%arg0: i32) -> (i32, i32) {
    %c0_i32 = arith.constant 0 : i32
    %c0_i32_0 = arith.constant 0 : i32
    %c0_i32_1 = arith.constant 0 : i32
    return %c0_i32, %c0_i32_0 : i32, i32
  }
  func.func @transform_3(%arg0: i32) -> (i32, i32) {
    %c0_i32 = arith.constant 0 : i32
    %c0_i32_0 = arith.constant 0 : i32
    %c0_i32_1 = arith.constant 0 : i32
    return %c0_i32, %c0_i32_0 : i32, i32
  }
  func.func @transform_4(%arg0: i32) -> (i32, i32) {
    %c0_i32 = arith.constant 0 : i32
    %c0_i32_0 = arith.constant 0 : i32
    %c0_i32_1 = arith.constant 0 : i32
    return %c0_i32, %c0_i32_0 : i32, i32
  }
  func.func @transform_5(%arg0: i32) -> (i32, i32) {
    %c0_i32 = arith.constant 0 : i32
    %c0_i32_0 = arith.constant 0 : i32
    %c0_i32_1 = arith.constant 0 : i32
    return %c0_i32, %c0_i32_0 : i32, i32
  }
  func.func @transform_6(%arg0: i32) -> (i32, i32) {
    %c0_i32 = arith.constant 0 : i32
    %c0_i32_0 = arith.constant 0 : i32
    %c0_i32_1 = arith.constant 0 : i32
    return %c0_i32, %c0_i32_0 : i32, i32
  }
  func.func @transform_7(%arg0: i32) -> (i32, i32, i32) {
    %c0_i32 = arith.constant 0 : i32
    %c0_i32_0 = arith.constant 0 : i32
    %c0_i32_1 = arith.constant 0 : i32
    return %arg0, %c0_i32, %c0_i32_0 : i32, i32, i32
  }
}

</mosaic_0001>

<llo_original>
// kernel: simple_cnn_forward.1
$region0: #{simple_cnn_forward.1}
  #allocation0 [shape = 'u32[]', space=smem, size = 0x4, offset = 0x4, fixed_abs, tag = 'smem constant byte address 0x4 - core index']
  #allocation1 [shape = 'u32[144,128]{1,0:T(1,128)}', space=vmem, size = 0x12000, scoped, tag = 'internal scratch']
  #allocation2 [shape = 'f32[1,6272]{1,0:T(1,128)}', space=vmem, size = 0x6200, scoped, tag = 'scratch operand']
  %s0 = inlined_call_operand.vmem [shape: bf16[2,4,9,196], index: 0, kind: input, shape index: {}]
  %s1 = inlined_call_operand.vmem [shape: bf16[32,9], index: 1, kind: input, shape index: {}]
  %s2 = inlined_call_operand.vmem [shape: f32[32,1], index: 2, kind: input, shape index: {}]
  %s3 = inlined_call_operand.vmem [shape: bf16[6272,128], index: 3, kind: input, shape index: {}]
  %s4 = inlined_call_operand.vmem [shape: f32[1,128], index: 4, kind: input, shape index: {}]
  %s5 = inlined_call_operand.vmem [shape: f32[128,10], index: 5, kind: input, shape index: {}]
  %s6 = inlined_call_operand.vmem [shape: f32[1,10], index: 6, kind: input, shape index: {}]
  %s7 = inlined_call_operand.hbm [shape: f32[2,1,10], index: 7, kind: output, shape index: {}]
  %s8 = sld [smem:[#allocation0]]
  $region61: #{simple_cnn_forward.1} parent=0
    _
  %s10 = ssub.s32 1, %s8
  %s11 = scalar_select 0, %s10, %s8
  $region1: #{simple_cnn_forward.1} parent=0
    #allocation3 [shape = 'u8[1024]{0}', space=vmem, size = 0x400, scoped, tag = 'output window, operand 0']
    #allocation4 [shape = 's32[2]{0}', space=sflag, size = 0x8, scoped, tag = 'scoped memory for simple_cnn_forward.1']
    %12 = vsyncpa [#allocation4], 0
    %s13 = scalar_lea.sflag [#allocation4], 1
    %14 = vsyncpa %s13, 0
    loop: start=0, step=1, limit=4
    $region2: #{simple_cnn_forward.1} parent=1 // loop_pre_header
      _
    $region3: #{simple_cnn_forward.1} parent=1 // loop_header
      %s16 = sphi 0, %s20
      %p17 = scmp.ge.s32.totalorder %s16, 4
      %s26 = sphi 0, %s28
      %s29 = sphi 0, %s26
      %s30 = sphi 0, %s29
      %s46 = sphi 0, %s30
      %s50 = sphi 0, %s50
      %s52 = sphi 0, %s50
      %s53 = sphi 0, %s52
      %s67 = sphi 0, %s53
      %s71 = sphi 0, %s71
      %s73 = sphi 0, %s71
      %s74 = sphi 0, %s73
      %s88 = sphi 0, %s74
      %s92 = sphi 0, %s92
      %s94 = sphi 0, %s92
      %s95 = sphi 0, %s94
      %s109 = sphi 0, %s95
      %s113 = sphi 0, %s113
      %s115 = sphi 0, %s113
      %s116 = sphi 0, %s115
      %s130 = sphi 0, %s116
      %s134 = sphi 0, %s134
      %s136 = sphi 0, %s134
      %s137 = sphi 0, %s136
      %s151 = sphi 0, %s137
      %s155 = sphi 0, %s155
      %s157 = sphi 0, %s155
      %s158 = sphi 0, %s157
      %s172 = sphi 0, %s158
      %s178 = sphi 0, %s180
      %s181 = sphi 0, %s178
      %s182 = sphi 0, %s181
      %s198 = sphi 0, %s182
    $region4: #{simple_cnn_forward.1} parent=1 // loop_header_branch
      %19 = sbr.rel (%p17) target = $region8
    $region5: #{simple_cnn_forward.1} parent=1 // loop_body
      %s21 = ssub.s32 %s16, 1
      %s22 = ssub.s32 %s16, 2
      %s23 = sadd.s32 %s16, 1
      %s24 = ssub.s32 %s16, %s23
      %p25 = scmp.eq.s32.totalorder %s24, 0
      %s27 = sadd.s32 %s26, 1
      %s28 = scalar_select %p25, %s26, %s27
      %p31 = pneg %p25
      %p32 = scmp.eq.s32.totalorder %s16, 1
      %p33 = por %p31, %p32
      %p34 = scmp.ne.s32.totalorder %s26, %s29
      %p35 = scmp.eq.s32.totalorder %s16, 0
      %p36 = por %p34, %p35
      %p37 = scmp.ne.s32.totalorder %s26, %s29
      %p38 = scmp.eq.s32.totalorder %s21, 1
      %p39 = por %p37, %p38
      %p40 = scmp.ne.s32.totalorder %s29, %s30
      %p41 = scmp.eq.s32.totalorder %s21, 0
      %p42 = por %p40, %p41
      %p43 = scmp.ne.s32.totalorder %s29, %s30
      %p44 = scmp.eq.s32.totalorder %s22, 1
      %p45 = por %p43, %p44
      %p47 = scmp.ne.s32.totalorder %s30, %s46
      %p48 = scmp.eq.s32.totalorder %s22, 0
      %p49 = por %p47, %p48
      %s51 = sadd.s32 %s50, 1
      %p54 = scmp.eq.s32.totalorder %s16, 1
      %p55 = scmp.ne.s32.totalorder %s50, %s52
      %p56 = scmp.eq.s32.totalorder %s16, 0
      %p57 = por %p55, %p56
      %p58 = scmp.ne.s32.totalorder %s50, %s52
      %p59 = scmp.eq.s32.totalorder %s21, 1
      %p60 = por %p58, %p59
      %p61 = scmp.ne.s32.totalorder %s52, %s53
      %p62 = scmp.eq.s32.totalorder %s21, 0
      %p63 = por %p61, %p62
      %p64 = scmp.ne.s32.totalorder %s52, %s53
      %p65 = scmp.eq.s32.totalorder %s22, 1
      %p66 = por %p64, %p65
      %p68 = scmp.ne.s32.totalorder %s53, %s67
      %p69 = scmp.eq.s32.totalorder %s22, 0
      %p70 = por %p68, %p69
      %s72 = sadd.s32 %s71, 1
      %p75 = scmp.eq.s32.totalorder %s16, 1
      %p76 = scmp.ne.s32.totalorder %s71, %s73
      %p77 = scmp.eq.s32.totalorder %s16, 0
      %p78 = por %p76, %p77
      %p79 = scmp.ne.s32.totalorder %s71, %s73
      %p80 = scmp.eq.s32.totalorder %s21, 1
      %p81 = por %p79, %p80
      %p82 = scmp.ne.s32.totalorder %s73, %s74
      %p83 = scmp.eq.s32.totalorder %s21, 0
      %p84 = por %p82, %p83
      %p85 = scmp.ne.s32.totalorder %s73, %s74
      %p86 = scmp.eq.s32.totalorder %s22, 1
      %p87 = por %p85, %p86
      %p89 = scmp.ne.s32.totalorder %s74, %s88
      %p90 = scmp.eq.s32.totalorder %s22, 0
      %p91 = por %p89, %p90
      %s93 = sadd.s32 %s92, 1
      %p96 = scmp.eq.s32.totalorder %s16, 1
      %p97 = scmp.ne.s32.totalorder %s92, %s94
      %p98 = scmp.eq.s32.totalorder %s16, 0
      %p99 = por %p97, %p98
      %p100 = scmp.ne.s32.totalorder %s92, %s94
      %p101 = scmp.eq.s32.totalorder %s21, 1
      %p102 = por %p100, %p101
      %p103 = scmp.ne.s32.totalorder %s94, %s95
      %p104 = scmp.eq.s32.totalorder %s21, 0
      %p105 = por %p103, %p104
      %p106 = scmp.ne.s32.totalorder %s94, %s95
      %p107 = scmp.eq.s32.totalorder %s22, 1
      %p108 = por %p106, %p107
      %p110 = scmp.ne.s32.totalorder %s95, %s109
      %p111 = scmp.eq.s32.totalorder %s22, 0
      %p112 = por %p110, %p111
      %s114 = sadd.s32 %s113, 1
      %p117 = scmp.eq.s32.totalorder %s16, 1
      %p118 = scmp.ne.s32.totalorder %s113, %s115
      %p119 = scmp.eq.s32.totalorder %s16, 0
      %p120 = por %p118, %p119
      %p121 = scmp.ne.s32.totalorder %s113, %s115
      %p122 = scmp.eq.s32.totalorder %s21, 1
      %p123 = por %p121, %p122
      %p124 = scmp.ne.s32.totalorder %s115, %s116
      %p125 = scmp.eq.s32.totalorder %s21, 0
      %p126 = por %p124, %p125
      %p127 = scmp.ne.s32.totalorder %s115, %s116
      %p128 = scmp.eq.s32.totalorder %s22, 1
      %p129 = por %p127, %p128
      %p131 = scmp.ne.s32.totalorder %s116, %s130
      %p132 = scmp.eq.s32.totalorder %s22, 0
      %p133 = por %p131, %p132
      %s135 = sadd.s32 %s134, 1
      %p138 = scmp.eq.s32.totalorder %s16, 1
      %p139 = scmp.ne.s32.totalorder %s134, %s136
      %p140 = scmp.eq.s32.totalorder %s16, 0
      %p141 = por %p139, %p140
      %p142 = scmp.ne.s32.totalorder %s134, %s136
      %p143 = scmp.eq.s32.totalorder %s21, 1
      %p144 = por %p142, %p143
      %p145 = scmp.ne.s32.totalorder %s136, %s137
      %p146 = scmp.eq.s32.totalorder %s21, 0
      %p147 = por %p145, %p146
      %p148 = scmp.ne.s32.totalorder %s136, %s137
      %p149 = scmp.eq.s32.totalorder %s22, 1
      %p150 = por %p148, %p149
      %p152 = scmp.ne.s32.totalorder %s137, %s151
      %p153 = scmp.eq.s32.totalorder %s22, 0
      %p154 = por %p152, %p153
      %s156 = sadd.s32 %s155, 1
      %p159 = scmp.eq.s32.totalorder %s16, 1
      %p160 = scmp.ne.s32.totalorder %s155, %s157
      %p161 = scmp.eq.s32.totalorder %s16, 0
      %p162 = por %p160, %p161
      %p163 = scmp.ne.s32.totalorder %s155, %s157
      %p164 = scmp.eq.s32.totalorder %s21, 1
      %p165 = por %p163, %p164
      %p166 = scmp.ne.s32.totalorder %s157, %s158
      %p167 = scmp.eq.s32.totalorder %s21, 0
      %p168 = por %p166, %p167
      %p169 = scmp.ne.s32.totalorder %s157, %s158
      %p170 = scmp.eq.s32.totalorder %s22, 1
      %p171 = por %p169, %p170
      %p173 = scmp.ne.s32.totalorder %s158, %s172
      %p174 = scmp.eq.s32.totalorder %s22, 0
      %p175 = por %p173, %p174
      %s176 = ssub.s32 %s16, %s23
      %p177 = scmp.eq.s32.totalorder %s176, 0
      %s179 = sadd.s32 %s178, 1
      %s180 = scalar_select %p177, %s178, %s179
      %p183 = pneg %p177
      %p184 = scmp.eq.s32.totalorder %s16, 1
      %p185 = por %p183, %p184
      %p186 = scmp.ne.s32.totalorder %s178, %s181
      %p187 = scmp.eq.s32.totalorder %s16, 0
      %p188 = por %p186, %p187
      %p189 = scmp.ne.s32.totalorder %s178, %s181
      %p190 = scmp.eq.s32.totalorder %s21, 1
      %p191 = por %p189, %p190
      %p192 = scmp.ne.s32.totalorder %s181, %s182
      %p193 = scmp.eq.s32.totalorder %s21, 0
      %p194 = por %p192, %p193
      %p195 = scmp.ne.s32.totalorder %s181, %s182
      %p196 = scmp.eq.s32.totalorder %s22, 1
      %p197 = por %p195, %p196
      %p199 = scmp.ne.s32.totalorder %s182, %s198
      %p200 = scmp.eq.s32.totalorder %s22, 0
      %p201 = por %p199, %p200
      %p202 = scmp.le.s32.totalorder 1, %s16
      %p203 = scmp.lt.s32.totalorder %s16, 3
      %p204 = pnand %p202, %p203
      %p205 = pneg %p204
      // Predicated region
      $region9: #{simple_cnn_forward.1} parent=5 // pred_check
        _
      $region10: #{simple_cnn_forward.1} parent=5 // pred_check_branch
        %207 = sbr.rel (%p204) target = $region12
      $region11: #{simple_cnn_forward.1} parent=5 // pred_region
        %s208 = ssub.s32 %s16, 1
        // Predicated region
        $region13: #{simple_cnn_forward.1} parent=11 // pred_check
          %p209 = pneg %p63
        $region14: #{simple_cnn_forward.1} parent=11 // pred_check_branch
          %211 = sbr.rel (%p209) target = $region16
        $region15: #{simple_cnn_forward.1} parent=11 // pred_region
          _
        $region16: #{simple_cnn_forward.1} parent=11 // pred_fallthru
          _
        // Predicated region
        $region17: #{simple_cnn_forward.1} parent=11 // pred_check
          %p212 = pneg %p84
        $region18: #{simple_cnn_forward.1} parent=11 // pred_check_branch
          %214 = sbr.rel (%p212) target = $region20
        $region19: #{simple_cnn_forward.1} parent=11 // pred_region
          _
        $region20: #{simple_cnn_forward.1} parent=11 // pred_fallthru
          _
        // Predicated region
        $region21: #{simple_cnn_forward.1} parent=11 // pred_check
          %p215 = pneg %p105
        $region22: #{simple_cnn_forward.1} parent=11 // pred_check_branch
          %217 = sbr.rel (%p215) target = $region24
        $region23: #{simple_cnn_forward.1} parent=11 // pred_region
          _
        $region24: #{simple_cnn_forward.1} parent=11 // pred_fallthru
          _
        // Predicated region
        $region25: #{simple_cnn_forward.1} parent=11 // pred_check
          %p218 = pneg %p126
        $region26: #{simple_cnn_forward.1} parent=11 // pred_check_branch
          %220 = sbr.rel (%p218) target = $region28
        $region27: #{simple_cnn_forward.1} parent=11 // pred_region
          _
        $region28: #{simple_cnn_forward.1} parent=11 // pred_fallthru
          _
        // Predicated region
        $region29: #{simple_cnn_forward.1} parent=11 // pred_check
          %p221 = pneg %p147
        $region30: #{simple_cnn_forward.1} parent=11 // pred_check_branch
          %223 = sbr.rel (%p221) target = $region32
        $region31: #{simple_cnn_forward.1} parent=11 // pred_region
          _
        $region32: #{simple_cnn_forward.1} parent=11 // pred_fallthru
          _
        // Predicated region
        $region33: #{simple_cnn_forward.1} parent=11 // pred_check
          %p224 = pneg %p168
        $region34: #{simple_cnn_forward.1} parent=11 // pred_check_branch
          %226 = sbr.rel (%p224) target = $region36
        $region35: #{simple_cnn_forward.1} parent=11 // pred_region
          _
        $region36: #{simple_cnn_forward.1} parent=11 // pred_fallthru
          _
      $region12: #{simple_cnn_forward.1} parent=5 // pred_fallthru
        _
      %p227 = scmp.lt.s32.totalorder %s16, 2
      // Predicated region
      $region37: #{simple_cnn_forward.1} parent=5 // pred_check
        %p228 = pneg %p227
      $region38: #{simple_cnn_forward.1} parent=5 // pred_check_branch
        %230 = sbr.rel (%p228) target = $region40
      $region39: #{simple_cnn_forward.1} parent=5 // pred_region
        // Predicated region
        $region41: #{simple_cnn_forward.1} parent=39 // pred_check
          %p231 = pneg %p36
        $region42: #{simple_cnn_forward.1} parent=39 // pred_check_branch
          %233 = sbr.rel (%p231) target = $region44
        $region43: #{simple_cnn_forward.1} parent=39 // pred_region
          %p234 = scmp.lt.s32.totalorder %s16, 1
          %s235 = scalar_select %p234, %s16, 1
          %s236 = smul.addr %s235, 16
          %s237 = smul.addr %s236, 4
          %s238 = scalar_lea.vmem %s0, %s237
        $region44: #{simple_cnn_forward.1} parent=39 // pred_fallthru
          _
      $region40: #{simple_cnn_forward.1} parent=5 // pred_fallthru
        _
      %p239 = scmp.le.s32.totalorder 1, %s16
      %p240 = scmp.lt.s32.totalorder %s16, 3
      %p241 = pnand %p239, %p240
      %p242 = pneg %p241
      // Predicated region
      $region45: #{simple_cnn_forward.1} parent=5 // pred_check
        _
      $region46: #{simple_cnn_forward.1} parent=5 // pred_check_branch
        %244 = sbr.rel (%p241) target = $region48
      $region47: #{simple_cnn_forward.1} parent=5 // pred_region
        %s245 = ssub.s32 %s16, 1
        %p246 = scmp.lt.s32.totalorder %s21, 1
        %s247 = scalar_select %p246, %s21, 1
        %s248 = smul.addr %s247, 16
        %s249 = smul.addr %s248, 4
        %s250 = scalar_lea.vmem %s0, %s249
        %p251 = pneg %p42
        %p252 = pneg %p39
        %p253 = pneg %p63
        %p254 = pneg %p60
        %p255 = pneg %p84
        %p256 = pneg %p81
        %p257 = pneg %p105
        %p258 = pneg %p102
        %p259 = pneg %p126
        %p260 = pneg %p123
        %p261 = pneg %p147
        %p262 = pneg %p144
        %p263 = pneg %p168
        %p264 = pneg %p165
        %p265 = pneg %p194
        %p266 = pneg %p191
        %s267 = sand.u32 %s181, 1
        %s268 = scalar_lea.sflag [#allocation4], %s267
        %s269 = sand.u32 %s181, 1
        %s270 = scalar_lea.vmem [#allocation3], %s269
        %p271 = scmp.lt.s32.totalorder %s21, 1
        %s272 = scalar_select %p271, %s21, 1
        %s273 = smul.addr %s272, 16
        %s274 = smul.addr %s273, 4
        %s275 = scalar_lea.vmem %s0, %s274
        %v277 = vld [vmem:[%s1] sm:$0xf]
        %v278 = vld [vmem:[%s1 + $0x4] sm:$0xf]
        %v279 = vld [vmem:[%s1 + $0x8] sm:$0xf]
        %v280 = vld [vmem:[%s1 + $0xc] sm:$0xf]
        %v281 = vld [vmem:[%s275] sm:$0xff]
        %v282 = vld [vmem:[%s275 + $0x8] sm:$0x11]
        %v287 = vunpack.c.l.b16 %v277
        %v288 = vunpack.c.l.b16 %v278
        %v289 = vunpack.c.l.b16 %v279
        %v290 = vunpack.c.l.b16 %v280
        %v291 = vpack.c.b16 %v288, %v287
        %v292 = vpack.c.b16 %v290, %v289
        %v295 = vunpack.c.l.b16 %v281
        %v296 = vunpack.c.h.b16 %v281
        %v297 = vunpack.c.l.b16 %v282
        %v298 = vunpack.c.h.b16 %v282
        %v299 = vpack.c.b16 %v297, %v295
        %v300 = vpack.c.b16 %v298, %v296
        %vm301 = vcmask 72704
        %v303 = vsel %vm301, %v291, 0
        %v306 = vsel %vm301, %v292, 0
        %vm308 = vcmask 1043456
        %vm309 = vcmask 1044480
        %v310 = vsel %vm308, 4294967295, 65535
        %v311 = vsel %vm309, %v310, 0
        %v313 = vand.u32 %v299, %v311
        %v316 = vand.u32 %v300, %v311
        %318 = vmatprep.subr.bf16.mxu0 %v316
        %319 = vmatpush1.bf16.msra.mxu0 %v313
        %320 = vmatprep.subr.bf16.mxu0 0
        %321 = vmatpush1.bf16.msra.mxu0 0
        %322 = vmatprep.subr.bf16.mxu0 0
        %323 = vmatpush1.bf16.msra.mxu0 0
        %324 = vmatprep.subr.bf16.mxu0 0
        %325 = vmatpush1.bf16.msra.mxu0 0
        %326 = vmatprep.subr.bf16.mxu0 0
        %327 = vmatpush1.bf16.msra.mxu0 0
        %328 = vmatprep.subr.bf16.mxu0 0
        %329 = vmatpush1.bf16.msra.mxu0 0
        %330 = vmatprep.subr.bf16.mxu0 0
        %331 = vmatpush1.bf16.msra.mxu0 0
        %332 = vmatprep.subr.bf16.mxu0 0
        %333 = vmatpush1.bf16.msra.mxu0 0
        %334 = vmatprep.subr.bf16.mxu0 0
        %335 = vmatpush1.bf16.msra.mxu0 0
        %336 = vmatprep.subr.bf16.mxu0 0
        %337 = vmatpush1.bf16.msra.mxu0 0
        %338 = vmatprep.subr.bf16.mxu0 0
        %339 = vmatpush1.bf16.msra.mxu0 0
        %340 = vmatprep.subr.bf16.mxu0 0
        %341 = vmatpush1.bf16.msra.mxu0 0
        %342 = vmatprep.subr.bf16.mxu0 0
        %343 = vmatpush1.bf16.msra.mxu0 0
        %344 = vmatprep.subr.bf16.mxu0 0
        %345 = vmatpush1.bf16.msra.mxu0 0
        %346 = vmatprep.subr.bf16.mxu0 0
        %347 = vmatpush1.bf16.msra.mxu0 0
        %348 = vmatprep.subr.bf16.mxu0 0
        %349 = vmatpush1.bf16.msra.mxu0 0
        %350 = vmatprep.mubr.bf16.mxu0 0
        %351 = vmatmul.mubr.bf16.gmra.mrb[0].mxu0 %v303
        %v352 = vpop.f32.mrb[0].mxu0
        %v353 = vadd.f32 0.0, %v352
        %v354 = vpop.f32.mrb[0].mxu0
        %v355 = vadd.f32 0.0, %v354
        %v356 = vpop.f32.mrb[0].mxu0
        %v357 = vadd.f32 0.0, %v356
        %v358 = vpop.f32.mrb[0].mxu0
        %v359 = vadd.f32 0.0, %v358
        %360 = vmatprep.mubr.bf16.mxu0 0
        %361 = vmatmul.mubr.bf16.gmra.mrb[0].mxu0 %v306
        %v362 = vpop.f32.mrb[0].mxu0
        %v363 = vadd.f32 0.0, %v362
        %v364 = vpop.f32.mrb[0].mxu0
        %v365 = vadd.f32 0.0, %v364
        %v366 = vpop.f32.mrb[0].mxu0
        %v367 = vadd.f32 0.0, %v366
        %v368 = vpop.f32.mrb[0].mxu0
        %v369 = vadd.f32 0.0, %v368
        %370 = vdwg.mxu0
        %s371 = scalar_lea.vmem %s275, 16
        %v372 = vld [vmem:[%s371] sm:$0xff]
        %v373 = vld [vmem:[%s371 + $0x8] sm:$0x11]
        %v376 = vunpack.c.l.b16 %v372
        %v377 = vunpack.c.h.b16 %v372
        %v378 = vunpack.c.l.b16 %v373
        %v379 = vunpack.c.h.b16 %v373
        %v380 = vpack.c.b16 %v378, %v376
        %v381 = vpack.c.b16 %v379, %v377
        %v383 = vand.u32 %v380, %v311
        %v386 = vand.u32 %v381, %v311
        %388 = vmatprep.subr.bf16.mxu0 %v386
        %389 = vmatpush1.bf16.msra.mxu0 %v383
        %390 = vmatprep.subr.bf16.mxu0 0
        %391 = vmatpush1.bf16.msra.mxu0 0
        %392 = vmatprep.subr.bf16.mxu0 0
        %393 = vmatpush1.bf16.msra.mxu0 0
        %394 = vmatprep.subr.bf16.mxu0 0
        %395 = vmatpush1.bf16.msra.mxu0 0
        %396 = vmatprep.subr.bf16.mxu0 0
        %397 = vmatpush1.bf16.msra.mxu0 0
        %398 = vmatprep.subr.bf16.mxu0 0
        %399 = vmatpush1.bf16.msra.mxu0 0
        %400 = vmatprep.subr.bf16.mxu0 0
        %401 = vmatpush1.bf16.msra.mxu0 0
        %402 = vmatprep.subr.bf16.mxu0 0
        %403 = vmatpush1.bf16.msra.mxu0 0
        %404 = vmatprep.subr.bf16.mxu0 0
        %405 = vmatpush1.bf16.msra.mxu0 0
        %406 = vmatprep.subr.bf16.mxu0 0
        %407 = vmatpush1.bf16.msra.mxu0 0
        %408 = vmatprep.subr.bf16.mxu0 0
        %409 = vmatpush1.bf16.msra.mxu0 0
        %410 = vmatprep.subr.bf16.mxu0 0
        %411 = vmatpush1.bf16.msra.mxu0 0
        %412 = vmatprep.subr.bf16.mxu0 0
        %413 = vmatpush1.bf16.msra.mxu0 0
        %414 = vmatprep.subr.bf16.mxu0 0
        %415 = vmatpush1.bf16.msra.mxu0 0
        %416 = vmatprep.subr.bf16.mxu0 0
        %417 = vmatpush1.bf16.msra.mxu0 0
        %418 = vmatprep.subr.bf16.mxu0 0
        %419 = vmatpush1.bf16.msra.mxu0 0
        %420 = vmatprep.mubr.bf16.mxu0 0
        %421 = vmatmul.mubr.bf16.gmra.mrb[0].mxu0 %v303
        %v422 = vpop.f32.mrb[0].mxu0
        %v423 = vadd.f32 0.0, %v422
        %v424 = vpop.f32.mrb[0].mxu0
        %v425 = vadd.f32 0.0, %v424
        %v426 = vpop.f32.mrb[0].mxu0
        %v427 = vadd.f32 0.0, %v426
        %v428 = vpop.f32.mrb[0].mxu0
        %v429 = vadd.f32 0.0, %v428
        %430 = vmatprep.mubr.bf16.mxu0 0
        %431 = vmatmul.mubr.bf16.gmra.mrb[0].mxu0 %v306
        %v432 = vpop.f32.mrb[0].mxu0
        %v433 = vadd.f32 0.0, %v432
        %v434 = vpop.f32.mrb[0].mxu0
        %v435 = vadd.f32 0.0, %v434
        %v436 = vpop.f32.mrb[0].mxu0
        %v437 = vadd.f32 0.0, %v436
        %v438 = vpop.f32.mrb[0].mxu0
        %v439 = vadd.f32 0.0, %v438
        %440 = vdwg.mxu0
        %v441 = vmax.f32 %v353, %v423
        %v442 = vmax.f32 %v355, %v425
        %v443 = vmax.f32 %v357, %v427
        %v444 = vmax.f32 %v359, %v429
        %v445 = vmax.f32 %v363, %v433
        %v446 = vmax.f32 %v365, %v435
        %v447 = vmax.f32 %v367, %v437
        %v448 = vmax.f32 %v369, %v439
        %s449 = scalar_lea.vmem %s275, 32
        %v450 = vld [vmem:[%s449] sm:$0xff]
        %v451 = vld [vmem:[%s449 + $0x8] sm:$0x11]
        %v454 = vunpack.c.l.b16 %v450
        %v455 = vunpack.c.h.b16 %v450
        %v456 = vunpack.c.l.b16 %v451
        %v457 = vunpack.c.h.b16 %v451
        %v458 = vpack.c.b16 %v456, %v454
        %v459 = vpack.c.b16 %v457, %v455
        %v461 = vand.u32 %v458, %v311
        %v464 = vand.u32 %v459, %v311
        %466 = vmatprep.subr.bf16.mxu0 %v464
        %467 = vmatpush1.bf16.msra.mxu0 %v461
        %468 = vmatprep.subr.bf16.mxu0 0
        %469 = vmatpush1.bf16.msra.mxu0 0
        %470 = vmatprep.subr.bf16.mxu0 0
        %471 = vmatpush1.bf16.msra.mxu0 0
        %472 = vmatprep.subr.bf16.mxu0 0
        %473 = vmatpush1.bf16.msra.mxu0 0
        %474 = vmatprep.subr.bf16.mxu0 0
        %475 = vmatpush1.bf16.msra.mxu0 0
        %476 = vmatprep.subr.bf16.mxu0 0
        %477 = vmatpush1.bf16.msra.mxu0 0
        %478 = vmatprep.subr.bf16.mxu0 0
        %479 = vmatpush1.bf16.msra.mxu0 0
        %480 = vmatprep.subr.bf16.mxu0 0
        %481 = vmatpush1.bf16.msra.mxu0 0
        %482 = vmatprep.subr.bf16.mxu0 0
        %483 = vmatpush1.bf16.msra.mxu0 0
        %484 = vmatprep.subr.bf16.mxu0 0
        %485 = vmatpush1.bf16.msra.mxu0 0
        %486 = vmatprep.subr.bf16.mxu0 0
        %487 = vmatpush1.bf16.msra.mxu0 0
        %488 = vmatprep.subr.bf16.mxu0 0
        %489 = vmatpush1.bf16.msra.mxu0 0
        %490 = vmatprep.subr.bf16.mxu0 0
        %491 = vmatpush1.bf16.msra.mxu0 0
        %492 = vmatprep.subr.bf16.mxu0 0
        %493 = vmatpush1.bf16.msra.mxu0 0
        %494 = vmatprep.subr.bf16.mxu0 0
        %495 = vmatpush1.bf16.msra.mxu0 0
        %496 = vmatprep.subr.bf16.mxu0 0
        %497 = vmatpush1.bf16.msra.mxu0 0
        %498 = vmatprep.mubr.bf16.mxu0 0
        %499 = vmatmul.mubr.bf16.gmra.mrb[0].mxu0 %v303
        %v500 = vpop.f32.mrb[0].mxu0
        %v501 = vadd.f32 0.0, %v500
        %v502 = vpop.f32.mrb[0].mxu0
        %v503 = vadd.f32 0.0, %v502
        %v504 = vpop.f32.mrb[0].mxu0
        %v505 = vadd.f32 0.0, %v504
        %v506 = vpop.f32.mrb[0].mxu0
        %v507 = vadd.f32 0.0, %v506
        %508 = vmatprep.mubr.bf16.mxu0 0
        %509 = vmatmul.mubr.bf16.gmra.mrb[0].mxu0 %v306
        %v510 = vpop.f32.mrb[0].mxu0
        %v511 = vadd.f32 0.0, %v510
        %v512 = vpop.f32.mrb[0].mxu0
        %v513 = vadd.f32 0.0, %v512
        %v514 = vpop.f32.mrb[0].mxu0
        %v515 = vadd.f32 0.0, %v514
        %v516 = vpop.f32.mrb[0].mxu0
        %v517 = vadd.f32 0.0, %v516
        %518 = vdwg.mxu0
        %v519 = vmax.f32 %v441, %v501
        %v520 = vmax.f32 %v442, %v503
        %v521 = vmax.f32 %v443, %v505
        %v522 = vmax.f32 %v444, %v507
        %v523 = vmax.f32 %v445, %v511
        %v524 = vmax.f32 %v446, %v513
        %v525 = vmax.f32 %v447, %v515
        %v526 = vmax.f32 %v448, %v517
        %s527 = scalar_lea.vmem %s275, 48
        %v528 = vld [vmem:[%s527] sm:$0xff]
        %v529 = vld [vmem:[%s527 + $0x8] sm:$0x11]
        %v532 = vunpack.c.l.b16 %v528
        %v533 = vunpack.c.h.b16 %v528
        %v534 = vunpack.c.l.b16 %v529
        %v535 = vunpack.c.h.b16 %v529
        %v536 = vpack.c.b16 %v534, %v532
        %v537 = vpack.c.b16 %v535, %v533
        %v539 = vand.u32 %v536, %v311
        %v542 = vand.u32 %v537, %v311
        %544 = vmatprep.subr.bf16.mxu0 %v542
        %545 = vmatpush1.bf16.msra.mxu0 %v539
        %546 = vmatprep.subr.bf16.mxu0 0
        %547 = vmatpush1.bf16.msra.mxu0 0
        %548 = vmatprep.subr.bf16.mxu0 0
        %549 = vmatpush1.bf16.msra.mxu0 0
        %550 = vmatprep.subr.bf16.mxu0 0
        %551 = vmatpush1.bf16.msra.mxu0 0
        %552 = vmatprep.subr.bf16.mxu0 0
        %553 = vmatpush1.bf16.msra.mxu0 0
        %554 = vmatprep.subr.bf16.mxu0 0
        %555 = vmatpush1.bf16.msra.mxu0 0
        %556 = vmatprep.subr.bf16.mxu0 0
        %557 = vmatpush1.bf16.msra.mxu0 0
        %558 = vmatprep.subr.bf16.mxu0 0
        %559 = vmatpush1.bf16.msra.mxu0 0
        %560 = vmatprep.subr.bf16.mxu0 0
        %561 = vmatpush1.bf16.msra.mxu0 0
        %562 = vmatprep.subr.bf16.mxu0 0
        %563 = vmatpush1.bf16.msra.mxu0 0
        %564 = vmatprep.subr.bf16.mxu0 0
        %565 = vmatpush1.bf16.msra.mxu0 0
        %566 = vmatprep.subr.bf16.mxu0 0
        %567 = vmatpush1.bf16.msra.mxu0 0
        %568 = vmatprep.subr.bf16.mxu0 0
        %569 = vmatpush1.bf16.msra.mxu0 0
        %570 = vmatprep.subr.bf16.mxu0 0
        %571 = vmatpush1.bf16.msra.mxu0 0
        %572 = vmatprep.subr.bf16.mxu0 0
        %573 = vmatpush1.bf16.msra.mxu0 0
        %574 = vmatprep.subr.bf16.mxu0 0
        %575 = vmatpush1.bf16.msra.mxu0 0
        %576 = vmatprep.mubr.bf16.mxu0 0
        %577 = vmatmul.mubr.bf16.gmra.mrb[0].mxu0 %v303
        %v578 = vpop.f32.mrb[0].mxu0
        %v579 = vadd.f32 0.0, %v578
        %v580 = vpop.f32.mrb[0].mxu0
        %v581 = vadd.f32 0.0, %v580
        %v582 = vpop.f32.mrb[0].mxu0
        %v583 = vadd.f32 0.0, %v582
        %v584 = vpop.f32.mrb[0].mxu0
        %v585 = vadd.f32 0.0, %v584
        %586 = vmatprep.mubr.bf16.mxu0 0
        %587 = vmatmul.mubr.bf16.gmra.mrb[0].mxu0 %v306
        %v588 = vpop.f32.mrb[0].mxu0
        %v589 = vadd.f32 0.0, %v588
        %v590 = vpop.f32.mrb[0].mxu0
        %v591 = vadd.f32 0.0, %v590
        %v592 = vpop.f32.mrb[0].mxu0
        %v593 = vadd.f32 0.0, %v592
        %v594 = vpop.f32.mrb[0].mxu0
        %v595 = vadd.f32 0.0, %v594
        %596 = vdwg.mxu0
        %v597 = vmax.f32 %v519, %v579
        %v598 = vmax.f32 %v520, %v581
        %v599 = vmax.f32 %v521, %v583
        %v600 = vmax.f32 %v522, %v585
        %v601 = vmax.f32 %v523, %v589
        %v602 = vmax.f32 %v524, %v591
        %v603 = vmax.f32 %v525, %v593
        %v604 = vmax.f32 %v526, %v595
        %v605 = vld [vmem:[%s2] sm:$0xff]
        %v606 = vld [vmem:[%s2 + $0x8] sm:$0xff]
        %v607 = vld [vmem:[%s2 + $0x10] sm:$0xff]
        %v608 = vld [vmem:[%s2 + $0x18] sm:$0xff]
        %610 = vset.pattern.permute.xlu0 0
        %611 = vperm.xlu0 %610, %v605
        %v612 = vpop.permute.xlu0 %611
        %615 = vset.pattern.permute.xlu0 0
        %616 = vperm.xlu0 %615, %v606
        %v617 = vpop.permute.xlu0 %616
        %620 = vset.pattern.permute.xlu0 0
        %621 = vperm.xlu0 %620, %v607
        %v622 = vpop.permute.xlu0 %621
        %625 = vset.pattern.permute.xlu0 0
        %626 = vperm.xlu0 %625, %v608
        %v627 = vpop.permute.xlu0 %626
        %v629 = vadd.f32 %v597, %v612
        %v630 = vadd.f32 %v598, %v612
        %v631 = vadd.f32 %v599, %v617
        %v632 = vadd.f32 %v600, %v617
        %v633 = vadd.f32 %v601, %v622
        %v634 = vadd.f32 %v602, %v622
        %v635 = vadd.f32 %v603, %v627
        %v636 = vadd.f32 %v604, %v627
        %v637 = vmax.f32 %v629, 0.0
        %v638 = vmax.f32 %v630, 0.0
        %v639 = vmax.f32 %v631, 0.0
        %v640 = vmax.f32 %v632, 0.0
        %v641 = vmax.f32 %v633, 0.0
        %v642 = vmax.f32 %v634, 0.0
        %v643 = vmax.f32 %v635, 0.0
        %v644 = vmax.f32 %v636, 0.0
        %v647 = vcombine.low %v637, %v638
        %v649 = vunpack.c.l.s4 1966171168
        %v650 = vunpack.c.0.s8 %v649
        %v651 = vlaneseq
        %v652 = vshrl.u32 %v651, 7
        %v653 = vsub.s32 %v650, %v652
        %v654 = vrot.slane %v647, %v653
        %v656 = vunpack.c.l.s4 1966171168
        %v657 = vunpack.c.0.s8 %v656
        %v658 = vlaneseq
        %v659 = vshrl.u32 %v658, 7
        %v660 = vsub.s32 %v657, %v659
        %v661 = vrot.slane %v654, %v660
        %v663 = vlaneseq
        %vm664 = vcmp.ge.s32.totalorder %v663, 0
        %vm665 = vcmp.lt.s32.totalorder %v663, 196
        %vm666 = vmand %vm664, %vm665
        %667 = vst.msk [vmem:[#allocation2] sm:$0x3] %vm666, %v661
        %v668 = vcombine.high %v654, %v654
        %v670 = vunpack.c.l.s4 1966171168
        %v671 = vunpack.c.0.s8 %v670
        %v672 = vlaneseq
        %v673 = vshrl.u32 %v672, 7
        %v674 = vsub.s32 %v671, %v673
        %v675 = vrot.slane %v668, %v674
        %676 = vrot.lane.b32.xlu0 %v675, 68
        %v677 = vpop.permute.xlu0 %676
        %v678 = vrot.slane %v677, 7
        %vm679 = vcmask 556032
        %v680 = vsel %vm679, %v678, %v677
        %vm682 = vcmp.ge.s32.totalorder %v663, 68
        %vm683 = vcmp.lt.s32.totalorder %v663, 264
        %vm684 = vmand %vm682, %vm683
        %685 = vst.msk [vmem:[#allocation2 + $0x1] sm:$0x7] %vm684, %v680
        %v686 = vcombine.high %v661, %v661
        %687 = vrot.lane.b32.xlu0 %v686, 8
        %v688 = vpop.permute.xlu0 %687
        %v689 = vrot.slane %v688, 7
        %vm690 = vcmask 64512
        %v691 = vsel %vm690, %v689, %v688
        %vm693 = vcmp.ge.s32.totalorder %v663, 8
        %vm694 = vcmp.lt.s32.totalorder %v663, 204
        %vm695 = vmand %vm693, %vm694
        %696 = vst.msk [vmem:[#allocation2 + $0x3] sm:$0x3] %vm695, %v691
        %v697 = vcombine.high %v675, %v675
        %698 = vrot.lane.b32.xlu0 %v697, 76
        %v699 = vpop.permute.xlu0 %698
        %v700 = vrot.slane %v699, 7
        %vm701 = vcmask 621568
        %v702 = vsel %vm701, %v700, %v699
        %vm704 = vcmp.ge.s32.totalorder %v663, 76
        %vm705 = vcmp.lt.s32.totalorder %v663, 272
        %vm706 = vmand %vm704, %vm705
        %707 = vst.msk [vmem:[#allocation2 + $0x4] sm:$0x7] %vm706, %v702
        %v708 = vcombine.high %v637, %v638
        %v710 = vunpack.c.l.s4 1966171168
        %v711 = vunpack.c.0.s8 %v710
        %v712 = vlaneseq
        %v713 = vshrl.u32 %v712, 7
        %v714 = vsub.s32 %v711, %v713
        %v715 = vrot.slane %v708, %v714
        %v717 = vunpack.c.l.s4 1966171168
        %v718 = vunpack.c.0.s8 %v717
        %v719 = vlaneseq
        %v720 = vshrl.u32 %v719, 7
        %v721 = vsub.s32 %v718, %v720
        %v722 = vrot.slane %v715, %v721
        %723 = vrot.lane.b32.xlu0 %v722, 16
        %v724 = vpop.permute.xlu0 %723
        %v725 = vrot.slane %v724, 7
        %vm726 = vcmask 130048
        %v727 = vsel %vm726, %v725, %v724
        %vm729 = vcmp.ge.s32.totalorder %v663, 16
        %vm730 = vcmp.lt.s32.totalorder %v663, 212
        %vm731 = vmand %vm729, %vm730
        %732 = vst.msk [vmem:[#allocation2 + $0x6] sm:$0x3] %vm731, %v727
        %v733 = vcombine.high %v715, %v715
        %v735 = vunpack.c.l.s4 1966171168
        %v736 = vunpack.c.0.s8 %v735
        %v737 = vlaneseq
        %v738 = vshrl.u32 %v737, 7
        %v739 = vsub.s32 %v736, %v738
        %v740 = vrot.slane %v733, %v739
        %741 = vrot.lane.b32.xlu0 %v740, 84
        %v742 = vpop.permute.xlu0 %741
        %v743 = vrot.slane %v742, 7
        %vm744 = vcmask 687104
        %v745 = vsel %vm744, %v743, %v742
        %vm747 = vcmp.ge.s32.totalorder %v663, 84
        %vm748 = vcmp.lt.s32.totalorder %v663, 280
        %vm749 = vmand %vm747, %vm748
        %750 = vst.msk [vmem:[#allocation2 + $0x7] sm:$0x7] %vm749, %v745
        %v751 = vcombine.high %v722, %v722
        %752 = vrot.lane.b32.xlu0 %v751, 24
        %v753 = vpop.permute.xlu0 %752
        %v754 = vrot.slane %v753, 7
        %vm755 = vcmask 195584
        %v756 = vsel %vm755, %v754, %v753
        %vm758 = vcmp.ge.s32.totalorder %v663, 24
        %vm759 = vcmp.lt.s32.totalorder %v663, 220
        %vm760 = vmand %vm758, %vm759
        %761 = vst.msk [vmem:[#allocation2 + $0x9] sm:$0x3] %vm760, %v756
        %v762 = vcombine.high %v740, %v740
        %763 = vrot.lane.b32.xlu0 %v762, 92
        %v764 = vpop.permute.xlu0 %763
        %v765 = vrot.slane %v764, 7
        %vm766 = vcmask 752640
        %v767 = vsel %vm766, %v765, %v764
        %vm769 = vcmp.ge.s32.totalorder %v663, 92
        %vm770 = vcmp.lt.s32.totalorder %v663, 288
        %vm771 = vmand %vm769, %vm770
        %772 = vst.msk [vmem:[#allocation2 + $0xa] sm:$0x7] %vm771, %v767
        %v775 = vcombine.low %v639, %v640
        %v777 = vunpack.c.l.s4 1966171168
        %v778 = vunpack.c.0.s8 %v777
        %v779 = vlaneseq
        %v780 = vshrl.u32 %v779, 7
        %v781 = vsub.s32 %v778, %v780
        %v782 = vrot.slane %v775, %v781
        %v784 = vunpack.c.l.s4 1966171168
        %v785 = vunpack.c.0.s8 %v784
        %v786 = vlaneseq
        %v787 = vshrl.u32 %v786, 7
        %v788 = vsub.s32 %v785, %v787
        %v789 = vrot.slane %v782, %v788
        %790 = vrot.lane.b32.xlu0 %v789, 32
        %v791 = vpop.permute.xlu0 %790
        %v792 = vrot.slane %v791, 7
        %vm793 = vcmask 261120
        %v794 = vsel %vm793, %v792, %v791
        %vm796 = vcmp.ge.s32.totalorder %v663, 32
        %vm797 = vcmp.lt.s32.totalorder %v663, 228
        %vm798 = vmand %vm796, %vm797
        %799 = vst.msk [vmem:[#allocation2 + $0xc] sm:$0x3] %vm798, %v794
        %v800 = vcombine.high %v782, %v782
        %v802 = vunpack.c.l.s4 1966171168
        %v803 = vunpack.c.0.s8 %v802
        %v804 = vlaneseq
        %v805 = vshrl.u32 %v804, 7
        %v806 = vsub.s32 %v803, %v805
        %v807 = vrot.slane %v800, %v806
        %808 = vrot.lane.b32.xlu0 %v807, 100
        %v809 = vpop.permute.xlu0 %808
        %v810 = vrot.slane %v809, 7
        %vm811 = vcmask 818176
        %v812 = vsel %vm811, %v810, %v809
        %vm814 = vcmp.ge.s32.totalorder %v663, 100
        %vm815 = vcmp.lt.s32.totalorder %v663, 296
        %vm816 = vmand %vm814, %vm815
        %817 = vst.msk [vmem:[#allocation2 + $0xd] sm:$0x7] %vm816, %v812
        %v818 = vcombine.high %v789, %v789
        %819 = vrot.lane.b32.xlu0 %v818, 40
        %v820 = vpop.permute.xlu0 %819
        %v821 = vrot.slane %v820, 7
        %vm822 = vcmask 326656
        %v823 = vsel %vm822, %v821, %v820
        %vm825 = vcmp.ge.s32.totalorder %v663, 40
        %vm826 = vcmp.lt.s32.totalorder %v663, 236
        %vm827 = vmand %vm825, %vm826
        %828 = vst.msk [vmem:[#allocation2 + $0xf] sm:$0x3] %vm827, %v823
        %v829 = vcombine.high %v807, %v807
        %830 = vrot.lane.b32.xlu0 %v829, 108
        %v831 = vpop.permute.xlu0 %830
        %v832 = vrot.slane %v831, 7
        %vm833 = vcmask 883712
        %v834 = vsel %vm833, %v832, %v831
        %vm836 = vcmp.ge.s32.totalorder %v663, 108
        %vm837 = vcmp.lt.s32.totalorder %v663, 304
        %vm838 = vmand %vm836, %vm837
        %839 = vst.msk [vmem:[#allocation2 + $0x10] sm:$0x7] %vm838, %v834
        %v840 = vcombine.high %v639, %v640
        %v842 = vunpack.c.l.s4 1966171168
        %v843 = vunpack.c.0.s8 %v842
        %v844 = vlaneseq
        %v845 = vshrl.u32 %v844, 7
        %v846 = vsub.s32 %v843, %v845
        %v847 = vrot.slane %v840, %v846
        %v849 = vunpack.c.l.s4 1966171168
        %v850 = vunpack.c.0.s8 %v849
        %v851 = vlaneseq
        %v852 = vshrl.u32 %v851, 7
        %v853 = vsub.s32 %v850, %v852
        %v854 = vrot.slane %v847, %v853
        %855 = vrot.lane.b32.xlu0 %v854, 48
        %v856 = vpop.permute.xlu0 %855
        %v857 = vrot.slane %v856, 7
        %vm858 = vcmask 392192
        %v859 = vsel %vm858, %v857, %v856
        %vm861 = vcmp.ge.s32.totalorder %v663, 48
        %vm862 = vcmp.lt.s32.totalorder %v663, 244
        %vm863 = vmand %vm861, %vm862
        %864 = vst.msk [vmem:[#allocation2 + $0x12] sm:$0x3] %vm863, %v859
        %v865 = vcombine.high %v847, %v847
        %v867 = vunpack.c.l.s4 1966171168
        %v868 = vunpack.c.0.s8 %v867
        %v869 = vlaneseq
        %v870 = vshrl.u32 %v869, 7
        %v871 = vsub.s32 %v868, %v870
        %v872 = vrot.slane %v865, %v871
        %873 = vrot.lane.b32.xlu0 %v872, 116
        %v874 = vpop.permute.xlu0 %873
        %v875 = vrot.slane %v874, 7
        %vm876 = vcmask 949248
        %v877 = vsel %vm876, %v875, %v874
        %vm879 = vcmp.ge.s32.totalorder %v663, 116
        %vm880 = vcmp.lt.s32.totalorder %v663, 312
        %vm881 = vmand %vm879, %vm880
        %882 = vst.msk [vmem:[#allocation2 + $0x13] sm:$0x7] %vm881, %v877
        %v883 = vcombine.high %v854, %v854
        %884 = vrot.lane.b32.xlu0 %v883, 56
        %v885 = vpop.permute.xlu0 %884
        %v886 = vrot.slane %v885, 7
        %vm887 = vcmask 457728
        %v888 = vsel %vm887, %v886, %v885
        %vm890 = vcmp.ge.s32.totalorder %v663, 56
        %vm891 = vcmp.lt.s32.totalorder %v663, 252
        %vm892 = vmand %vm890, %vm891
        %893 = vst.msk [vmem:[#allocation2 + $0x15] sm:$0x3] %vm892, %v888
        %v894 = vcombine.high %v872, %v872
        %895 = vrot.lane.b32.xlu0 %v894, 124
        %v896 = vpop.permute.xlu0 %895
        %v897 = vrot.slane %v896, 7
        %vm898 = vcmask 1014784
        %v899 = vsel %vm898, %v897, %v896
        %vm901 = vcmp.ge.s32.totalorder %v663, 124
        %vm902 = vcmp.lt.s32.totalorder %v663, 320
        %vm903 = vmand %vm901, %vm902
        %904 = vst.msk [vmem:[#allocation2 + $0x16] sm:$0x7] %vm903, %v899
        %v907 = vcombine.low %v641, %v642
        %v909 = vunpack.c.l.s4 1966171168
        %v910 = vunpack.c.0.s8 %v909
        %v911 = vlaneseq
        %v912 = vshrl.u32 %v911, 7
        %v913 = vsub.s32 %v910, %v912
        %v914 = vrot.slane %v907, %v913
        %v916 = vunpack.c.l.s4 1966171168
        %v917 = vunpack.c.0.s8 %v916
        %v918 = vlaneseq
        %v919 = vshrl.u32 %v918, 7
        %v920 = vsub.s32 %v917, %v919
        %v921 = vrot.slane %v914, %v920
        %922 = vrot.lane.b32.xlu0 %v921, 64
        %v923 = vpop.permute.xlu0 %922
        %v924 = vrot.slane %v923, 7
        %vm925 = vcmask 523264
        %v926 = vsel %vm925, %v924, %v923
        %vm928 = vcmp.ge.s32.totalorder %v663, 64
        %vm929 = vcmp.lt.s32.totalorder %v663, 260
        %vm930 = vmand %vm928, %vm929
        %931 = vst.msk [vmem:[#allocation2 + $0x18] sm:$0x7] %vm930, %v926
        %v932 = vcombine.high %v914, %v914
        %v934 = vunpack.c.l.s4 1966171168
        %v935 = vunpack.c.0.s8 %v934
        %v936 = vlaneseq
        %v937 = vshrl.u32 %v936, 7
        %v938 = vsub.s32 %v935, %v937
        %v939 = vrot.slane %v932, %v938
        %940 = vrot.lane.b32.xlu0 %v939, 4
        %v941 = vpop.permute.xlu0 %940
        %v942 = vrot.slane %v941, 7
        %vm943 = vcmask 31744
        %v944 = vsel %vm943, %v942, %v941
        %vm946 = vcmp.ge.s32.totalorder %v663, 4
        %vm947 = vcmp.lt.s32.totalorder %v663, 200
        %vm948 = vmand %vm946, %vm947
        %949 = vst.msk [vmem:[#allocation2 + $0x1a] sm:$0x3] %vm948, %v944
        %v950 = vcombine.high %v921, %v921
        %951 = vrot.lane.b32.xlu0 %v950, 72
        %v952 = vpop.permute.xlu0 %951
        %v953 = vrot.slane %v952, 7
        %vm954 = vcmask 588800
        %v955 = vsel %vm954, %v953, %v952
        %vm957 = vcmp.ge.s32.totalorder %v663, 72
        %vm958 = vcmp.lt.s32.totalorder %v663, 268
        %vm959 = vmand %vm957, %vm958
        %960 = vst.msk [vmem:[#allocation2 + $0x1b] sm:$0x7] %vm959, %v955
        %v961 = vcombine.high %v939, %v939
        %962 = vrot.lane.b32.xlu0 %v961, 12
        %v963 = vpop.permute.xlu0 %962
        %v964 = vrot.slane %v963, 7
        %vm965 = vcmask 97280
        %v966 = vsel %vm965, %v964, %v963
        %vm968 = vcmp.ge.s32.totalorder %v663, 12
        %vm969 = vcmp.lt.s32.totalorder %v663, 208
        %vm970 = vmand %vm968, %vm969
        %971 = vst.msk [vmem:[#allocation2 + $0x1d] sm:$0x3] %vm970, %v966
        %v972 = vcombine.high %v641, %v642
        %v974 = vunpack.c.l.s4 1966171168
        %v975 = vunpack.c.0.s8 %v974
        %v976 = vlaneseq
        %v977 = vshrl.u32 %v976, 7
        %v978 = vsub.s32 %v975, %v977
        %v979 = vrot.slane %v972, %v978
        %v981 = vunpack.c.l.s4 1966171168
        %v982 = vunpack.c.0.s8 %v981
        %v983 = vlaneseq
        %v984 = vshrl.u32 %v983, 7
        %v985 = vsub.s32 %v982, %v984
        %v986 = vrot.slane %v979, %v985
        %987 = vrot.lane.b32.xlu0 %v986, 80
        %v988 = vpop.permute.xlu0 %987
        %v989 = vrot.slane %v988, 7
        %vm990 = vcmask 654336
        %v991 = vsel %vm990, %v989, %v988
        %vm993 = vcmp.ge.s32.totalorder %v663, 80
        %vm994 = vcmp.lt.s32.totalorder %v663, 276
        %vm995 = vmand %vm993, %vm994
        %996 = vst.msk [vmem:[#allocation2 + $0x1e] sm:$0x7] %vm995, %v991
        %v997 = vcombine.high %v979, %v979
        %v999 = vunpack.c.l.s4 1966171168
        %v1000 = vunpack.c.0.s8 %v999
        %v1001 = vlaneseq
        %v1002 = vshrl.u32 %v1001, 7
        %v1003 = vsub.s32 %v1000, %v1002
        %v1004 = vrot.slane %v997, %v1003
        %1005 = vrot.lane.b32.xlu0 %v1004, 20
        %v1006 = vpop.permute.xlu0 %1005
        %v1007 = vrot.slane %v1006, 7
        %vm1008 = vcmask 162816
        %v1009 = vsel %vm1008, %v1007, %v1006
        %vm1011 = vcmp.ge.s32.totalorder %v663, 20
        %vm1012 = vcmp.lt.s32.totalorder %v663, 216
        %vm1013 = vmand %vm1011, %vm1012
        %1014 = vst.msk [vmem:[#allocation2 + $0x20] sm:$0x3] %vm1013, %v1009
        %v1015 = vcombine.high %v986, %v986
        %1016 = vrot.lane.b32.xlu0 %v1015, 88
        %v1017 = vpop.permute.xlu0 %1016
        %v1018 = vrot.slane %v1017, 7
        %vm1019 = vcmask 719872
        %v1020 = vsel %vm1019, %v1018, %v1017
        %vm1022 = vcmp.ge.s32.totalorder %v663, 88
        %vm1023 = vcmp.lt.s32.totalorder %v663, 284
        %vm1024 = vmand %vm1022, %vm1023
        %1025 = vst.msk [vmem:[#allocation2 + $0x21] sm:$0x7] %vm1024, %v1020
        %v1026 = vcombine.high %v1004, %v1004
        %1027 = vrot.lane.b32.xlu0 %v1026, 28
        %v1028 = vpop.permute.xlu0 %1027
        %v1029 = vrot.slane %v1028, 7
        %vm1030 = vcmask 228352
        %v1031 = vsel %vm1030, %v1029, %v1028
        %vm1033 = vcmp.ge.s32.totalorder %v663, 28
        %vm1034 = vcmp.lt.s32.totalorder %v663, 224
        %vm1035 = vmand %vm1033, %vm1034
        %1036 = vst.msk [vmem:[#allocation2 + $0x23] sm:$0x3] %vm1035, %v1031
        %v1039 = vcombine.low %v643, %v644
        %v1041 = vunpack.c.l.s4 1966171168
        %v1042 = vunpack.c.0.s8 %v1041
        %v1043 = vlaneseq
        %v1044 = vshrl.u32 %v1043, 7
        %v1045 = vsub.s32 %v1042, %v1044
        %v1046 = vrot.slane %v1039, %v1045
        %v1048 = vunpack.c.l.s4 1966171168
        %v1049 = vunpack.c.0.s8 %v1048
        %v1050 = vlaneseq
        %v1051 = vshrl.u32 %v1050, 7
        %v1052 = vsub.s32 %v1049, %v1051
        %v1053 = vrot.slane %v1046, %v1052
        %1054 = vrot.lane.b32.xlu0 %v1053, 96
        %v1055 = vpop.permute.xlu0 %1054
        %v1056 = vrot.slane %v1055, 7
        %vm1057 = vcmask 785408
        %v1058 = vsel %vm1057, %v1056, %v1055
        %vm1060 = vcmp.ge.s32.totalorder %v663, 96
        %vm1061 = vcmp.lt.s32.totalorder %v663, 292
        %vm1062 = vmand %vm1060, %vm1061
        %1063 = vst.msk [vmem:[#allocation2 + $0x24] sm:$0x7] %vm1062, %v1058
        %v1064 = vcombine.high %v1046, %v1046
        %v1066 = vunpack.c.l.s4 1966171168
        %v1067 = vunpack.c.0.s8 %v1066
        %v1068 = vlaneseq
        %v1069 = vshrl.u32 %v1068, 7
        %v1070 = vsub.s32 %v1067, %v1069
        %v1071 = vrot.slane %v1064, %v1070
        %1072 = vrot.lane.b32.xlu0 %v1071, 36
        %v1073 = vpop.permute.xlu0 %1072
        %v1074 = vrot.slane %v1073, 7
        %vm1075 = vcmask 293888
        %v1076 = vsel %vm1075, %v1074, %v1073
        %vm1078 = vcmp.ge.s32.totalorder %v663, 36
        %vm1079 = vcmp.lt.s32.totalorder %v663, 232
        %vm1080 = vmand %vm1078, %vm1079
        %1081 = vst.msk [vmem:[#allocation2 + $0x26] sm:$0x3] %vm1080, %v1076
        %v1082 = vcombine.high %v1053, %v1053
        %1083 = vrot.lane.b32.xlu0 %v1082, 104
        %v1084 = vpop.permute.xlu0 %1083
        %v1085 = vrot.slane %v1084, 7
        %vm1086 = vcmask 850944
        %v1087 = vsel %vm1086, %v1085, %v1084
        %vm1089 = vcmp.ge.s32.totalorder %v663, 104
        %vm1090 = vcmp.lt.s32.totalorder %v663, 300
        %vm1091 = vmand %vm1089, %vm1090
        %1092 = vst.msk [vmem:[#allocation2 + $0x27] sm:$0x7] %vm1091, %v1087
        %v1093 = vcombine.high %v1071, %v1071
        %1094 = vrot.lane.b32.xlu0 %v1093, 44
        %v1095 = vpop.permute.xlu0 %1094
        %v1096 = vrot.slane %v1095, 7
        %vm1097 = vcmask 359424
        %v1098 = vsel %vm1097, %v1096, %v1095
        %vm1100 = vcmp.ge.s32.totalorder %v663, 44
        %vm1101 = vcmp.lt.s32.totalorder %v663, 240
        %vm1102 = vmand %vm1100, %vm1101
        %1103 = vst.msk [vmem:[#allocation2 + $0x29] sm:$0x3] %vm1102, %v1098
        %v1104 = vcombine.high %v643, %v644
        %v1106 = vunpack.c.l.s4 1966171168
        %v1107 = vunpack.c.0.s8 %v1106
        %v1108 = vlaneseq
        %v1109 = vshrl.u32 %v1108, 7
        %v1110 = vsub.s32 %v1107, %v1109
        %v1111 = vrot.slane %v1104, %v1110
        %v1113 = vunpack.c.l.s4 1966171168
        %v1114 = vunpack.c.0.s8 %v1113
        %v1115 = vlaneseq
        %v1116 = vshrl.u32 %v1115, 7
        %v1117 = vsub.s32 %v1114, %v1116
        %v1118 = vrot.slane %v1111, %v1117
        %1119 = vrot.lane.b32.xlu0 %v1118, 112
        %v1120 = vpop.permute.xlu0 %1119
        %v1121 = vrot.slane %v1120, 7
        %vm1122 = vcmask 916480
        %v1123 = vsel %vm1122, %v1121, %v1120
        %vm1125 = vcmp.ge.s32.totalorder %v663, 112
        %vm1126 = vcmp.lt.s32.totalorder %v663, 308
        %vm1127 = vmand %vm1125, %vm1126
        %1128 = vst.msk [vmem:[#allocation2 + $0x2a] sm:$0x7] %vm1127, %v1123
        %v1129 = vcombine.high %v1111, %v1111
        %v1131 = vunpack.c.l.s4 1966171168
        %v1132 = vunpack.c.0.s8 %v1131
        %v1133 = vlaneseq
        %v1134 = vshrl.u32 %v1133, 7
        %v1135 = vsub.s32 %v1132, %v1134
        %v1136 = vrot.slane %v1129, %v1135
        %1137 = vrot.lane.b32.xlu0 %v1136, 52
        %v1138 = vpop.permute.xlu0 %1137
        %v1139 = vrot.slane %v1138, 7
        %vm1140 = vcmask 424960
        %v1141 = vsel %vm1140, %v1139, %v1138
        %vm1143 = vcmp.ge.s32.totalorder %v663, 52
        %vm1144 = vcmp.lt.s32.totalorder %v663, 248
        %vm1145 = vmand %vm1143, %vm1144
        %1146 = vst.msk [vmem:[#allocation2 + $0x2c] sm:$0x3] %vm1145, %v1141
        %v1147 = vcombine.high %v1118, %v1118
        %1148 = vrot.lane.b32.xlu0 %v1147, 120
        %v1149 = vpop.permute.xlu0 %1148
        %v1150 = vrot.slane %v1149, 7
        %vm1151 = vcmask 982016
        %v1152 = vsel %vm1151, %v1150, %v1149
        %vm1154 = vcmp.ge.s32.totalorder %v663, 120
        %vm1155 = vcmp.lt.s32.totalorder %v663, 316
        %vm1156 = vmand %vm1154, %vm1155
        %1157 = vst.msk [vmem:[#allocation2 + $0x2d] sm:$0x7] %vm1156, %v1152
        %v1158 = vcombine.high %v1136, %v1136
        %1159 = vrot.lane.b32.xlu0 %v1158, 60
        %v1160 = vpop.permute.xlu0 %1159
        %v1161 = vrot.slane %v1160, 7
        %vm1162 = vcmask 490496
        %v1163 = vsel %vm1162, %v1161, %v1160
        %vm1165 = vcmp.ge.s32.totalorder %v663, 60
        %vm1166 = vcmp.lt.s32.totalorder %v663, 256
        %vm1167 = vmand %vm1165, %vm1166
        %1168 = vst.msk [vmem:[#allocation2 + $0x2f] sm:$0x3] %vm1167, %v1163
        %v1169 = vld [vmem:[#allocation2] sm:$0xff]
        %v1170 = vld [vmem:[#allocation2 + $0x8] sm:$0xff]
        %v1171 = vld [vmem:[#allocation2 + $0x10] sm:$0xff]
        %v1172 = vld [vmem:[#allocation2 + $0x18] sm:$0xff]
        %v1173 = vld [vmem:[#allocation2 + $0x20] sm:$0xff]
        %v1174 = vld [vmem:[#allocation2 + $0x28] sm:$0xff]
        %v1175 = vld [vmem:[#allocation2 + $0x30] sm:$0x1]
        %v1183 = vlaneseq
        %v1184 = vshrl.u32 %v1183, 7
        %v1185 = vsub.s32 0, %v1184
        %v1186 = vrot.slane %v1169, %v1185
        %v1187 = vlaneseq
        %v1188 = vshrl.u32 %v1187, 7
        %v1189 = vsub.s32 1, %v1188
        %v1190 = vrot.slane %v1169, %v1189
        %v1191 = vlaneseq
        %v1192 = vshrl.u32 %v1191, 7
        %v1193 = vsub.s32 2, %v1192
        %v1194 = vrot.slane %v1169, %v1193
        %v1195 = vlaneseq
        %v1196 = vshrl.u32 %v1195, 7
        %v1197 = vsub.s32 3, %v1196
        %v1198 = vrot.slane %v1169, %v1197
        %v1199 = vlaneseq
        %v1200 = vshrl.u32 %v1199, 7
        %v1201 = vsub.s32 4, %v1200
        %v1202 = vrot.slane %v1169, %v1201
        %v1203 = vlaneseq
        %v1204 = vshrl.u32 %v1203, 7
        %v1205 = vsub.s32 5, %v1204
        %v1206 = vrot.slane %v1169, %v1205
        %v1207 = vlaneseq
        %v1208 = vshrl.u32 %v1207, 7
        %v1209 = vsub.s32 6, %v1208
        %v1210 = vrot.slane %v1169, %v1209
        %v1211 = vlaneseq
        %v1212 = vshrl.u32 %v1211, 7
        %v1213 = vsub.s32 7, %v1212
        %v1214 = vrot.slane %v1169, %v1213
        %v1215 = vlaneseq
        %v1216 = vshrl.u32 %v1215, 7
        %v1217 = vsub.s32 0, %v1216
        %v1218 = vrot.slane %v1170, %v1217
        %v1219 = vlaneseq
        %v1220 = vshrl.u32 %v1219, 7
        %v1221 = vsub.s32 1, %v1220
        %v1222 = vrot.slane %v1170, %v1221
        %v1223 = vlaneseq
        %v1224 = vshrl.u32 %v1223, 7
        %v1225 = vsub.s32 2, %v1224
        %v1226 = vrot.slane %v1170, %v1225
        %v1227 = vlaneseq
        %v1228 = vshrl.u32 %v1227, 7
        %v1229 = vsub.s32 3, %v1228
        %v1230 = vrot.slane %v1170, %v1229
        %v1231 = vlaneseq
        %v1232 = vshrl.u32 %v1231, 7
        %v1233 = vsub.s32 4, %v1232
        %v1234 = vrot.slane %v1170, %v1233
        %v1235 = vlaneseq
        %v1236 = vshrl.u32 %v1235, 7
        %v1237 = vsub.s32 5, %v1236
        %v1238 = vrot.slane %v1170, %v1237
        %v1239 = vlaneseq
        %v1240 = vshrl.u32 %v1239, 7
        %v1241 = vsub.s32 6, %v1240
        %v1242 = vrot.slane %v1170, %v1241
        %v1243 = vlaneseq
        %v1244 = vshrl.u32 %v1243, 7
        %v1245 = vsub.s32 7, %v1244
        %v1246 = vrot.slane %v1170, %v1245
        %v1247 = vlaneseq
        %v1248 = vshrl.u32 %v1247, 7
        %v1249 = vsub.s32 0, %v1248
        %v1250 = vrot.slane %v1171, %v1249
        %v1251 = vlaneseq
        %v1252 = vshrl.u32 %v1251, 7
        %v1253 = vsub.s32 1, %v1252
        %v1254 = vrot.slane %v1171, %v1253
        %v1255 = vlaneseq
        %v1256 = vshrl.u32 %v1255, 7
        %v1257 = vsub.s32 2, %v1256
        %v1258 = vrot.slane %v1171, %v1257
        %v1259 = vlaneseq
        %v1260 = vshrl.u32 %v1259, 7
        %v1261 = vsub.s32 3, %v1260
        %v1262 = vrot.slane %v1171, %v1261
        %v1263 = vlaneseq
        %v1264 = vshrl.u32 %v1263, 7
        %v1265 = vsub.s32 4, %v1264
        %v1266 = vrot.slane %v1171, %v1265
        %v1267 = vlaneseq
        %v1268 = vshrl.u32 %v1267, 7
        %v1269 = vsub.s32 5, %v1268
        %v1270 = vrot.slane %v1171, %v1269
        %v1271 = vlaneseq
        %v1272 = vshrl.u32 %v1271, 7
        %v1273 = vsub.s32 6, %v1272
        %v1274 = vrot.slane %v1171, %v1273
        %v1275 = vlaneseq
        %v1276 = vshrl.u32 %v1275, 7
        %v1277 = vsub.s32 7, %v1276
        %v1278 = vrot.slane %v1171, %v1277
        %v1279 = vlaneseq
        %v1280 = vshrl.u32 %v1279, 7
        %v1281 = vsub.s32 0, %v1280
        %v1282 = vrot.slane %v1172, %v1281
        %v1283 = vlaneseq
        %v1284 = vshrl.u32 %v1283, 7
        %v1285 = vsub.s32 1, %v1284
        %v1286 = vrot.slane %v1172, %v1285
        %v1287 = vlaneseq
        %v1288 = vshrl.u32 %v1287, 7
        %v1289 = vsub.s32 2, %v1288
        %v1290 = vrot.slane %v1172, %v1289
        %v1291 = vlaneseq
        %v1292 = vshrl.u32 %v1291, 7
        %v1293 = vsub.s32 3, %v1292
        %v1294 = vrot.slane %v1172, %v1293
        %v1295 = vlaneseq
        %v1296 = vshrl.u32 %v1295, 7
        %v1297 = vsub.s32 4, %v1296
        %v1298 = vrot.slane %v1172, %v1297
        %v1299 = vlaneseq
        %v1300 = vshrl.u32 %v1299, 7
        %v1301 = vsub.s32 5, %v1300
        %v1302 = vrot.slane %v1172, %v1301
        %v1303 = vlaneseq
        %v1304 = vshrl.u32 %v1303, 7
        %v1305 = vsub.s32 6, %v1304
        %v1306 = vrot.slane %v1172, %v1305
        %v1307 = vlaneseq
        %v1308 = vshrl.u32 %v1307, 7
        %v1309 = vsub.s32 7, %v1308
        %v1310 = vrot.slane %v1172, %v1309
        %v1311 = vlaneseq
        %v1312 = vshrl.u32 %v1311, 7
        %v1313 = vsub.s32 0, %v1312
        %v1314 = vrot.slane %v1173, %v1313
        %v1315 = vlaneseq
        %v1316 = vshrl.u32 %v1315, 7
        %v1317 = vsub.s32 1, %v1316
        %v1318 = vrot.slane %v1173, %v1317
        %v1319 = vlaneseq
        %v1320 = vshrl.u32 %v1319, 7
        %v1321 = vsub.s32 2, %v1320
        %v1322 = vrot.slane %v1173, %v1321
        %v1323 = vlaneseq
        %v1324 = vshrl.u32 %v1323, 7
        %v1325 = vsub.s32 3, %v1324
        %v1326 = vrot.slane %v1173, %v1325
        %v1327 = vlaneseq
        %v1328 = vshrl.u32 %v1327, 7
        %v1329 = vsub.s32 4, %v1328
        %v1330 = vrot.slane %v1173, %v1329
        %v1331 = vlaneseq
        %v1332 = vshrl.u32 %v1331, 7
        %v1333 = vsub.s32 5, %v1332
        %v1334 = vrot.slane %v1173, %v1333
        %v1335 = vlaneseq
        %v1336 = vshrl.u32 %v1335, 7
        %v1337 = vsub.s32 6, %v1336
        %v1338 = vrot.slane %v1173, %v1337
        %v1339 = vlaneseq
        %v1340 = vshrl.u32 %v1339, 7
        %v1341 = vsub.s32 7, %v1340
        %v1342 = vrot.slane %v1173, %v1341
        %v1343 = vlaneseq
        %v1344 = vshrl.u32 %v1343, 7
        %v1345 = vsub.s32 0, %v1344
        %v1346 = vrot.slane %v1174, %v1345
        %v1347 = vlaneseq
        %v1348 = vshrl.u32 %v1347, 7
        %v1349 = vsub.s32 1, %v1348
        %v1350 = vrot.slane %v1174, %v1349
        %v1351 = vlaneseq
        %v1352 = vshrl.u32 %v1351, 7
        %v1353 = vsub.s32 2, %v1352
        %v1354 = vrot.slane %v1174, %v1353
        %v1355 = vlaneseq
        %v1356 = vshrl.u32 %v1355, 7
        %v1357 = vsub.s32 3, %v1356
        %v1358 = vrot.slane %v1174, %v1357
        %v1359 = vlaneseq
        %v1360 = vshrl.u32 %v1359, 7
        %v1361 = vsub.s32 4, %v1360
        %v1362 = vrot.slane %v1174, %v1361
        %v1363 = vlaneseq
        %v1364 = vshrl.u32 %v1363, 7
        %v1365 = vsub.s32 5, %v1364
        %v1366 = vrot.slane %v1174, %v1365
        %v1367 = vlaneseq
        %v1368 = vshrl.u32 %v1367, 7
        %v1369 = vsub.s32 6, %v1368
        %v1370 = vrot.slane %v1174, %v1369
        %v1371 = vlaneseq
        %v1372 = vshrl.u32 %v1371, 7
        %v1373 = vsub.s32 7, %v1372
        %v1374 = vrot.slane %v1174, %v1373
        %v1375 = vlaneseq
        %v1376 = vshrl.u32 %v1375, 7
        %v1377 = vsub.s32 0, %v1376
        %v1378 = vrot.slane %v1175, %v1377
        %v1428 = vpack.c.bf16 %v1186, %v1186
        %v1429 = vpack.c.bf16 %v1190, %v1190
        %v1430 = vpack.c.bf16 %v1194, %v1194
        %v1431 = vpack.c.bf16 %v1198, %v1198
        %v1432 = vpack.c.bf16 %v1202, %v1202
        %v1433 = vpack.c.bf16 %v1206, %v1206
        %v1434 = vpack.c.bf16 %v1210, %v1210
        %v1435 = vpack.c.bf16 %v1214, %v1214
        %v1436 = vpack.c.bf16 %v1218, %v1218
        %v1437 = vpack.c.bf16 %v1222, %v1222
        %v1438 = vpack.c.bf16 %v1226, %v1226
        %v1439 = vpack.c.bf16 %v1230, %v1230
        %v1440 = vpack.c.bf16 %v1234, %v1234
        %v1441 = vpack.c.bf16 %v1238, %v1238
        %v1442 = vpack.c.bf16 %v1242, %v1242
        %v1443 = vpack.c.bf16 %v1246, %v1246
        %v1444 = vpack.c.bf16 %v1250, %v1250
        %v1445 = vpack.c.bf16 %v1254, %v1254
        %v1446 = vpack.c.bf16 %v1258, %v1258
        %v1447 = vpack.c.bf16 %v1262, %v1262
        %v1448 = vpack.c.bf16 %v1266, %v1266
        %v1449 = vpack.c.bf16 %v1270, %v1270
        %v1450 = vpack.c.bf16 %v1274, %v1274
        %v1451 = vpack.c.bf16 %v1278, %v1278
        %v1452 = vpack.c.bf16 %v1282, %v1282
        %v1453 = vpack.c.bf16 %v1286, %v1286
        %v1454 = vpack.c.bf16 %v1290, %v1290
        %v1455 = vpack.c.bf16 %v1294, %v1294
        %v1456 = vpack.c.bf16 %v1298, %v1298
        %v1457 = vpack.c.bf16 %v1302, %v1302
        %v1458 = vpack.c.bf16 %v1306, %v1306
        %v1459 = vpack.c.bf16 %v1310, %v1310
        %v1460 = vpack.c.bf16 %v1314, %v1314
        %v1461 = vpack.c.bf16 %v1318, %v1318
        %v1462 = vpack.c.bf16 %v1322, %v1322
        %v1463 = vpack.c.bf16 %v1326, %v1326
        %v1464 = vpack.c.bf16 %v1330, %v1330
        %v1465 = vpack.c.bf16 %v1334, %v1334
        %v1466 = vpack.c.bf16 %v1338, %v1338
        %v1467 = vpack.c.bf16 %v1342, %v1342
        %v1468 = vpack.c.bf16 %v1346, %v1346
        %v1469 = vpack.c.bf16 %v1350, %v1350
        %v1470 = vpack.c.bf16 %v1354, %v1354
        %v1471 = vpack.c.bf16 %v1358, %v1358
        %v1472 = vpack.c.bf16 %v1362, %v1362
        %v1473 = vpack.c.bf16 %v1366, %v1366
        %v1474 = vpack.c.bf16 %v1370, %v1370
        %v1475 = vpack.c.bf16 %v1374, %v1374
        %v1476 = vpack.c.bf16 %v1378, %v1378
        %v1477 = vld [vmem:[%s3] sm:$0xf]
        %v1478 = vld [vmem:[%s3 + $0x4] sm:$0xf]
        %v1479 = vld [vmem:[%s3 + $0x8] sm:$0xf]
        %v1480 = vld [vmem:[%s3 + $0xc] sm:$0xf]
        %v1481 = vld [vmem:[%s3 + $0x10] sm:$0xf]
        %v1482 = vld [vmem:[%s3 + $0x14] sm:$0xf]
        %v1483 = vld [vmem:[%s3 + $0x18] sm:$0xf]
        %v1484 = vld [vmem:[%s3 + $0x1c] sm:$0xf]
        %v1485 = vld [vmem:[%s3 + $0x20] sm:$0xf]
        %v1486 = vld [vmem:[%s3 + $0x24] sm:$0xf]
        %v1487 = vld [vmem:[%s3 + $0x28] sm:$0xf]
        %v1488 = vld [vmem:[%s3 + $0x2c] sm:$0xf]
        %v1489 = vld [vmem:[%s3 + $0x30] sm:$0xf]
        %v1490 = vld [vmem:[%s3 + $0x34] sm:$0xf]
        %v1491 = vld [vmem:[%s3 + $0x38] sm:$0xf]
        %v1492 = vld [vmem:[%s3 + $0x3c] sm:$0xf]
        %v1493 = vld [vmem:[%s3 + $0x40] sm:$0xf]
        %v1494 = vld [vmem:[%s3 + $0x44] sm:$0xf]
        %v1495 = vld [vmem:[%s3 + $0x48] sm:$0xf]
        %v1496 = vld [vmem:[%s3 + $0x4c] sm:$0xf]
        %v1497 = vld [vmem:[%s3 + $0x50] sm:$0xf]
        %v1498 = vld [vmem:[%s3 + $0x54] sm:$0xf]
        %v1499 = vld [vmem:[%s3 + $0x58] sm:$0xf]
        %v1500 = vld [vmem:[%s3 + $0x5c] sm:$0xf]
        %v1501 = vld [vmem:[%s3 + $0x60] sm:$0xf]
        %v1502 = vld [vmem:[%s3 + $0x64] sm:$0xf]
        %v1503 = vld [vmem:[%s3 + $0x68] sm:$0xf]
        %v1504 = vld [vmem:[%s3 + $0x6c] sm:$0xf]
        %v1505 = vld [vmem:[%s3 + $0x70] sm:$0xf]
        %v1506 = vld [vmem:[%s3 + $0x74] sm:$0xf]
        %v1507 = vld [vmem:[%s3 + $0x78] sm:$0xf]
        %v1508 = vld [vmem:[%s3 + $0x7c] sm:$0xf]
        %v1509 = vld [vmem:[%s3 + $0x80] sm:$0xf]
        %v1510 = vld [vmem:[%s3 + $0x84] sm:$0xf]
        %v1511 = vld [vmem:[%s3 + $0x88] sm:$0xf]
        %v1512 = vld [vmem:[%s3 + $0x8c] sm:$0xf]
        %v1513 = vld [vmem:[%s3 + $0x90] sm:$0xf]
        %v1514 = vld [vmem:[%s3 + $0x94] sm:$0xf]
        %v1515 = vld [vmem:[%s3 + $0x98] sm:$0xf]
        %v1516 = vld [vmem:[%s3 + $0x9c] sm:$0xf]
        %v1517 = vld [vmem:[%s3 + $0xa0] sm:$0xf]
        %v1518 = vld [vmem:[%s3 + $0xa4] sm:$0xf]
        %v1519 = vld [vmem:[%s3 + $0xa8] sm:$0xf]
        %v1520 = vld [vmem:[%s3 + $0xac] sm:$0xf]
        %v1521 = vld [vmem:[%s3 + $0xb0] sm:$0xf]
        %v1522 = vld [vmem:[%s3 + $0xb4] sm:$0xf]
        %v1523 = vld [vmem:[%s3 + $0xb8] sm:$0xf]
        %v1524 = vld [vmem:[%s3 + $0xbc] sm:$0xf]
        %v1525 = vld [vmem:[%s3 + $0xc0] sm:$0xf]
        %v1526 = vld [vmem:[%s3 + $0xc4] sm:$0xf]
        %v1527 = vld [vmem:[%s3 + $0xc8] sm:$0xf]
        %v1528 = vld [vmem:[%s3 + $0xcc] sm:$0xf]
        %v1529 = vld [vmem:[%s3 + $0xd0] sm:$0xf]
        %v1530 = vld [vmem:[%s3 + $0xd4] sm:$0xf]
        %v1531 = vld [vmem:[%s3 + $0xd8] sm:$0xf]
        %v1532 = vld [vmem:[%s3 + $0xdc] sm:$0xf]
        %v1533 = vld [vmem:[%s3 + $0xe0] sm:$0xf]
        %v1534 = vld [vmem:[%s3 + $0xe4] sm:$0xf]
        %v1535 = vld [vmem:[%s3 + $0xe8] sm:$0xf]
        %v1536 = vld [vmem:[%s3 + $0xec] sm:$0xf]
        %v1537 = vld [vmem:[%s3 + $0xf0] sm:$0xf]
        %v1538 = vld [vmem:[%s3 + $0xf4] sm:$0xf]
        %v1539 = vld [vmem:[%s3 + $0xf8] sm:$0xf]
        %v1540 = vld [vmem:[%s3 + $0xfc] sm:$0xf]
        %v1541 = vld [vmem:[%s3 + $0x100] sm:$0xf]
        %v1542 = vld [vmem:[%s3 + $0x104] sm:$0xf]
        %v1543 = vld [vmem:[%s3 + $0x108] sm:$0xf]
        %v1544 = vld [vmem:[%s3 + $0x10c] sm:$0xf]
        %v1545 = vld [vmem:[%s3 + $0x110] sm:$0xf]
        %v1546 = vld [vmem:[%s3 + $0x114] sm:$0xf]
        %v1547 = vld [vmem:[%s3 + $0x118] sm:$0xf]
        %v1548 = vld [vmem:[%s3 + $0x11c] sm:$0xf]
        %v1549 = vld [vmem:[%s3 + $0x120] sm:$0xf]
        %v1550 = vld [vmem:[%s3 + $0x124] sm:$0xf]
        %v1551 = vld [vmem:[%s3 + $0x128] sm:$0xf]
        %v1552 = vld [vmem:[%s3 + $0x12c] sm:$0xf]
        %v1553 = vld [vmem:[%s3 + $0x130] sm:$0xf]
        %v1554 = vld [vmem:[%s3 + $0x134] sm:$0xf]
        %v1555 = vld [vmem:[%s3 + $0x138] sm:$0xf]
        %v1556 = vld [vmem:[%s3 + $0x13c] sm:$0xf]
        %v1557 = vld [vmem:[%s3 + $0x140] sm:$0xf]
        %v1558 = vld [vmem:[%s3 + $0x144] sm:$0xf]
        %v1559 = vld [vmem:[%s3 + $0x148] sm:$0xf]
        %v1560 = vld [vmem:[%s3 + $0x14c] sm:$0xf]
        %v1561 = vld [vmem:[%s3 + $0x150] sm:$0xf]
        %v1562 = vld [vmem:[%s3 + $0x154] sm:$0xf]
        %v1563 = vld [vmem:[%s3 + $0x158] sm:$0xf]
        %v1564 = vld [vmem:[%s3 + $0x15c] sm:$0xf]
        %v1565 = vld [vmem:[%s3 + $0x160] sm:$0xf]
        %v1566 = vld [vmem:[%s3 + $0x164] sm:$0xf]
        %v1567 = vld [vmem:[%s3 + $0x168] sm:$0xf]
        %v1568 = vld [vmem:[%s3 + $0x16c] sm:$0xf]
        %v1569 = vld [vmem:[%s3 + $0x170] sm:$0xf]
        %v1570 = vld [vmem:[%s3 + $0x174] sm:$0xf]
        %v1571 = vld [vmem:[%s3 + $0x178] sm:$0xf]
        %v1572 = vld [vmem:[%s3 + $0x17c] sm:$0xf]
        %v1573 = vld [vmem:[%s3 + $0x180] sm:$0xf]
        %v1574 = vld [vmem:[%s3 + $0x184] sm:$0xf]
        %v1575 = vld [vmem:[%s3 + $0x188] sm:$0xf]
        %v1576 = vld [vmem:[%s3 + $0x18c] sm:$0xf]
        %v1577 = vld [vmem:[%s3 + $0x190] sm:$0xf]
        %v1578 = vld [vmem:[%s3 + $0x194] sm:$0xf]
        %v1579 = vld [vmem:[%s3 + $0x198] sm:$0xf]
        %v1580 = vld [vmem:[%s3 + $0x19c] sm:$0xf]
        %v1581 = vld [vmem:[%s3 + $0x1a0] sm:$0xf]
        %v1582 = vld [vmem:[%s3 + $0x1a4] sm:$0xf]
        %v1583 = vld [vmem:[%s3 + $0x1a8] sm:$0xf]
        %v1584 = vld [vmem:[%s3 + $0x1ac] sm:$0xf]
        %v1585 = vld [vmem:[%s3 + $0x1b0] sm:$0xf]
        %v1586 = vld [vmem:[%s3 + $0x1b4] sm:$0xf]
        %v1587 = vld [vmem:[%s3 + $0x1b8] sm:$0xf]
        %v1588 = vld [vmem:[%s3 + $0x1bc] sm:$0xf]
        %v1589 = vld [vmem:[%s3 + $0x1c0] sm:$0xf]
        %v1590 = vld [vmem:[%s3 + $0x1c4] sm:$0xf]
        %v1591 = vld [vmem:[%s3 + $0x1c8] sm:$0xf]
        %v1592 = vld [vmem:[%s3 + $0x1cc] sm:$0xf]
        %v1593 = vld [vmem:[%s3 + $0x1d0] sm:$0xf]
        %v1594 = vld [vmem:[%s3 + $0x1d4] sm:$0xf]
        %v1595 = vld [vmem:[%s3 + $0x1d8] sm:$0xf]
        %v1596 = vld [vmem:[%s3 + $0x1dc] sm:$0xf]
        %v1597 = vld [vmem:[%s3 + $0x1e0] sm:$0xf]
        %v1598 = vld [vmem:[%s3 + $0x1e4] sm:$0xf]
        %v1599 = vld [vmem:[%s3 + $0x1e8] sm:$0xf]
        %v1600 = vld [vmem:[%s3 + $0x1ec] sm:$0xf]
        %v1601 = vld [vmem:[%s3 + $0x1f0] sm:$0xf]
        %v1602 = vld [vmem:[%s3 + $0x1f4] sm:$0xf]
        %v1603 = vld [vmem:[%s3 + $0x1f8] sm:$0xf]
        %v1604 = vld [vmem:[%s3 + $0x1fc] sm:$0xf]
        %v1605 = vld [vmem:[%s3 + $0x200] sm:$0xf]
        %v1606 = vld [vmem:[%s3 + $0x204] sm:$0xf]
        %v1607 = vld [vmem:[%s3 + $0x208] sm:$0xf]
        %v1608 = vld [vmem:[%s3 + $0x20c] sm:$0xf]
        %v1609 = vld [vmem:[%s3 + $0x210] sm:$0xf]
        %v1610 = vld [vmem:[%s3 + $0x214] sm:$0xf]
        %v1611 = vld [vmem:[%s3 + $0x218] sm:$0xf]
        %v1612 = vld [vmem:[%s3 + $0x21c] sm:$0xf]
        %v1613 = vld [vmem:[%s3 + $0x220] sm:$0xf]
        %v1614 = vld [vmem:[%s3 + $0x224] sm:$0xf]
        %v1615 = vld [vmem:[%s3 + $0x228] sm:$0xf]
        %v1616 = vld [vmem:[%s3 + $0x22c] sm:$0xf]
        %v1617 = vld [vmem:[%s3 + $0x230] sm:$0xf]
        %v1618 = vld [vmem:[%s3 + $0x234] sm:$0xf]
        %v1619 = vld [vmem:[%s3 + $0x238] sm:$0xf]
        %v1620 = vld [vmem:[%s3 + $0x23c] sm:$0xf]
        %v1621 = vld [vmem:[%s3 + $0x240] sm:$0xf]
        %v1622 = vld [vmem:[%s3 + $0x244] sm:$0xf]
        %v1623 = vld [vmem:[%s3 + $0x248] sm:$0xf]
        %v1624 = vld [vmem:[%s3 + $0x24c] sm:$0xf]
        %v1625 = vld [vmem:[%s3 + $0x250] sm:$0xf]
        %v1626 = vld [vmem:[%s3 + $0x254] sm:$0xf]
        %v1627 = vld [vmem:[%s3 + $0x258] sm:$0xf]
        %v1628 = vld [vmem:[%s3 + $0x25c] sm:$0xf]
        %v1629 = vld [vmem:[%s3 + $0x260] sm:$0xf]
        %v1630 = vld [vmem:[%s3 + $0x264] sm:$0xf]
        %v1631 = vld [vmem:[%s3 + $0x268] sm:$0xf]
        %v1632 = vld [vmem:[%s3 + $0x26c] sm:$0xf]
        %v1633 = vld [vmem:[%s3 + $0x270] sm:$0xf]
        %v1634 = vld [vmem:[%s3 + $0x274] sm:$0xf]
        %v1635 = vld [vmem:[%s3 + $0x278] sm:$0xf]
        %v1636 = vld [vmem:[%s3 + $0x27c] sm:$0xf]
        %v1637 = vld [vmem:[%s3 + $0x280] sm:$0xf]
        %v1638 = vld [vmem:[%s3 + $0x284] sm:$0xf]
        %v1639 = vld [vmem:[%s3 + $0x288] sm:$0xf]
        %v1640 = vld [vmem:[%s3 + $0x28c] sm:$0xf]
        %v1641 = vld [vmem:[%s3 + $0x290] sm:$0xf]
        %v1642 = vld [vmem:[%s3 + $0x294] sm:$0xf]
        %v1643 = vld [vmem:[%s3 + $0x298] sm:$0xf]
        %v1644 = vld [vmem:[%s3 + $0x29c] sm:$0xf]
        %v1645 = vld [vmem:[%s3 + $0x2a0] sm:$0xf]
        %v1646 = vld [vmem:[%s3 + $0x2a4] sm:$0xf]
        %v1647 = vld [vmem:[%s3 + $0x2a8] sm:$0xf]
        %v1648 = vld [vmem:[%s3 + $0x2ac] sm:$0xf]
        %v1649 = vld [vmem:[%s3 + $0x2b0] sm:$0xf]
        %v1650 = vld [vmem:[%s3 + $0x2b4] sm:$0xf]
        %v1651 = vld [vmem:[%s3 + $0x2b8] sm:$0xf]
        %v1652 = vld [vmem:[%s3 + $0x2bc] sm:$0xf]
        %v1653 = vld [vmem:[%s3 + $0x2c0] sm:$0xf]
        %v1654 = vld [vmem:[%s3 + $0x2c4] sm:$0xf]
        %v1655 = vld [vmem:[%s3 + $0x2c8] sm:$0xf]
        %v1656 = vld [vmem:[%s3 + $0x2cc] sm:$0xf]
        %v1657 = vld [vmem:[%s3 + $0x2d0] sm:$0xf]
        %v1658 = vld [vmem:[%s3 + $0x2d4] sm:$0xf]
        %v1659 = vld [vmem:[%s3 + $0x2d8] sm:$0xf]
        %v1660 = vld [vmem:[%s3 + $0x2dc] sm:$0xf]
        %v1661 = vld [vmem:[%s3 + $0x2e0] sm:$0xf]
        %v1662 = vld [vmem:[%s3 + $0x2e4] sm:$0xf]
        %v1663 = vld [vmem:[%s3 + $0x2e8] sm:$0xf]
        %v1664 = vld [vmem:[%s3 + $0x2ec] sm:$0xf]
        %v1665 = vld [vmem:[%s3 + $0x2f0] sm:$0xf]
        %v1666 = vld [vmem:[%s3 + $0x2f4] sm:$0xf]
        %v1667 = vld [vmem:[%s3 + $0x2f8] sm:$0xf]
        %v1668 = vld [vmem:[%s3 + $0x2fc] sm:$0xf]
        %v1669 = vld [vmem:[%s3 + $0x300] sm:$0xf]
        %v1670 = vld [vmem:[%s3 + $0x304] sm:$0xf]
        %v1671 = vld [vmem:[%s3 + $0x308] sm:$0xf]
        %v1672 = vld [vmem:[%s3 + $0x30c] sm:$0xf]
        %v1673 = vld [vmem:[%s3 + $0x310] sm:$0xf]
        %v1674 = vld [vmem:[%s3 + $0x314] sm:$0xf]
        %v1675 = vld [vmem:[%s3 + $0x318] sm:$0xf]
        %v1676 = vld [vmem:[%s3 + $0x31c] sm:$0xf]
        %v1677 = vld [vmem:[%s3 + $0x320] sm:$0xf]
        %v1678 = vld [vmem:[%s3 + $0x324] sm:$0xf]
        %v1679 = vld [vmem:[%s3 + $0x328] sm:$0xf]
        %v1680 = vld [vmem:[%s3 + $0x32c] sm:$0xf]
        %v1681 = vld [vmem:[%s3 + $0x330] sm:$0xf]
        %v1682 = vld [vmem:[%s3 + $0x334] sm:$0xf]
        %v1683 = vld [vmem:[%s3 + $0x338] sm:$0xf]
        %v1684 = vld [vmem:[%s3 + $0x33c] sm:$0xf]
        %v1685 = vld [vmem:[%s3 + $0x340] sm:$0xf]
        %v1686 = vld [vmem:[%s3 + $0x344] sm:$0xf]
        %v1687 = vld [vmem:[%s3 + $0x348] sm:$0xf]
        %v1688 = vld [vmem:[%s3 + $0x34c] sm:$0xf]
        %v1689 = vld [vmem:[%s3 + $0x350] sm:$0xf]
        %v1690 = vld [vmem:[%s3 + $0x354] sm:$0xf]
        %v1691 = vld [vmem:[%s3 + $0x358] sm:$0xf]
        %v1692 = vld [vmem:[%s3 + $0x35c] sm:$0xf]
        %v1693 = vld [vmem:[%s3 + $0x360] sm:$0xf]
        %v1694 = vld [vmem:[%s3 + $0x364] sm:$0xf]
        %v1695 = vld [vmem:[%s3 + $0x368] sm:$0xf]
        %v1696 = vld [vmem:[%s3 + $0x36c] sm:$0xf]
        %v1697 = vld [vmem:[%s3 + $0x370] sm:$0xf]
        %v1698 = vld [vmem:[%s3 + $0x374] sm:$0xf]
        %v1699 = vld [vmem:[%s3 + $0x378] sm:$0xf]
        %v1700 = vld [vmem:[%s3 + $0x37c] sm:$0xf]
        %v1701 = vld [vmem:[%s3 + $0x380] sm:$0xf]
        %v1702 = vld [vmem:[%s3 + $0x384] sm:$0xf]
        %v1703 = vld [vmem:[%s3 + $0x388] sm:$0xf]
        %v1704 = vld [vmem:[%s3 + $0x38c] sm:$0xf]
        %v1705 = vld [vmem:[%s3 + $0x390] sm:$0xf]
        %v1706 = vld [vmem:[%s3 + $0x394] sm:$0xf]
        %v1707 = vld [vmem:[%s3 + $0x398] sm:$0xf]
        %v1708 = vld [vmem:[%s3 + $0x39c] sm:$0xf]
        %v1709 = vld [vmem:[%s3 + $0x3a0] sm:$0xf]
        %v1710 = vld [vmem:[%s3 + $0x3a4] sm:$0xf]
        %v1711 = vld [vmem:[%s3 + $0x3a8] sm:$0xf]
        %v1712 = vld [vmem:[%s3 + $0x3ac] sm:$0xf]
        %v1713 = vld [vmem:[%s3 + $0x3b0] sm:$0xf]
        %v1714 = vld [vmem:[%s3 + $0x3b4] sm:$0xf]
        %v1715 = vld [vmem:[%s3 + $0x3b8] sm:$0xf]
        %v1716 = vld [vmem:[%s3 + $0x3bc] sm:$0xf]
        %v1717 = vld [vmem:[%s3 + $0x3c0] sm:$0xf]
        %v1718 = vld [vmem:[%s3 + $0x3c4] sm:$0xf]
        %v1719 = vld [vmem:[%s3 + $0x3c8] sm:$0xf]
        %v1720 = vld [vmem:[%s3 + $0x3cc] sm:$0xf]
        %v1721 = vld [vmem:[%s3 + $0x3d0] sm:$0xf]
        %v1722 = vld [vmem:[%s3 + $0x3d4] sm:$0xf]
        %v1723 = vld [vmem:[%s3 + $0x3d8] sm:$0xf]
        %v1724 = vld [vmem:[%s3 + $0x3dc] sm:$0xf]
        %v1725 = vld [vmem:[%s3 + $0x3e0] sm:$0xf]
        %v1726 = vld [vmem:[%s3 + $0x3e4] sm:$0xf]
        %v1727 = vld [vmem:[%s3 + $0x3e8] sm:$0xf]
        %v1728 = vld [vmem:[%s3 + $0x3ec] sm:$0xf]
        %v1729 = vld [vmem:[%s3 + $0x3f0] sm:$0xf]
        %v1730 = vld [vmem:[%s3 + $0x3f4] sm:$0xf]
        %v1731 = vld [vmem:[%s3 + $0x3f8] sm:$0xf]
        %v1732 = vld [vmem:[%s3 + $0x3fc] sm:$0xf]
        %v1733 = vld [vmem:[%s3 + $0x400] sm:$0xf]
        %v1734 = vld [vmem:[%s3 + $0x404] sm:$0xf]
        %v1735 = vld [vmem:[%s3 + $0x408] sm:$0xf]
        %v1736 = vld [vmem:[%s3 + $0x40c] sm:$0xf]
        %v1737 = vld [vmem:[%s3 + $0x410] sm:$0xf]
        %v1738 = vld [vmem:[%s3 + $0x414] sm:$0xf]
        %v1739 = vld [vmem:[%s3 + $0x418] sm:$0xf]
        %v1740 = vld [vmem:[%s3 + $0x41c] sm:$0xf]
        %v1741 = vld [vmem:[%s3 + $0x420] sm:$0xf]
        %v1742 = vld [vmem:[%s3 + $0x424] sm:$0xf]
        %v1743 = vld [vmem:[%s3 + $0x428] sm:$0xf]
        %v1744 = vld [vmem:[%s3 + $0x42c] sm:$0xf]
        %v1745 = vld [vmem:[%s3 + $0x430] sm:$0xf]
        %v1746 = vld [vmem:[%s3 + $0x434] sm:$0xf]
        %v1747 = vld [vmem:[%s3 + $0x438] sm:$0xf]
        %v1748 = vld [vmem:[%s3 + $0x43c] sm:$0xf]
        %v1749 = vld [vmem:[%s3 + $0x440] sm:$0xf]
        %v1750 = vld [vmem:[%s3 + $0x444] sm:$0xf]
        %v1751 = vld [vmem:[%s3 + $0x448] sm:$0xf]
        %v1752 = vld [vmem:[%s3 + $0x44c] sm:$0xf]
        %v1753 = vld [vmem:[%s3 + $0x450] sm:$0xf]
        %v1754 = vld [vmem:[%s3 + $0x454] sm:$0xf]
        %v1755 = vld [vmem:[%s3 + $0x458] sm:$0xf]
        %v1756 = vld [vmem:[%s3 + $0x45c] sm:$0xf]
        %v1757 = vld [vmem:[%s3 + $0x460] sm:$0xf]
        %v1758 = vld [vmem:[%s3 + $0x464] sm:$0xf]
        %v1759 = vld [vmem:[%s3 + $0x468] sm:$0xf]
        %v1760 = vld [vmem:[%s3 + $0x46c] sm:$0xf]
        %v1761 = vld [vmem:[%s3 + $0x470] sm:$0xf]
        %v1762 = vld [vmem:[%s3 + $0x474] sm:$0xf]
        %v1763 = vld [vmem:[%s3 + $0x478] sm:$0xf]
        %v1764 = vld [vmem:[%s3 + $0x47c] sm:$0xf]
        %v1765 = vld [vmem:[%s3 + $0x480] sm:$0xf]
        %v1766 = vld [vmem:[%s3 + $0x484] sm:$0xf]
        %v1767 = vld [vmem:[%s3 + $0x488] sm:$0xf]
        %v1768 = vld [vmem:[%s3 + $0x48c] sm:$0xf]
        %v1769 = vld [vmem:[%s3 + $0x490] sm:$0xf]
        %v1770 = vld [vmem:[%s3 + $0x494] sm:$0xf]
        %v1771 = vld [vmem:[%s3 + $0x498] sm:$0xf]
        %v1772 = vld [vmem:[%s3 + $0x49c] sm:$0xf]
        %v1773 = vld [vmem:[%s3 + $0x4a0] sm:$0xf]
        %v1774 = vld [vmem:[%s3 + $0x4a4] sm:$0xf]
        %v1775 = vld [vmem:[%s3 + $0x4a8] sm:$0xf]
        %v1776 = vld [vmem:[%s3 + $0x4ac] sm:$0xf]
        %v1777 = vld [vmem:[%s3 + $0x4b0] sm:$0xf]
        %v1778 = vld [vmem:[%s3 + $0x4b4] sm:$0xf]
        %v1779 = vld [vmem:[%s3 + $0x4b8] sm:$0xf]
        %v1780 = vld [vmem:[%s3 + $0x4bc] sm:$0xf]
        %v1781 = vld [vmem:[%s3 + $0x4c0] sm:$0xf]
        %v1782 = vld [vmem:[%s3 + $0x4c4] sm:$0xf]
        %v1783 = vld [vmem:[%s3 + $0x4c8] sm:$0xf]
        %v1784 = vld [vmem:[%s3 + $0x4cc] sm:$0xf]
        %v1785 = vld [vmem:[%s3 + $0x4d0] sm:$0xf]
        %v1786 = vld [vmem:[%s3 + $0x4d4] sm:$0xf]
        %v1787 = vld [vmem:[%s3 + $0x4d8] sm:$0xf]
        %v1788 = vld [vmem:[%s3 + $0x4dc] sm:$0xf]
        %v1789 = vld [vmem:[%s3 + $0x4e0] sm:$0xf]
        %v1790 = vld [vmem:[%s3 + $0x4e4] sm:$0xf]
        %v1791 = vld [vmem:[%s3 + $0x4e8] sm:$0xf]
        %v1792 = vld [vmem:[%s3 + $0x4ec] sm:$0xf]
        %v1793 = vld [vmem:[%s3 + $0x4f0] sm:$0xf]
        %v1794 = vld [vmem:[%s3 + $0x4f4] sm:$0xf]
        %v1795 = vld [vmem:[%s3 + $0x4f8] sm:$0xf]
        %v1796 = vld [vmem:[%s3 + $0x4fc] sm:$0xf]
        %v1797 = vld [vmem:[%s3 + $0x500] sm:$0xf]
        %v1798 = vld [vmem:[%s3 + $0x504] sm:$0xf]
        %v1799 = vld [vmem:[%s3 + $0x508] sm:$0xf]
        %v1800 = vld [vmem:[%s3 + $0x50c] sm:$0xf]
        %v1801 = vld [vmem:[%s3 + $0x510] sm:$0xf]
        %v1802 = vld [vmem:[%s3 + $0x514] sm:$0xf]
        %v1803 = vld [vmem:[%s3 + $0x518] sm:$0xf]
        %v1804 = vld [vmem:[%s3 + $0x51c] sm:$0xf]
        %v1805 = vld [vmem:[%s3 + $0x520] sm:$0xf]
        %v1806 = vld [vmem:[%s3 + $0x524] sm:$0xf]
        %v1807 = vld [vmem:[%s3 + $0x528] sm:$0xf]
        %v1808 = vld [vmem:[%s3 + $0x52c] sm:$0xf]
        %v1809 = vld [vmem:[%s3 + $0x530] sm:$0xf]
        %v1810 = vld [vmem:[%s3 + $0x534] sm:$0xf]
        %v1811 = vld [vmem:[%s3 + $0x538] sm:$0xf]
        %v1812 = vld [vmem:[%s3 + $0x53c] sm:$0xf]
        %v1813 = vld [vmem:[%s3 + $0x540] sm:$0xf]
        %v1814 = vld [vmem:[%s3 + $0x544] sm:$0xf]
        %v1815 = vld [vmem:[%s3 + $0x548] sm:$0xf]
        %v1816 = vld [vmem:[%s3 + $0x54c] sm:$0xf]
        %v1817 = vld [vmem:[%s3 + $0x550] sm:$0xf]
        %v1818 = vld [vmem:[%s3 + $0x554] sm:$0xf]
        %v1819 = vld [vmem:[%s3 + $0x558] sm:$0xf]
        %v1820 = vld [vmem:[%s3 + $0x55c] sm:$0xf]
        %v1821 = vld [vmem:[%s3 + $0x560] sm:$0xf]
        %v1822 = vld [vmem:[%s3 + $0x564] sm:$0xf]
        %v1823 = vld [vmem:[%s3 + $0x568] sm:$0xf]
        %v1824 = vld [vmem:[%s3 + $0x56c] sm:$0xf]
        %v1825 = vld [vmem:[%s3 + $0x570] sm:$0xf]
        %v1826 = vld [vmem:[%s3 + $0x574] sm:$0xf]
        %v1827 = vld [vmem:[%s3 + $0x578] sm:$0xf]
        %v1828 = vld [vmem:[%s3 + $0x57c] sm:$0xf]
        %v1829 = vld [vmem:[%s3 + $0x580] sm:$0xf]
        %v1830 = vld [vmem:[%s3 + $0x584] sm:$0xf]
        %v1831 = vld [vmem:[%s3 + $0x588] sm:$0xf]
        %v1832 = vld [vmem:[%s3 + $0x58c] sm:$0xf]
        %v1833 = vld [vmem:[%s3 + $0x590] sm:$0xf]
        %v1834 = vld [vmem:[%s3 + $0x594] sm:$0xf]
        %v1835 = vld [vmem:[%s3 + $0x598] sm:$0xf]
        %v1836 = vld [vmem:[%s3 + $0x59c] sm:$0xf]
        %v1837 = vld [vmem:[%s3 + $0x5a0] sm:$0xf]
        %v1838 = vld [vmem:[%s3 + $0x5a4] sm:$0xf]
        %v1839 = vld [vmem:[%s3 + $0x5a8] sm:$0xf]
        %v1840 = vld [vmem:[%s3 + $0x5ac] sm:$0xf]
        %v1841 = vld [vmem:[%s3 + $0x5b0] sm:$0xf]
        %v1842 = vld [vmem:[%s3 + $0x5b4] sm:$0xf]
        %v1843 = vld [vmem:[%s3 + $0x5b8] sm:$0xf]
        %v1844 = vld [vmem:[%s3 + $0x5bc] sm:$0xf]
        %v1845 = vld [vmem:[%s3 + $0x5c0] sm:$0xf]
        %v1846 = vld [vmem:[%s3 + $0x5c4] sm:$0xf]
        %v1847 = vld [vmem:[%s3 + $0x5c8] sm:$0xf]
        %v1848 = vld [vmem:[%s3 + $0x5cc] sm:$0xf]
        %v1849 = vld [vmem:[%s3 + $0x5d0] sm:$0xf]
        %v1850 = vld [vmem:[%s3 + $0x5d4] sm:$0xf]
        %v1851 = vld [vmem:[%s3 + $0x5d8] sm:$0xf]
        %v1852 = vld [vmem:[%s3 + $0x5dc] sm:$0xf]
        %v1853 = vld [vmem:[%s3 + $0x5e0] sm:$0xf]
        %v1854 = vld [vmem:[%s3 + $0x5e4] sm:$0xf]
        %v1855 = vld [vmem:[%s3 + $0x5e8] sm:$0xf]
        %v1856 = vld [vmem:[%s3 + $0x5ec] sm:$0xf]
        %v1857 = vld [vmem:[%s3 + $0x5f0] sm:$0xf]
        %v1858 = vld [vmem:[%s3 + $0x5f4] sm:$0xf]
        %v1859 = vld [vmem:[%s3 + $0x5f8] sm:$0xf]
        %v1860 = vld [vmem:[%s3 + $0x5fc] sm:$0xf]
        %v1861 = vld [vmem:[%s3 + $0x600] sm:$0xf]
        %v1862 = vld [vmem:[%s3 + $0x604] sm:$0xf]
        %v1863 = vld [vmem:[%s3 + $0x608] sm:$0xf]
        %v1864 = vld [vmem:[%s3 + $0x60c] sm:$0xf]
        %v1865 = vld [vmem:[%s3 + $0x610] sm:$0xf]
        %v1866 = vld [vmem:[%s3 + $0x614] sm:$0xf]
        %v1867 = vld [vmem:[%s3 + $0x618] sm:$0xf]
        %v1868 = vld [vmem:[%s3 + $0x61c] sm:$0xf]
        %v1869 = vld [vmem:[%s3 + $0x620] sm:$0xf]
        %v1870 = vld [vmem:[%s3 + $0x624] sm:$0xf]
        %v1871 = vld [vmem:[%s3 + $0x628] sm:$0xf]
        %v1872 = vld [vmem:[%s3 + $0x62c] sm:$0xf]
        %v1873 = vld [vmem:[%s3 + $0x630] sm:$0xf]
        %v1874 = vld [vmem:[%s3 + $0x634] sm:$0xf]
        %v1875 = vld [vmem:[%s3 + $0x638] sm:$0xf]
        %v1876 = vld [vmem:[%s3 + $0x63c] sm:$0xf]
        %v1877 = vld [vmem:[%s3 + $0x640] sm:$0xf]
        %v1878 = vld [vmem:[%s3 + $0x644] sm:$0xf]
        %v1879 = vld [vmem:[%s3 + $0x648] sm:$0xf]
        %v1880 = vld [vmem:[%s3 + $0x64c] sm:$0xf]
        %v1881 = vld [vmem:[%s3 + $0x650] sm:$0xf]
        %v1882 = vld [vmem:[%s3 + $0x654] sm:$0xf]
        %v1883 = vld [vmem:[%s3 + $0x658] sm:$0xf]
        %v1884 = vld [vmem:[%s3 + $0x65c] sm:$0xf]
        %v1885 = vld [vmem:[%s3 + $0x660] sm:$0xf]
        %v1886 = vld [vmem:[%s3 + $0x664] sm:$0xf]
        %v1887 = vld [vmem:[%s3 + $0x668] sm:$0xf]
        %v1888 = vld [vmem:[%s3 + $0x66c] sm:$0xf]
        %v1889 = vld [vmem:[%s3 + $0x670] sm:$0xf]
        %v1890 = vld [vmem:[%s3 + $0x674] sm:$0xf]
        %v1891 = vld [vmem:[%s3 + $0x678] sm:$0xf]
        %v1892 = vld [vmem:[%s3 + $0x67c] sm:$0xf]
        %v1893 = vld [vmem:[%s3 + $0x680] sm:$0xf]
        %v1894 = vld [vmem:[%s3 + $0x684] sm:$0xf]
        %v1895 = vld [vmem:[%s3 + $0x688] sm:$0xf]
        %v1896 = vld [vmem:[%s3 + $0x68c] sm:$0xf]
        %v1897 = vld [vmem:[%s3 + $0x690] sm:$0xf]
        %v1898 = vld [vmem:[%s3 + $0x694] sm:$0xf]
        %v1899 = vld [vmem:[%s3 + $0x698] sm:$0xf]
        %v1900 = vld [vmem:[%s3 + $0x69c] sm:$0xf]
        %v1901 = vld [vmem:[%s3 + $0x6a0] sm:$0xf]
        %v1902 = vld [vmem:[%s3 + $0x6a4] sm:$0xf]
        %v1903 = vld [vmem:[%s3 + $0x6a8] sm:$0xf]
        %v1904 = vld [vmem:[%s3 + $0x6ac] sm:$0xf]
        %v1905 = vld [vmem:[%s3 + $0x6b0] sm:$0xf]
        %v1906 = vld [vmem:[%s3 + $0x6b4] sm:$0xf]
        %v1907 = vld [vmem:[%s3 + $0x6b8] sm:$0xf]
        %v1908 = vld [vmem:[%s3 + $0x6bc] sm:$0xf]
        %v1909 = vld [vmem:[%s3 + $0x6c0] sm:$0xf]
        %v1910 = vld [vmem:[%s3 + $0x6c4] sm:$0xf]
        %v1911 = vld [vmem:[%s3 + $0x6c8] sm:$0xf]
        %v1912 = vld [vmem:[%s3 + $0x6cc] sm:$0xf]
        %v1913 = vld [vmem:[%s3 + $0x6d0] sm:$0xf]
        %v1914 = vld [vmem:[%s3 + $0x6d4] sm:$0xf]
        %v1915 = vld [vmem:[%s3 + $0x6d8] sm:$0xf]
        %v1916 = vld [vmem:[%s3 + $0x6dc] sm:$0xf]
        %v1917 = vld [vmem:[%s3 + $0x6e0] sm:$0xf]
        %v1918 = vld [vmem:[%s3 + $0x6e4] sm:$0xf]
        %v1919 = vld [vmem:[%s3 + $0x6e8] sm:$0xf]
        %v1920 = vld [vmem:[%s3 + $0x6ec] sm:$0xf]
        %v1921 = vld [vmem:[%s3 + $0x6f0] sm:$0xf]
        %v1922 = vld [vmem:[%s3 + $0x6f4] sm:$0xf]
        %v1923 = vld [vmem:[%s3 + $0x6f8] sm:$0xf]
        %v1924 = vld [vmem:[%s3 + $0x6fc] sm:$0xf]
        %v1925 = vld [vmem:[%s3 + $0x700] sm:$0xf]
        %v1926 = vld [vmem:[%s3 + $0x704] sm:$0xf]
        %v1927 = vld [vmem:[%s3 + $0x708] sm:$0xf]
        %v1928 = vld [vmem:[%s3 + $0x70c] sm:$0xf]
        %v1929 = vld [vmem:[%s3 + $0x710] sm:$0xf]
        %v1930 = vld [vmem:[%s3 + $0x714] sm:$0xf]
        %v1931 = vld [vmem:[%s3 + $0x718] sm:$0xf]
        %v1932 = vld [vmem:[%s3 + $0x71c] sm:$0xf]
        %v1933 = vld [vmem:[%s3 + $0x720] sm:$0xf]
        %v1934 = vld [vmem:[%s3 + $0x724] sm:$0xf]
        %v1935 = vld [vmem:[%s3 + $0x728] sm:$0xf]
        %v1936 = vld [vmem:[%s3 + $0x72c] sm:$0xf]
        %v1937 = vld [vmem:[%s3 + $0x730] sm:$0xf]
        %v1938 = vld [vmem:[%s3 + $0x734] sm:$0xf]
        %v1939 = vld [vmem:[%s3 + $0x738] sm:$0xf]
        %v1940 = vld [vmem:[%s3 + $0x73c] sm:$0xf]
        %v1941 = vld [vmem:[%s3 + $0x740] sm:$0xf]
        %v1942 = vld [vmem:[%s3 + $0x744] sm:$0xf]
        %v1943 = vld [vmem:[%s3 + $0x748] sm:$0xf]
        %v1944 = vld [vmem:[%s3 + $0x74c] sm:$0xf]
        %v1945 = vld [vmem:[%s3 + $0x750] sm:$0xf]
        %v1946 = vld [vmem:[%s3 + $0x754] sm:$0xf]
        %v1947 = vld [vmem:[%s3 + $0x758] sm:$0xf]
        %v1948 = vld [vmem:[%s3 + $0x75c] sm:$0xf]
        %v1949 = vld [vmem:[%s3 + $0x760] sm:$0xf]
        %v1950 = vld [vmem:[%s3 + $0x764] sm:$0xf]
        %v1951 = vld [vmem:[%s3 + $0x768] sm:$0xf]
        %v1952 = vld [vmem:[%s3 + $0x76c] sm:$0xf]
        %v1953 = vld [vmem:[%s3 + $0x770] sm:$0xf]
        %v1954 = vld [vmem:[%s3 + $0x774] sm:$0xf]
        %v1955 = vld [vmem:[%s3 + $0x778] sm:$0xf]
        %v1956 = vld [vmem:[%s3 + $0x77c] sm:$0xf]
        %v1957 = vld [vmem:[%s3 + $0x780] sm:$0xf]
        %v1958 = vld [vmem:[%s3 + $0x784] sm:$0xf]
        %v1959 = vld [vmem:[%s3 + $0x788] sm:$0xf]
        %v1960 = vld [vmem:[%s3 + $0x78c] sm:$0xf]
        %v1961 = vld [vmem:[%s3 + $0x790] sm:$0xf]
        %v1962 = vld [vmem:[%s3 + $0x794] sm:$0xf]
        %v1963 = vld [vmem:[%s3 + $0x798] sm:$0xf]
        %v1964 = vld [vmem:[%s3 + $0x79c] sm:$0xf]
        %v1965 = vld [vmem:[%s3 + $0x7a0] sm:$0xf]
        %v1966 = vld [vmem:[%s3 + $0x7a4] sm:$0xf]
        %v1967 = vld [vmem:[%s3 + $0x7a8] sm:$0xf]
        %v1968 = vld [vmem:[%s3 + $0x7ac] sm:$0xf]
        %v1969 = vld [vmem:[%s3 + $0x7b0] sm:$0xf]
        %v1970 = vld [vmem:[%s3 + $0x7b4] sm:$0xf]
        %v1971 = vld [vmem:[%s3 + $0x7b8] sm:$0xf]
        %v1972 = vld [vmem:[%s3 + $0x7bc] sm:$0xf]
        %v1973 = vld [vmem:[%s3 + $0x7c0] sm:$0xf]
        %v1974 = vld [vmem:[%s3 + $0x7c4] sm:$0xf]
        %v1975 = vld [vmem:[%s3 + $0x7c8] sm:$0xf]
        %v1976 = vld [vmem:[%s3 + $0x7cc] sm:$0xf]
        %v1977 = vld [vmem:[%s3 + $0x7d0] sm:$0xf]
        %v1978 = vld [vmem:[%s3 + $0x7d4] sm:$0xf]
        %v1979 = vld [vmem:[%s3 + $0x7d8] sm:$0xf]
        %v1980 = vld [vmem:[%s3 + $0x7dc] sm:$0xf]
        %v1981 = vld [vmem:[%s3 + $0x7e0] sm:$0xf]
        %v1982 = vld [vmem:[%s3 + $0x7e4] sm:$0xf]
        %v1983 = vld [vmem:[%s3 + $0x7e8] sm:$0xf]
        %v1984 = vld [vmem:[%s3 + $0x7ec] sm:$0xf]
        %v1985 = vld [vmem:[%s3 + $0x7f0] sm:$0xf]
        %v1986 = vld [vmem:[%s3 + $0x7f4] sm:$0xf]
        %v1987 = vld [vmem:[%s3 + $0x7f8] sm:$0xf]
        %v1988 = vld [vmem:[%s3 + $0x7fc] sm:$0xf]
        %v1989 = vld [vmem:[%s3 + $0x800] sm:$0xf]
        %v1990 = vld [vmem:[%s3 + $0x804] sm:$0xf]
        %v1991 = vld [vmem:[%s3 + $0x808] sm:$0xf]
        %v1992 = vld [vmem:[%s3 + $0x80c] sm:$0xf]
        %v1993 = vld [vmem:[%s3 + $0x810] sm:$0xf]
        %v1994 = vld [vmem:[%s3 + $0x814] sm:$0xf]
        %v1995 = vld [vmem:[%s3 + $0x818] sm:$0xf]
        %v1996 = vld [vmem:[%s3 + $0x81c] sm:$0xf]
        %v1997 = vld [vmem:[%s3 + $0x820] sm:$0xf]
        %v1998 = vld [vmem:[%s3 + $0x824] sm:$0xf]
        %v1999 = vld [vmem:[%s3 + $0x828] sm:$0xf]
        %v2000 = vld [vmem:[%s3 + $0x82c] sm:$0xf]
        %v2001 = vld [vmem:[%s3 + $0x830] sm:$0xf]
        %v2002 = vld [vmem:[%s3 + $0x834] sm:$0xf]
        %v2003 = vld [vmem:[%s3 + $0x838] sm:$0xf]
        %v2004 = vld [vmem:[%s3 + $0x83c] sm:$0xf]
        %v2005 = vld [vmem:[%s3 + $0x840] sm:$0xf]
        %v2006 = vld [vmem:[%s3 + $0x844] sm:$0xf]
        %v2007 = vld [vmem:[%s3 + $0x848] sm:$0xf]
        %v2008 = vld [vmem:[%s3 + $0x84c] sm:$0xf]
        %v2009 = vld [vmem:[%s3 + $0x850] sm:$0xf]
        %v2010 = vld [vmem:[%s3 + $0x854] sm:$0xf]
        %v2011 = vld [vmem:[%s3 + $0x858] sm:$0xf]
        %v2012 = vld [vmem:[%s3 + $0x85c] sm:$0xf]
        %v2013 = vld [vmem:[%s3 + $0x860] sm:$0xf]
        %v2014 = vld [vmem:[%s3 + $0x864] sm:$0xf]
        %v2015 = vld [vmem:[%s3 + $0x868] sm:$0xf]
        %v2016 = vld [vmem:[%s3 + $0x86c] sm:$0xf]
        %v2017 = vld [vmem:[%s3 + $0x870] sm:$0xf]
        %v2018 = vld [vmem:[%s3 + $0x874] sm:$0xf]
        %v2019 = vld [vmem:[%s3 + $0x878] sm:$0xf]
        %v2020 = vld [vmem:[%s3 + $0x87c] sm:$0xf]
        %v2021 = vld [vmem:[%s3 + $0x880] sm:$0xf]
        %v2022 = vld [vmem:[%s3 + $0x884] sm:$0xf]
        %v2023 = vld [vmem:[%s3 + $0x888] sm:$0xf]
        %v2024 = vld [vmem:[%s3 + $0x88c] sm:$0xf]
        %v2025 = vld [vmem:[%s3 + $0x890] sm:$0xf]
        %v2026 = vld [vmem:[%s3 + $0x894] sm:$0xf]
        %v2027 = vld [vmem:[%s3 + $0x898] sm:$0xf]
        %v2028 = vld [vmem:[%s3 + $0x89c] sm:$0xf]
        %v2029 = vld [vmem:[%s3 + $0x8a0] sm:$0xf]
        %v2030 = vld [vmem:[%s3 + $0x8a4] sm:$0xf]
        %v2031 = vld [vmem:[%s3 + $0x8a8] sm:$0xf]
        %v2032 = vld [vmem:[%s3 + $0x8ac] sm:$0xf]
        %v2033 = vld [vmem:[%s3 + $0x8b0] sm:$0xf]
        %v2034 = vld [vmem:[%s3 + $0x8b4] sm:$0xf]
        %v2035 = vld [vmem:[%s3 + $0x8b8] sm:$0xf]
        %v2036 = vld [vmem:[%s3 + $0x8bc] sm:$0xf]
        %v2037 = vld [vmem:[%s3 + $0x8c0] sm:$0xf]
        %v2038 = vld [vmem:[%s3 + $0x8c4] sm:$0xf]
        %v2039 = vld [vmem:[%s3 + $0x8c8] sm:$0xf]
        %v2040 = vld [vmem:[%s3 + $0x8cc] sm:$0xf]
        %v2041 = vld [vmem:[%s3 + $0x8d0] sm:$0xf]
        %v2042 = vld [vmem:[%s3 + $0x8d4] sm:$0xf]
        %v2043 = vld [vmem:[%s3 + $0x8d8] sm:$0xf]
        %v2044 = vld [vmem:[%s3 + $0x8dc] sm:$0xf]
        %v2045 = vld [vmem:[%s3 + $0x8e0] sm:$0xf]
        %v2046 = vld [vmem:[%s3 + $0x8e4] sm:$0xf]
        %v2047 = vld [vmem:[%s3 + $0x8e8] sm:$0xf]
        %v2048 = vld [vmem:[%s3 + $0x8ec] sm:$0xf]
        %v2049 = vld [vmem:[%s3 + $0x8f0] sm:$0xf]
        %v2050 = vld [vmem:[%s3 + $0x8f4] sm:$0xf]
        %v2051 = vld [vmem:[%s3 + $0x8f8] sm:$0xf]
        %v2052 = vld [vmem:[%s3 + $0x8fc] sm:$0xf]
        %v2053 = vld [vmem:[%s3 + $0x900] sm:$0xf]
        %v2054 = vld [vmem:[%s3 + $0x904] sm:$0xf]
        %v2055 = vld [vmem:[%s3 + $0x908] sm:$0xf]
        %v2056 = vld [vmem:[%s3 + $0x90c] sm:$0xf]
        %v2057 = vld [vmem:[%s3 + $0x910] sm:$0xf]
        %v2058 = vld [vmem:[%s3 + $0x914] sm:$0xf]
        %v2059 = vld [vmem:[%s3 + $0x918] sm:$0xf]
        %v2060 = vld [vmem:[%s3 + $0x91c] sm:$0xf]
        %v2061 = vld [vmem:[%s3 + $0x920] sm:$0xf]
        %v2062 = vld [vmem:[%s3 + $0x924] sm:$0xf]
        %v2063 = vld [vmem:[%s3 + $0x928] sm:$0xf]
        %v2064 = vld [vmem:[%s3 + $0x92c] sm:$0xf]
        %v2065 = vld [vmem:[%s3 + $0x930] sm:$0xf]
        %v2066 = vld [vmem:[%s3 + $0x934] sm:$0xf]
        %v2067 = vld [vmem:[%s3 + $0x938] sm:$0xf]
        %v2068 = vld [vmem:[%s3 + $0x93c] sm:$0xf]
        %v2069 = vld [vmem:[%s3 + $0x940] sm:$0xf]
        %v2070 = vld [vmem:[%s3 + $0x944] sm:$0xf]
        %v2071 = vld [vmem:[%s3 + $0x948] sm:$0xf]
        %v2072 = vld [vmem:[%s3 + $0x94c] sm:$0xf]
        %v2073 = vld [vmem:[%s3 + $0x950] sm:$0xf]
        %v2074 = vld [vmem:[%s3 + $0x954] sm:$0xf]
        %v2075 = vld [vmem:[%s3 + $0x958] sm:$0xf]
        %v2076 = vld [vmem:[%s3 + $0x95c] sm:$0xf]
        %v2077 = vld [vmem:[%s3 + $0x960] sm:$0xf]
        %v2078 = vld [vmem:[%s3 + $0x964] sm:$0xf]
        %v2079 = vld [vmem:[%s3 + $0x968] sm:$0xf]
        %v2080 = vld [vmem:[%s3 + $0x96c] sm:$0xf]
        %v2081 = vld [vmem:[%s3 + $0x970] sm:$0xf]
        %v2082 = vld [vmem:[%s3 + $0x974] sm:$0xf]
        %v2083 = vld [vmem:[%s3 + $0x978] sm:$0xf]
        %v2084 = vld [vmem:[%s3 + $0x97c] sm:$0xf]
        %v2085 = vld [vmem:[%s3 + $0x980] sm:$0xf]
        %v2086 = vld [vmem:[%s3 + $0x984] sm:$0xf]
        %v2087 = vld [vmem:[%s3 + $0x988] sm:$0xf]
        %v2088 = vld [vmem:[%s3 + $0x98c] sm:$0xf]
        %v2089 = vld [vmem:[%s3 + $0x990] sm:$0xf]
        %v2090 = vld [vmem:[%s3 + $0x994] sm:$0xf]
        %v2091 = vld [vmem:[%s3 + $0x998] sm:$0xf]
        %v2092 = vld [vmem:[%s3 + $0x99c] sm:$0xf]
        %v2093 = vld [vmem:[%s3 + $0x9a0] sm:$0xf]
        %v2094 = vld [vmem:[%s3 + $0x9a4] sm:$0xf]
        %v2095 = vld [vmem:[%s3 + $0x9a8] sm:$0xf]
        %v2096 = vld [vmem:[%s3 + $0x9ac] sm:$0xf]
        %v2097 = vld [vmem:[%s3 + $0x9b0] sm:$0xf]
        %v2098 = vld [vmem:[%s3 + $0x9b4] sm:$0xf]
        %v2099 = vld [vmem:[%s3 + $0x9b8] sm:$0xf]
        %v2100 = vld [vmem:[%s3 + $0x9bc] sm:$0xf]
        %v2101 = vld [vmem:[%s3 + $0x9c0] sm:$0xf]
        %v2102 = vld [vmem:[%s3 + $0x9c4] sm:$0xf]
        %v2103 = vld [vmem:[%s3 + $0x9c8] sm:$0xf]
        %v2104 = vld [vmem:[%s3 + $0x9cc] sm:$0xf]
        %v2105 = vld [vmem:[%s3 + $0x9d0] sm:$0xf]
        %v2106 = vld [vmem:[%s3 + $0x9d4] sm:$0xf]
        %v2107 = vld [vmem:[%s3 + $0x9d8] sm:$0xf]
        %v2108 = vld [vmem:[%s3 + $0x9dc] sm:$0xf]
        %v2109 = vld [vmem:[%s3 + $0x9e0] sm:$0xf]
        %v2110 = vld [vmem:[%s3 + $0x9e4] sm:$0xf]
        %v2111 = vld [vmem:[%s3 + $0x9e8] sm:$0xf]
        %v2112 = vld [vmem:[%s3 + $0x9ec] sm:$0xf]
        %v2113 = vld [vmem:[%s3 + $0x9f0] sm:$0xf]
        %v2114 = vld [vmem:[%s3 + $0x9f4] sm:$0xf]
        %v2115 = vld [vmem:[%s3 + $0x9f8] sm:$0xf]
        %v2116 = vld [vmem:[%s3 + $0x9fc] sm:$0xf]
        %v2117 = vld [vmem:[%s3 + $0xa00] sm:$0xf]
        %v2118 = vld [vmem:[%s3 + $0xa04] sm:$0xf]
        %v2119 = vld [vmem:[%s3 + $0xa08] sm:$0xf]
        %v2120 = vld [vmem:[%s3 + $0xa0c] sm:$0xf]
        %v2121 = vld [vmem:[%s3 + $0xa10] sm:$0xf]
        %v2122 = vld [vmem:[%s3 + $0xa14] sm:$0xf]
        %v2123 = vld [vmem:[%s3 + $0xa18] sm:$0xf]
        %v2124 = vld [vmem:[%s3 + $0xa1c] sm:$0xf]
        %v2125 = vld [vmem:[%s3 + $0xa20] sm:$0xf]
        %v2126 = vld [vmem:[%s3 + $0xa24] sm:$0xf]
        %v2127 = vld [vmem:[%s3 + $0xa28] sm:$0xf]
        %v2128 = vld [vmem:[%s3 + $0xa2c] sm:$0xf]
        %v2129 = vld [vmem:[%s3 + $0xa30] sm:$0xf]
        %v2130 = vld [vmem:[%s3 + $0xa34] sm:$0xf]
        %v2131 = vld [vmem:[%s3 + $0xa38] sm:$0xf]
        %v2132 = vld [vmem:[%s3 + $0xa3c] sm:$0xf]
        %v2133 = vld [vmem:[%s3 + $0xa40] sm:$0xf]
        %v2134 = vld [vmem:[%s3 + $0xa44] sm:$0xf]
        %v2135 = vld [vmem:[%s3 + $0xa48] sm:$0xf]
        %v2136 = vld [vmem:[%s3 + $0xa4c] sm:$0xf]
        %v2137 = vld [vmem:[%s3 + $0xa50] sm:$0xf]
        %v2138 = vld [vmem:[%s3 + $0xa54] sm:$0xf]
        %v2139 = vld [vmem:[%s3 + $0xa58] sm:$0xf]
        %v2140 = vld [vmem:[%s3 + $0xa5c] sm:$0xf]
        %v2141 = vld [vmem:[%s3 + $0xa60] sm:$0xf]
        %v2142 = vld [vmem:[%s3 + $0xa64] sm:$0xf]
        %v2143 = vld [vmem:[%s3 + $0xa68] sm:$0xf]
        %v2144 = vld [vmem:[%s3 + $0xa6c] sm:$0xf]
        %v2145 = vld [vmem:[%s3 + $0xa70] sm:$0xf]
        %v2146 = vld [vmem:[%s3 + $0xa74] sm:$0xf]
        %v2147 = vld [vmem:[%s3 + $0xa78] sm:$0xf]
        %v2148 = vld [vmem:[%s3 + $0xa7c] sm:$0xf]
        %v2149 = vld [vmem:[%s3 + $0xa80] sm:$0xf]
        %v2150 = vld [vmem:[%s3 + $0xa84] sm:$0xf]
        %v2151 = vld [vmem:[%s3 + $0xa88] sm:$0xf]
        %v2152 = vld [vmem:[%s3 + $0xa8c] sm:$0xf]
        %v2153 = vld [vmem:[%s3 + $0xa90] sm:$0xf]
        %v2154 = vld [vmem:[%s3 + $0xa94] sm:$0xf]
        %v2155 = vld [vmem:[%s3 + $0xa98] sm:$0xf]
        %v2156 = vld [vmem:[%s3 + $0xa9c] sm:$0xf]
        %v2157 = vld [vmem:[%s3 + $0xaa0] sm:$0xf]
        %v2158 = vld [vmem:[%s3 + $0xaa4] sm:$0xf]
        %v2159 = vld [vmem:[%s3 + $0xaa8] sm:$0xf]
        %v2160 = vld [vmem:[%s3 + $0xaac] sm:$0xf]
        %v2161 = vld [vmem:[%s3 + $0xab0] sm:$0xf]
        %v2162 = vld [vmem:[%s3 + $0xab4] sm:$0xf]
        %v2163 = vld [vmem:[%s3 + $0xab8] sm:$0xf]
        %v2164 = vld [vmem:[%s3 + $0xabc] sm:$0xf]
        %v2165 = vld [vmem:[%s3 + $0xac0] sm:$0xf]
        %v2166 = vld [vmem:[%s3 + $0xac4] sm:$0xf]
        %v2167 = vld [vmem:[%s3 + $0xac8] sm:$0xf]
        %v2168 = vld [vmem:[%s3 + $0xacc] sm:$0xf]
        %v2169 = vld [vmem:[%s3 + $0xad0] sm:$0xf]
        %v2170 = vld [vmem:[%s3 + $0xad4] sm:$0xf]
        %v2171 = vld [vmem:[%s3 + $0xad8] sm:$0xf]
        %v2172 = vld [vmem:[%s3 + $0xadc] sm:$0xf]
        %v2173 = vld [vmem:[%s3 + $0xae0] sm:$0xf]
        %v2174 = vld [vmem:[%s3 + $0xae4] sm:$0xf]
        %v2175 = vld [vmem:[%s3 + $0xae8] sm:$0xf]
        %v2176 = vld [vmem:[%s3 + $0xaec] sm:$0xf]
        %v2177 = vld [vmem:[%s3 + $0xaf0] sm:$0xf]
        %v2178 = vld [vmem:[%s3 + $0xaf4] sm:$0xf]
        %v2179 = vld [vmem:[%s3 + $0xaf8] sm:$0xf]
        %v2180 = vld [vmem:[%s3 + $0xafc] sm:$0xf]
        %v2181 = vld [vmem:[%s3 + $0xb00] sm:$0xf]
        %v2182 = vld [vmem:[%s3 + $0xb04] sm:$0xf]
        %v2183 = vld [vmem:[%s3 + $0xb08] sm:$0xf]
        %v2184 = vld [vmem:[%s3 + $0xb0c] sm:$0xf]
        %v2185 = vld [vmem:[%s3 + $0xb10] sm:$0xf]
        %v2186 = vld [vmem:[%s3 + $0xb14] sm:$0xf]
        %v2187 = vld [vmem:[%s3 + $0xb18] sm:$0xf]
        %v2188 = vld [vmem:[%s3 + $0xb1c] sm:$0xf]
        %v2189 = vld [vmem:[%s3 + $0xb20] sm:$0xf]
        %v2190 = vld [vmem:[%s3 + $0xb24] sm:$0xf]
        %v2191 = vld [vmem:[%s3 + $0xb28] sm:$0xf]
        %v2192 = vld [vmem:[%s3 + $0xb2c] sm:$0xf]
        %v2193 = vld [vmem:[%s3 + $0xb30] sm:$0xf]
        %v2194 = vld [vmem:[%s3 + $0xb34] sm:$0xf]
        %v2195 = vld [vmem:[%s3 + $0xb38] sm:$0xf]
        %v2196 = vld [vmem:[%s3 + $0xb3c] sm:$0xf]
        %v2197 = vld [vmem:[%s3 + $0xb40] sm:$0xf]
        %v2198 = vld [vmem:[%s3 + $0xb44] sm:$0xf]
        %v2199 = vld [vmem:[%s3 + $0xb48] sm:$0xf]
        %v2200 = vld [vmem:[%s3 + $0xb4c] sm:$0xf]
        %v2201 = vld [vmem:[%s3 + $0xb50] sm:$0xf]
        %v2202 = vld [vmem:[%s3 + $0xb54] sm:$0xf]
        %v2203 = vld [vmem:[%s3 + $0xb58] sm:$0xf]
        %v2204 = vld [vmem:[%s3 + $0xb5c] sm:$0xf]
        %v2205 = vld [vmem:[%s3 + $0xb60] sm:$0xf]
        %v2206 = vld [vmem:[%s3 + $0xb64] sm:$0xf]
        %v2207 = vld [vmem:[%s3 + $0xb68] sm:$0xf]
        %v2208 = vld [vmem:[%s3 + $0xb6c] sm:$0xf]
        %v2209 = vld [vmem:[%s3 + $0xb70] sm:$0xf]
        %v2210 = vld [vmem:[%s3 + $0xb74] sm:$0xf]
        %v2211 = vld [vmem:[%s3 + $0xb78] sm:$0xf]
        %v2212 = vld [vmem:[%s3 + $0xb7c] sm:$0xf]
        %v2213 = vld [vmem:[%s3 + $0xb80] sm:$0xf]
        %v2214 = vld [vmem:[%s3 + $0xb84] sm:$0xf]
        %v2215 = vld [vmem:[%s3 + $0xb88] sm:$0xf]
        %v2216 = vld [vmem:[%s3 + $0xb8c] sm:$0xf]
        %v2217 = vld [vmem:[%s3 + $0xb90] sm:$0xf]
        %v2218 = vld [vmem:[%s3 + $0xb94] sm:$0xf]
        %v2219 = vld [vmem:[%s3 + $0xb98] sm:$0xf]
        %v2220 = vld [vmem:[%s3 + $0xb9c] sm:$0xf]
        %v2221 = vld [vmem:[%s3 + $0xba0] sm:$0xf]
        %v2222 = vld [vmem:[%s3 + $0xba4] sm:$0xf]
        %v2223 = vld [vmem:[%s3 + $0xba8] sm:$0xf]
        %v2224 = vld [vmem:[%s3 + $0xbac] sm:$0xf]
        %v2225 = vld [vmem:[%s3 + $0xbb0] sm:$0xf]
        %v2226 = vld [vmem:[%s3 + $0xbb4] sm:$0xf]
        %v2227 = vld [vmem:[%s3 + $0xbb8] sm:$0xf]
        %v2228 = vld [vmem:[%s3 + $0xbbc] sm:$0xf]
        %v2229 = vld [vmem:[%s3 + $0xbc0] sm:$0xf]
        %v2230 = vld [vmem:[%s3 + $0xbc4] sm:$0xf]
        %v2231 = vld [vmem:[%s3 + $0xbc8] sm:$0xf]
        %v2232 = vld [vmem:[%s3 + $0xbcc] sm:$0xf]
        %v2233 = vld [vmem:[%s3 + $0xbd0] sm:$0xf]
        %v2234 = vld [vmem:[%s3 + $0xbd4] sm:$0xf]
        %v2235 = vld [vmem:[%s3 + $0xbd8] sm:$0xf]
        %v2236 = vld [vmem:[%s3 + $0xbdc] sm:$0xf]
        %v2237 = vld [vmem:[%s3 + $0xbe0] sm:$0xf]
        %v2238 = vld [vmem:[%s3 + $0xbe4] sm:$0xf]
        %v2239 = vld [vmem:[%s3 + $0xbe8] sm:$0xf]
        %v2240 = vld [vmem:[%s3 + $0xbec] sm:$0xf]
        %v2241 = vld [vmem:[%s3 + $0xbf0] sm:$0xf]
        %v2242 = vld [vmem:[%s3 + $0xbf4] sm:$0xf]
        %v2243 = vld [vmem:[%s3 + $0xbf8] sm:$0xf]
        %v2244 = vld [vmem:[%s3 + $0xbfc] sm:$0xf]
        %v2245 = vld [vmem:[%s3 + $0xc00] sm:$0xf]
        %v2246 = vld [vmem:[%s3 + $0xc04] sm:$0xf]
        %v2247 = vld [vmem:[%s3 + $0xc08] sm:$0xf]
        %v2248 = vld [vmem:[%s3 + $0xc0c] sm:$0xf]
        %v2249 = vld [vmem:[%s3 + $0xc10] sm:$0xf]
        %v2250 = vld [vmem:[%s3 + $0xc14] sm:$0xf]
        %v2251 = vld [vmem:[%s3 + $0xc18] sm:$0xf]
        %v2252 = vld [vmem:[%s3 + $0xc1c] sm:$0xf]
        %v2253 = vld [vmem:[%s3 + $0xc20] sm:$0xf]
        %v2254 = vld [vmem:[%s3 + $0xc24] sm:$0xf]
        %v2255 = vld [vmem:[%s3 + $0xc28] sm:$0xf]
        %v2256 = vld [vmem:[%s3 + $0xc2c] sm:$0xf]
        %v2257 = vld [vmem:[%s3 + $0xc30] sm:$0xf]
        %v2258 = vld [vmem:[%s3 + $0xc34] sm:$0xf]
        %v2259 = vld [vmem:[%s3 + $0xc38] sm:$0xf]
        %v2260 = vld [vmem:[%s3 + $0xc3c] sm:$0xf]
        %v2261 = vld [vmem:[%s4] sm:$0x1]
        %v3046 = vunpack.c.l.b16 %v1477
        %v3047 = vunpack.c.l.b16 %v1478
        %v3048 = vunpack.c.l.b16 %v1479
        %v3049 = vunpack.c.l.b16 %v1480
        %v3050 = vunpack.c.l.b16 %v1481
        %v3051 = vunpack.c.l.b16 %v1482
        %v3052 = vunpack.c.l.b16 %v1483
        %v3053 = vunpack.c.l.b16 %v1484
        %v3054 = vunpack.c.l.b16 %v1485
        %v3055 = vunpack.c.l.b16 %v1486
        %v3056 = vunpack.c.l.b16 %v1487
        %v3057 = vunpack.c.l.b16 %v1488
        %v3058 = vunpack.c.l.b16 %v1489
        %v3059 = vunpack.c.l.b16 %v1490
        %v3060 = vunpack.c.l.b16 %v1491
        %v3061 = vunpack.c.l.b16 %v1492
        %v3062 = vunpack.c.l.b16 %v1493
        %v3063 = vunpack.c.l.b16 %v1494
        %v3064 = vunpack.c.l.b16 %v1495
        %v3065 = vunpack.c.l.b16 %v1496
        %v3066 = vunpack.c.l.b16 %v1497
        %v3067 = vunpack.c.l.b16 %v1498
        %v3068 = vunpack.c.l.b16 %v1499
        %v3069 = vunpack.c.l.b16 %v1500
        %v3070 = vunpack.c.l.b16 %v1501
        %v3071 = vunpack.c.l.b16 %v1502
        %v3072 = vunpack.c.l.b16 %v1503
        %v3073 = vunpack.c.l.b16 %v1504
        %v3074 = vunpack.c.l.b16 %v1505
        %v3075 = vunpack.c.l.b16 %v1506
        %v3076 = vunpack.c.l.b16 %v1507
        %v3077 = vunpack.c.l.b16 %v1508
        %v3078 = vunpack.c.l.b16 %v1509
        %v3079 = vunpack.c.l.b16 %v1510
        %v3080 = vunpack.c.l.b16 %v1511
        %v3081 = vunpack.c.l.b16 %v1512
        %v3082 = vunpack.c.l.b16 %v1513
        %v3083 = vunpack.c.l.b16 %v1514
        %v3084 = vunpack.c.l.b16 %v1515
        %v3085 = vunpack.c.l.b16 %v1516
        %v3086 = vunpack.c.l.b16 %v1517
        %v3087 = vunpack.c.l.b16 %v1518
        %v3088 = vunpack.c.l.b16 %v1519
        %v3089 = vunpack.c.l.b16 %v1520
        %v3090 = vunpack.c.l.b16 %v1521
        %v3091 = vunpack.c.l.b16 %v1522
        %v3092 = vunpack.c.l.b16 %v1523
        %v3093 = vunpack.c.l.b16 %v1524
        %v3094 = vunpack.c.l.b16 %v1525
        %v3095 = vunpack.c.l.b16 %v1526
        %v3096 = vunpack.c.l.b16 %v1527
        %v3097 = vunpack.c.l.b16 %v1528
        %v3098 = vunpack.c.l.b16 %v1529
        %v3099 = vunpack.c.l.b16 %v1530
        %v3100 = vunpack.c.l.b16 %v1531
        %v3101 = vunpack.c.l.b16 %v1532
        %v3102 = vunpack.c.l.b16 %v1533
        %v3103 = vunpack.c.l.b16 %v1534
        %v3104 = vunpack.c.l.b16 %v1535
        %v3105 = vunpack.c.l.b16 %v1536
        %v3106 = vunpack.c.l.b16 %v1537
        %v3107 = vunpack.c.l.b16 %v1538
        %v3108 = vunpack.c.l.b16 %v1539
        %v3109 = vunpack.c.l.b16 %v1540
        %v3110 = vunpack.c.l.b16 %v1541
        %v3111 = vunpack.c.l.b16 %v1542
        %v3112 = vunpack.c.l.b16 %v1543
        %v3113 = vunpack.c.l.b16 %v1544
        %v3114 = vunpack.c.l.b16 %v1545
        %v3115 = vunpack.c.l.b16 %v1546
        %v3116 = vunpack.c.l.b16 %v1547
        %v3117 = vunpack.c.l.b16 %v1548
        %v3118 = vunpack.c.l.b16 %v1549
        %v3119 = vunpack.c.l.b16 %v1550
        %v3120 = vunpack.c.l.b16 %v1551
        %v3121 = vunpack.c.l.b16 %v1552
        %v3122 = vunpack.c.l.b16 %v1553
        %v3123 = vunpack.c.l.b16 %v1554
        %v3124 = vunpack.c.l.b16 %v1555
        %v3125 = vunpack.c.l.b16 %v1556
        %v3126 = vunpack.c.l.b16 %v1557
        %v3127 = vunpack.c.l.b16 %v1558
        %v3128 = vunpack.c.l.b16 %v1559
        %v3129 = vunpack.c.l.b16 %v1560
        %v3130 = vunpack.c.l.b16 %v1561
        %v3131 = vunpack.c.l.b16 %v1562
        %v3132 = vunpack.c.l.b16 %v1563
        %v3133 = vunpack.c.l.b16 %v1564
        %v3134 = vunpack.c.l.b16 %v1565
        %v3135 = vunpack.c.l.b16 %v1566
        %v3136 = vunpack.c.l.b16 %v1567
        %v3137 = vunpack.c.l.b16 %v1568
        %v3138 = vunpack.c.l.b16 %v1569
        %v3139 = vunpack.c.l.b16 %v1570
        %v3140 = vunpack.c.l.b16 %v1571
        %v3141 = vunpack.c.l.b16 %v1572
        %v3142 = vunpack.c.l.b16 %v1573
        %v3143 = vunpack.c.l.b16 %v1574
        %v3144 = vunpack.c.l.b16 %v1575
        %v3145 = vunpack.c.l.b16 %v1576
        %v3146 = vunpack.c.l.b16 %v1577
        %v3147 = vunpack.c.l.b16 %v1578
        %v3148 = vunpack.c.l.b16 %v1579
        %v3149 = vunpack.c.l.b16 %v1580
        %v3150 = vunpack.c.l.b16 %v1581
        %v3151 = vunpack.c.l.b16 %v1582
        %v3152 = vunpack.c.l.b16 %v1583
        %v3153 = vunpack.c.l.b16 %v1584
        %v3154 = vunpack.c.l.b16 %v1585
        %v3155 = vunpack.c.l.b16 %v1586
        %v3156 = vunpack.c.l.b16 %v1587
        %v3157 = vunpack.c.l.b16 %v1588
        %v3158 = vunpack.c.l.b16 %v1589
        %v3159 = vunpack.c.l.b16 %v1590
        %v3160 = vunpack.c.l.b16 %v1591
        %v3161 = vunpack.c.l.b16 %v1592
        %v3162 = vunpack.c.l.b16 %v1593
        %v3163 = vunpack.c.l.b16 %v1594
        %v3164 = vunpack.c.l.b16 %v1595
        %v3165 = vunpack.c.l.b16 %v1596
        %v3166 = vunpack.c.l.b16 %v1597
        %v3167 = vunpack.c.l.b16 %v1598
        %v3168 = vunpack.c.l.b16 %v1599
        %v3169 = vunpack.c.l.b16 %v1600
        %v3170 = vunpack.c.l.b16 %v1601
        %v3171 = vunpack.c.l.b16 %v1602
        %v3172 = vunpack.c.l.b16 %v1603
        %v3173 = vunpack.c.l.b16 %v1604
        %v3174 = vunpack.c.l.b16 %v1605
        %v3175 = vunpack.c.l.b16 %v1606
        %v3176 = vunpack.c.l.b16 %v1607
        %v3177 = vunpack.c.l.b16 %v1608
        %v3178 = vunpack.c.l.b16 %v1609
        %v3179 = vunpack.c.l.b16 %v1610
        %v3180 = vunpack.c.l.b16 %v1611
        %v3181 = vunpack.c.l.b16 %v1612
        %v3182 = vunpack.c.l.b16 %v1613
        %v3183 = vunpack.c.l.b16 %v1614
        %v3184 = vunpack.c.l.b16 %v1615
        %v3185 = vunpack.c.l.b16 %v1616
        %v3186 = vunpack.c.l.b16 %v1617
        %v3187 = vunpack.c.l.b16 %v1618
        %v3188 = vunpack.c.l.b16 %v1619
        %v3189 = vunpack.c.l.b16 %v1620
        %v3190 = vunpack.c.l.b16 %v1621
        %v3191 = vunpack.c.l.b16 %v1622
        %v3192 = vunpack.c.l.b16 %v1623
        %v3193 = vunpack.c.l.b16 %v1624
        %v3194 = vunpack.c.l.b16 %v1625
        %v3195 = vunpack.c.l.b16 %v1626
        %v3196 = vunpack.c.l.b16 %v1627
        %v3197 = vunpack.c.l.b16 %v1628
        %v3198 = vunpack.c.l.b16 %v1629
        %v3199 = vunpack.c.l.b16 %v1630
        %v3200 = vunpack.c.l.b16 %v1631
        %v3201 = vunpack.c.l.b16 %v1632
        %v3202 = vunpack.c.l.b16 %v1633
        %v3203 = vunpack.c.l.b16 %v1634
        %v3204 = vunpack.c.l.b16 %v1635
        %v3205 = vunpack.c.l.b16 %v1636
        %v3206 = vunpack.c.l.b16 %v1637
        %v3207 = vunpack.c.l.b16 %v1638
        %v3208 = vunpack.c.l.b16 %v1639
        %v3209 = vunpack.c.l.b16 %v1640
        %v3210 = vunpack.c.l.b16 %v1641
        %v3211 = vunpack.c.l.b16 %v1642
        %v3212 = vunpack.c.l.b16 %v1643
        %v3213 = vunpack.c.l.b16 %v1644
        %v3214 = vunpack.c.l.b16 %v1645
        %v3215 = vunpack.c.l.b16 %v1646
        %v3216 = vunpack.c.l.b16 %v1647
        %v3217 = vunpack.c.l.b16 %v1648
        %v3218 = vunpack.c.l.b16 %v1649
        %v3219 = vunpack.c.l.b16 %v1650
        %v3220 = vunpack.c.l.b16 %v1651
        %v3221 = vunpack.c.l.b16 %v1652
        %v3222 = vunpack.c.l.b16 %v1653
        %v3223 = vunpack.c.l.b16 %v1654
        %v3224 = vunpack.c.l.b16 %v1655
        %v3225 = vunpack.c.l.b16 %v1656
        %v3226 = vunpack.c.l.b16 %v1657
        %v3227 = vunpack.c.l.b16 %v1658
        %v3228 = vunpack.c.l.b16 %v1659
        %v3229 = vunpack.c.l.b16 %v1660
        %v3230 = vunpack.c.l.b16 %v1661
        %v3231 = vunpack.c.l.b16 %v1662
        %v3232 = vunpack.c.l.b16 %v1663
        %v3233 = vunpack.c.l.b16 %v1664
        %v3234 = vunpack.c.l.b16 %v1665
        %v3235 = vunpack.c.l.b16 %v1666
        %v3236 = vunpack.c.l.b16 %v1667
        %v3237 = vunpack.c.l.b16 %v1668
        %v3238 = vunpack.c.l.b16 %v1669
        %v3239 = vunpack.c.l.b16 %v1670
        %v3240 = vunpack.c.l.b16 %v1671
        %v3241 = vunpack.c.l.b16 %v1672
        %v3242 = vunpack.c.l.b16 %v1673
        %v3243 = vunpack.c.l.b16 %v1674
        %v3244 = vunpack.c.l.b16 %v1675
        %v3245 = vunpack.c.l.b16 %v1676
        %v3246 = vunpack.c.l.b16 %v1677
        %v3247 = vunpack.c.l.b16 %v1678
        %v3248 = vunpack.c.l.b16 %v1679
        %v3249 = vunpack.c.l.b16 %v1680
        %v3250 = vunpack.c.l.b16 %v1681
        %v3251 = vunpack.c.l.b16 %v1682
        %v3252 = vunpack.c.l.b16 %v1683
        %v3253 = vunpack.c.l.b16 %v1684
        %v3254 = vunpack.c.l.b16 %v1685
        %v3255 = vunpack.c.l.b16 %v1686
        %v3256 = vunpack.c.l.b16 %v1687
        %v3257 = vunpack.c.l.b16 %v1688
        %v3258 = vunpack.c.l.b16 %v1689
        %v3259 = vunpack.c.l.b16 %v1690
        %v3260 = vunpack.c.l.b16 %v1691
        %v3261 = vunpack.c.l.b16 %v1692
        %v3262 = vunpack.c.l.b16 %v1693
        %v3263 = vunpack.c.l.b16 %v1694
        %v3264 = vunpack.c.l.b16 %v1695
        %v3265 = vunpack.c.l.b16 %v1696
        %v3266 = vunpack.c.l.b16 %v1697
        %v3267 = vunpack.c.l.b16 %v1698
        %v3268 = vunpack.c.l.b16 %v1699
        %v3269 = vunpack.c.l.b16 %v1700
        %v3270 = vunpack.c.l.b16 %v1701
        %v3271 = vunpack.c.l.b16 %v1702
        %v3272 = vunpack.c.l.b16 %v1703
        %v3273 = vunpack.c.l.b16 %v1704
        %v3274 = vunpack.c.l.b16 %v1705
        %v3275 = vunpack.c.l.b16 %v1706
        %v3276 = vunpack.c.l.b16 %v1707
        %v3277 = vunpack.c.l.b16 %v1708
        %v3278 = vunpack.c.l.b16 %v1709
        %v3279 = vunpack.c.l.b16 %v1710
        %v3280 = vunpack.c.l.b16 %v1711
        %v3281 = vunpack.c.l.b16 %v1712
        %v3282 = vunpack.c.l.b16 %v1713
        %v3283 = vunpack.c.l.b16 %v1714
        %v3284 = vunpack.c.l.b16 %v1715
        %v3285 = vunpack.c.l.b16 %v1716
        %v3286 = vunpack.c.l.b16 %v1717
        %v3287 = vunpack.c.l.b16 %v1718
        %v3288 = vunpack.c.l.b16 %v1719
        %v3289 = vunpack.c.l.b16 %v1720
        %v3290 = vunpack.c.l.b16 %v1721
        %v3291 = vunpack.c.l.b16 %v1722
        %v3292 = vunpack.c.l.b16 %v1723
        %v3293 = vunpack.c.l.b16 %v1724
        %v3294 = vunpack.c.l.b16 %v1725
        %v3295 = vunpack.c.l.b16 %v1726
        %v3296 = vunpack.c.l.b16 %v1727
        %v3297 = vunpack.c.l.b16 %v1728
        %v3298 = vunpack.c.l.b16 %v1729
        %v3299 = vunpack.c.l.b16 %v1730
        %v3300 = vunpack.c.l.b16 %v1731
        %v3301 = vunpack.c.l.b16 %v1732
        %v3302 = vunpack.c.l.b16 %v1733
        %v3303 = vunpack.c.l.b16 %v1734
        %v3304 = vunpack.c.l.b16 %v1735
        %v3305 = vunpack.c.l.b16 %v1736
        %v3306 = vunpack.c.l.b16 %v1737
        %v3307 = vunpack.c.l.b16 %v1738
        %v3308 = vunpack.c.l.b16 %v1739
        %v3309 = vunpack.c.l.b16 %v1740
        %v3310 = vunpack.c.l.b16 %v1741
        %v3311 = vunpack.c.l.b16 %v1742
        %v3312 = vunpack.c.l.b16 %v1743
        %v3313 = vunpack.c.l.b16 %v1744
        %v3314 = vunpack.c.l.b16 %v1745
        %v3315 = vunpack.c.l.b16 %v1746
        %v3316 = vunpack.c.l.b16 %v1747
        %v3317 = vunpack.c.l.b16 %v1748
        %v3318 = vunpack.c.l.b16 %v1749
        %v3319 = vunpack.c.l.b16 %v1750
        %v3320 = vunpack.c.l.b16 %v1751
        %v3321 = vunpack.c.l.b16 %v1752
        %v3322 = vunpack.c.l.b16 %v1753
        %v3323 = vunpack.c.l.b16 %v1754
        %v3324 = vunpack.c.l.b16 %v1755
        %v3325 = vunpack.c.l.b16 %v1756
        %v3326 = vunpack.c.l.b16 %v1757
        %v3327 = vunpack.c.l.b16 %v1758
        %v3328 = vunpack.c.l.b16 %v1759
        %v3329 = vunpack.c.l.b16 %v1760
        %v3330 = vunpack.c.l.b16 %v1761
        %v3331 = vunpack.c.l.b16 %v1762
        %v3332 = vunpack.c.l.b16 %v1763
        %v3333 = vunpack.c.l.b16 %v1764
        %v3334 = vunpack.c.l.b16 %v1765
        %v3335 = vunpack.c.l.b16 %v1766
        %v3336 = vunpack.c.l.b16 %v1767
        %v3337 = vunpack.c.l.b16 %v1768
        %v3338 = vunpack.c.l.b16 %v1769
        %v3339 = vunpack.c.l.b16 %v1770
        %v3340 = vunpack.c.l.b16 %v1771
        %v3341 = vunpack.c.l.b16 %v1772
        %v3342 = vunpack.c.l.b16 %v1773
        %v3343 = vunpack.c.l.b16 %v1774
        %v3344 = vunpack.c.l.b16 %v1775
        %v3345 = vunpack.c.l.b16 %v1776
        %v3346 = vunpack.c.l.b16 %v1777
        %v3347 = vunpack.c.l.b16 %v1778
        %v3348 = vunpack.c.l.b16 %v1779
        %v3349 = vunpack.c.l.b16 %v1780
        %v3350 = vunpack.c.l.b16 %v1781
        %v3351 = vunpack.c.l.b16 %v1782
        %v3352 = vunpack.c.l.b16 %v1783
        %v3353 = vunpack.c.l.b16 %v1784
        %v3354 = vunpack.c.l.b16 %v1785
        %v3355 = vunpack.c.l.b16 %v1786
        %v3356 = vunpack.c.l.b16 %v1787
        %v3357 = vunpack.c.l.b16 %v1788
        %v3358 = vunpack.c.l.b16 %v1789
        %v3359 = vunpack.c.l.b16 %v1790
        %v3360 = vunpack.c.l.b16 %v1791
        %v3361 = vunpack.c.l.b16 %v1792
        %v3362 = vunpack.c.l.b16 %v1793
        %v3363 = vunpack.c.l.b16 %v1794
        %v3364 = vunpack.c.l.b16 %v1795
        %v3365 = vunpack.c.l.b16 %v1796
        %v3366 = vunpack.c.l.b16 %v1797
        %v3367 = vunpack.c.l.b16 %v1798
        %v3368 = vunpack.c.l.b16 %v1799
        %v3369 = vunpack.c.l.b16 %v1800
        %v3370 = vunpack.c.l.b16 %v1801
        %v3371 = vunpack.c.l.b16 %v1802
        %v3372 = vunpack.c.l.b16 %v1803
        %v3373 = vunpack.c.l.b16 %v1804
        %v3374 = vunpack.c.l.b16 %v1805
        %v3375 = vunpack.c.l.b16 %v1806
        %v3376 = vunpack.c.l.b16 %v1807
        %v3377 = vunpack.c.l.b16 %v1808
        %v3378 = vunpack.c.l.b16 %v1809
        %v3379 = vunpack.c.l.b16 %v1810
        %v3380 = vunpack.c.l.b16 %v1811
        %v3381 = vunpack.c.l.b16 %v1812
        %v3382 = vunpack.c.l.b16 %v1813
        %v3383 = vunpack.c.l.b16 %v1814
        %v3384 = vunpack.c.l.b16 %v1815
        %v3385 = vunpack.c.l.b16 %v1816
        %v3386 = vunpack.c.l.b16 %v1817
        %v3387 = vunpack.c.l.b16 %v1818
        %v3388 = vunpack.c.l.b16 %v1819
        %v3389 = vunpack.c.l.b16 %v1820
        %v3390 = vunpack.c.l.b16 %v1821
        %v3391 = vunpack.c.l.b16 %v1822
        %v3392 = vunpack.c.l.b16 %v1823
        %v3393 = vunpack.c.l.b16 %v1824
        %v3394 = vunpack.c.l.b16 %v1825
        %v3395 = vunpack.c.l.b16 %v1826
        %v3396 = vunpack.c.l.b16 %v1827
        %v3397 = vunpack.c.l.b16 %v1828
        %v3398 = vunpack.c.l.b16 %v1829
        %v3399 = vunpack.c.l.b16 %v1830
        %v3400 = vunpack.c.l.b16 %v1831
        %v3401 = vunpack.c.l.b16 %v1832
        %v3402 = vunpack.c.l.b16 %v1833
        %v3403 = vunpack.c.l.b16 %v1834
        %v3404 = vunpack.c.l.b16 %v1835
        %v3405 = vunpack.c.l.b16 %v1836
        %v3406 = vunpack.c.l.b16 %v1837
        %v3407 = vunpack.c.l.b16 %v1838
        %v3408 = vunpack.c.l.b16 %v1839
        %v3409 = vunpack.c.l.b16 %v1840
        %v3410 = vunpack.c.l.b16 %v1841
        %v3411 = vunpack.c.l.b16 %v1842
        %v3412 = vunpack.c.l.b16 %v1843
        %v3413 = vunpack.c.l.b16 %v1844
        %v3414 = vunpack.c.l.b16 %v1845
        %v3415 = vunpack.c.l.b16 %v1846
        %v3416 = vunpack.c.l.b16 %v1847
        %v3417 = vunpack.c.l.b16 %v1848
        %v3418 = vunpack.c.l.b16 %v1849
        %v3419 = vunpack.c.l.b16 %v1850
        %v3420 = vunpack.c.l.b16 %v1851
        %v3421 = vunpack.c.l.b16 %v1852
        %v3422 = vunpack.c.l.b16 %v1853
        %v3423 = vunpack.c.l.b16 %v1854
        %v3424 = vunpack.c.l.b16 %v1855
        %v3425 = vunpack.c.l.b16 %v1856
        %v3426 = vunpack.c.l.b16 %v1857
        %v3427 = vunpack.c.l.b16 %v1858
        %v3428 = vunpack.c.l.b16 %v1859
        %v3429 = vunpack.c.l.b16 %v1860
        %v3430 = vunpack.c.l.b16 %v1861
        %v3431 = vunpack.c.l.b16 %v1862
        %v3432 = vunpack.c.l.b16 %v1863
        %v3433 = vunpack.c.l.b16 %v1864
        %v3434 = vunpack.c.l.b16 %v1865
        %v3435 = vunpack.c.l.b16 %v1866
        %v3436 = vunpack.c.l.b16 %v1867
        %v3437 = vunpack.c.l.b16 %v1868
        %v3438 = vunpack.c.l.b16 %v1869
        %v3439 = vunpack.c.l.b16 %v1870
        %v3440 = vunpack.c.l.b16 %v1871
        %v3441 = vunpack.c.l.b16 %v1872
        %v3442 = vunpack.c.l.b16 %v1873
        %v3443 = vunpack.c.l.b16 %v1874
        %v3444 = vunpack.c.l.b16 %v1875
        %v3445 = vunpack.c.l.b16 %v1876
        %v3446 = vunpack.c.l.b16 %v1877
        %v3447 = vunpack.c.l.b16 %v1878
        %v3448 = vunpack.c.l.b16 %v1879
        %v3449 = vunpack.c.l.b16 %v1880
        %v3450 = vunpack.c.l.b16 %v1881
        %v3451 = vunpack.c.l.b16 %v1882
        %v3452 = vunpack.c.l.b16 %v1883
        %v3453 = vunpack.c.l.b16 %v1884
        %v3454 = vunpack.c.l.b16 %v1885
        %v3455 = vunpack.c.l.b16 %v1886
        %v3456 = vunpack.c.l.b16 %v1887
        %v3457 = vunpack.c.l.b16 %v1888
        %v3458 = vunpack.c.l.b16 %v1889
        %v3459 = vunpack.c.l.b16 %v1890
        %v3460 = vunpack.c.l.b16 %v1891
        %v3461 = vunpack.c.l.b16 %v1892
        %v3462 = vunpack.c.l.b16 %v1893
        %v3463 = vunpack.c.l.b16 %v1894
        %v3464 = vunpack.c.l.b16 %v1895
        %v3465 = vunpack.c.l.b16 %v1896
        %v3466 = vunpack.c.l.b16 %v1897
        %v3467 = vunpack.c.l.b16 %v1898
        %v3468 = vunpack.c.l.b16 %v1899
        %v3469 = vunpack.c.l.b16 %v1900
        %v3470 = vunpack.c.l.b16 %v1901
        %v3471 = vunpack.c.l.b16 %v1902
        %v3472 = vunpack.c.l.b16 %v1903
        %v3473 = vunpack.c.l.b16 %v1904
        %v3474 = vunpack.c.l.b16 %v1905
        %v3475 = vunpack.c.l.b16 %v1906
        %v3476 = vunpack.c.l.b16 %v1907
        %v3477 = vunpack.c.l.b16 %v1908
        %v3478 = vunpack.c.l.b16 %v1909
        %v3479 = vunpack.c.l.b16 %v1910
        %v3480 = vunpack.c.l.b16 %v1911
        %v3481 = vunpack.c.l.b16 %v1912
        %v3482 = vunpack.c.l.b16 %v1913
        %v3483 = vunpack.c.l.b16 %v1914
        %v3484 = vunpack.c.l.b16 %v1915
        %v3485 = vunpack.c.l.b16 %v1916
        %v3486 = vunpack.c.l.b16 %v1917
        %v3487 = vunpack.c.l.b16 %v1918
        %v3488 = vunpack.c.l.b16 %v1919
        %v3489 = vunpack.c.l.b16 %v1920
        %v3490 = vunpack.c.l.b16 %v1921
        %v3491 = vunpack.c.l.b16 %v1922
        %v3492 = vunpack.c.l.b16 %v1923
        %v3493 = vunpack.c.l.b16 %v1924
        %v3494 = vunpack.c.l.b16 %v1925
        %v3495 = vunpack.c.l.b16 %v1926
        %v3496 = vunpack.c.l.b16 %v1927
        %v3497 = vunpack.c.l.b16 %v1928
        %v3498 = vunpack.c.l.b16 %v1929
        %v3499 = vunpack.c.l.b16 %v1930
        %v3500 = vunpack.c.l.b16 %v1931
        %v3501 = vunpack.c.l.b16 %v1932
        %v3502 = vunpack.c.l.b16 %v1933
        %v3503 = vunpack.c.l.b16 %v1934
        %v3504 = vunpack.c.l.b16 %v1935
        %v3505 = vunpack.c.l.b16 %v1936
        %v3506 = vunpack.c.l.b16 %v1937
        %v3507 = vunpack.c.l.b16 %v1938
        %v3508 = vunpack.c.l.b16 %v1939
        %v3509 = vunpack.c.l.b16 %v1940
        %v3510 = vunpack.c.l.b16 %v1941
        %v3511 = vunpack.c.l.b16 %v1942
        %v3512 = vunpack.c.l.b16 %v1943
        %v3513 = vunpack.c.l.b16 %v1944
        %v3514 = vunpack.c.l.b16 %v1945
        %v3515 = vunpack.c.l.b16 %v1946
        %v3516 = vunpack.c.l.b16 %v1947
        %v3517 = vunpack.c.l.b16 %v1948
        %v3518 = vunpack.c.l.b16 %v1949
        %v3519 = vunpack.c.l.b16 %v1950
        %v3520 = vunpack.c.l.b16 %v1951
        %v3521 = vunpack.c.l.b16 %v1952
        %v3522 = vunpack.c.l.b16 %v1953
        %v3523 = vunpack.c.l.b16 %v1954
        %v3524 = vunpack.c.l.b16 %v1955
        %v3525 = vunpack.c.l.b16 %v1956
        %v3526 = vunpack.c.l.b16 %v1957
        %v3527 = vunpack.c.l.b16 %v1958
        %v3528 = vunpack.c.l.b16 %v1959
        %v3529 = vunpack.c.l.b16 %v1960
        %v3530 = vunpack.c.l.b16 %v1961
        %v3531 = vunpack.c.l.b16 %v1962
        %v3532 = vunpack.c.l.b16 %v1963
        %v3533 = vunpack.c.l.b16 %v1964
        %v3534 = vunpack.c.l.b16 %v1965
        %v3535 = vunpack.c.l.b16 %v1966
        %v3536 = vunpack.c.l.b16 %v1967
        %v3537 = vunpack.c.l.b16 %v1968
        %v3538 = vunpack.c.l.b16 %v1969
        %v3539 = vunpack.c.l.b16 %v1970
        %v3540 = vunpack.c.l.b16 %v1971
        %v3541 = vunpack.c.l.b16 %v1972
        %v3542 = vunpack.c.l.b16 %v1973
        %v3543 = vunpack.c.l.b16 %v1974
        %v3544 = vunpack.c.l.b16 %v1975
        %v3545 = vunpack.c.l.b16 %v1976
        %v3546 = vunpack.c.l.b16 %v1977
        %v3547 = vunpack.c.l.b16 %v1978
        %v3548 = vunpack.c.l.b16 %v1979
        %v3549 = vunpack.c.l.b16 %v1980
        %v3550 = vunpack.c.l.b16 %v1981
        %v3551 = vunpack.c.l.b16 %v1982
        %v3552 = vunpack.c.l.b16 %v1983
        %v3553 = vunpack.c.l.b16 %v1984
        %v3554 = vunpack.c.l.b16 %v1985
        %v3555 = vunpack.c.l.b16 %v1986
        %v3556 = vunpack.c.l.b16 %v1987
        %v3557 = vunpack.c.l.b16 %v1988
        %v3558 = vunpack.c.l.b16 %v1989
        %v3559 = vunpack.c.l.b16 %v1990
        %v3560 = vunpack.c.l.b16 %v1991
        %v3561 = vunpack.c.l.b16 %v1992
        %v3562 = vunpack.c.l.b16 %v1993
        %v3563 = vunpack.c.l.b16 %v1994
        %v3564 = vunpack.c.l.b16 %v1995
        %v3565 = vunpack.c.l.b16 %v1996
        %v3566 = vunpack.c.l.b16 %v1997
        %v3567 = vunpack.c.l.b16 %v1998
        %v3568 = vunpack.c.l.b16 %v1999
        %v3569 = vunpack.c.l.b16 %v2000
        %v3570 = vunpack.c.l.b16 %v2001
        %v3571 = vunpack.c.l.b16 %v2002
        %v3572 = vunpack.c.l.b16 %v2003
        %v3573 = vunpack.c.l.b16 %v2004
        %v3574 = vunpack.c.l.b16 %v2005
        %v3575 = vunpack.c.l.b16 %v2006
        %v3576 = vunpack.c.l.b16 %v2007
        %v3577 = vunpack.c.l.b16 %v2008
        %v3578 = vunpack.c.l.b16 %v2009
        %v3579 = vunpack.c.l.b16 %v2010
        %v3580 = vunpack.c.l.b16 %v2011
        %v3581 = vunpack.c.l.b16 %v2012
        %v3582 = vunpack.c.l.b16 %v2013
        %v3583 = vunpack.c.l.b16 %v2014
        %v3584 = vunpack.c.l.b16 %v2015
        %v3585 = vunpack.c.l.b16 %v2016
        %v3586 = vunpack.c.l.b16 %v2017
        %v3587 = vunpack.c.l.b16 %v2018
        %v3588 = vunpack.c.l.b16 %v2019
        %v3589 = vunpack.c.l.b16 %v2020
        %v3590 = vunpack.c.l.b16 %v2021
        %v3591 = vunpack.c.l.b16 %v2022
        %v3592 = vunpack.c.l.b16 %v2023
        %v3593 = vunpack.c.l.b16 %v2024
        %v3594 = vunpack.c.l.b16 %v2025
        %v3595 = vunpack.c.l.b16 %v2026
        %v3596 = vunpack.c.l.b16 %v2027
        %v3597 = vunpack.c.l.b16 %v2028
        %v3598 = vunpack.c.l.b16 %v2029
        %v3599 = vunpack.c.l.b16 %v2030
        %v3600 = vunpack.c.l.b16 %v2031
        %v3601 = vunpack.c.l.b16 %v2032
        %v3602 = vunpack.c.l.b16 %v2033
        %v3603 = vunpack.c.l.b16 %v2034
        %v3604 = vunpack.c.l.b16 %v2035
        %v3605 = vunpack.c.l.b16 %v2036
        %v3606 = vunpack.c.l.b16 %v2037
        %v3607 = vunpack.c.l.b16 %v2038
        %v3608 = vunpack.c.l.b16 %v2039
        %v3609 = vunpack.c.l.b16 %v2040
        %v3610 = vunpack.c.l.b16 %v2041
        %v3611 = vunpack.c.l.b16 %v2042
        %v3612 = vunpack.c.l.b16 %v2043
        %v3613 = vunpack.c.l.b16 %v2044
        %v3614 = vunpack.c.l.b16 %v2045
        %v3615 = vunpack.c.l.b16 %v2046
        %v3616 = vunpack.c.l.b16 %v2047
        %v3617 = vunpack.c.l.b16 %v2048
        %v3618 = vunpack.c.l.b16 %v2049
        %v3619 = vunpack.c.l.b16 %v2050
        %v3620 = vunpack.c.l.b16 %v2051
        %v3621 = vunpack.c.l.b16 %v2052
        %v3622 = vunpack.c.l.b16 %v2053
        %v3623 = vunpack.c.l.b16 %v2054
        %v3624 = vunpack.c.l.b16 %v2055
        %v3625 = vunpack.c.l.b16 %v2056
        %v3626 = vunpack.c.l.b16 %v2057
        %v3627 = vunpack.c.l.b16 %v2058
        %v3628 = vunpack.c.l.b16 %v2059
        %v3629 = vunpack.c.l.b16 %v2060
        %v3630 = vunpack.c.l.b16 %v2061
        %v3631 = vunpack.c.l.b16 %v2062
        %v3632 = vunpack.c.l.b16 %v2063
        %v3633 = vunpack.c.l.b16 %v2064
        %v3634 = vunpack.c.l.b16 %v2065
        %v3635 = vunpack.c.l.b16 %v2066
        %v3636 = vunpack.c.l.b16 %v2067
        %v3637 = vunpack.c.l.b16 %v2068
        %v3638 = vunpack.c.l.b16 %v2069
        %v3639 = vunpack.c.l.b16 %v2070
        %v3640 = vunpack.c.l.b16 %v2071
        %v3641 = vunpack.c.l.b16 %v2072
        %v3642 = vunpack.c.l.b16 %v2073
        %v3643 = vunpack.c.l.b16 %v2074
        %v3644 = vunpack.c.l.b16 %v2075
        %v3645 = vunpack.c.l.b16 %v2076
        %v3646 = vunpack.c.l.b16 %v2077
        %v3647 = vunpack.c.l.b16 %v2078
        %v3648 = vunpack.c.l.b16 %v2079
        %v3649 = vunpack.c.l.b16 %v2080
        %v3650 = vunpack.c.l.b16 %v2081
        %v3651 = vunpack.c.l.b16 %v2082
        %v3652 = vunpack.c.l.b16 %v2083
        %v3653 = vunpack.c.l.b16 %v2084
        %v3654 = vunpack.c.l.b16 %v2085
        %v3655 = vunpack.c.l.b16 %v2086
        %v3656 = vunpack.c.l.b16 %v2087
        %v3657 = vunpack.c.l.b16 %v2088
        %v3658 = vunpack.c.l.b16 %v2089
        %v3659 = vunpack.c.l.b16 %v2090
        %v3660 = vunpack.c.l.b16 %v2091
        %v3661 = vunpack.c.l.b16 %v2092
        %v3662 = vunpack.c.l.b16 %v2093
        %v3663 = vunpack.c.l.b16 %v2094
        %v3664 = vunpack.c.l.b16 %v2095
        %v3665 = vunpack.c.l.b16 %v2096
        %v3666 = vunpack.c.l.b16 %v2097
        %v3667 = vunpack.c.l.b16 %v2098
        %v3668 = vunpack.c.l.b16 %v2099
        %v3669 = vunpack.c.l.b16 %v2100
        %v3670 = vunpack.c.l.b16 %v2101
        %v3671 = vunpack.c.l.b16 %v2102
        %v3672 = vunpack.c.l.b16 %v2103
        %v3673 = vunpack.c.l.b16 %v2104
        %v3674 = vunpack.c.l.b16 %v2105
        %v3675 = vunpack.c.l.b16 %v2106
        %v3676 = vunpack.c.l.b16 %v2107
        %v3677 = vunpack.c.l.b16 %v2108
        %v3678 = vunpack.c.l.b16 %v2109
        %v3679 = vunpack.c.l.b16 %v2110
        %v3680 = vunpack.c.l.b16 %v2111
        %v3681 = vunpack.c.l.b16 %v2112
        %v3682 = vunpack.c.l.b16 %v2113
        %v3683 = vunpack.c.l.b16 %v2114
        %v3684 = vunpack.c.l.b16 %v2115
        %v3685 = vunpack.c.l.b16 %v2116
        %v3686 = vunpack.c.l.b16 %v2117
        %v3687 = vunpack.c.l.b16 %v2118
        %v3688 = vunpack.c.l.b16 %v2119
        %v3689 = vunpack.c.l.b16 %v2120
        %v3690 = vunpack.c.l.b16 %v2121
        %v3691 = vunpack.c.l.b16 %v2122
        %v3692 = vunpack.c.l.b16 %v2123
        %v3693 = vunpack.c.l.b16 %v2124
        %v3694 = vunpack.c.l.b16 %v2125
        %v3695 = vunpack.c.l.b16 %v2126
        %v3696 = vunpack.c.l.b16 %v2127
        %v3697 = vunpack.c.l.b16 %v2128
        %v3698 = vunpack.c.l.b16 %v2129
        %v3699 = vunpack.c.l.b16 %v2130
        %v3700 = vunpack.c.l.b16 %v2131
        %v3701 = vunpack.c.l.b16 %v2132
        %v3702 = vunpack.c.l.b16 %v2133
        %v3703 = vunpack.c.l.b16 %v2134
        %v3704 = vunpack.c.l.b16 %v2135
        %v3705 = vunpack.c.l.b16 %v2136
        %v3706 = vunpack.c.l.b16 %v2137
        %v3707 = vunpack.c.l.b16 %v2138
        %v3708 = vunpack.c.l.b16 %v2139
        %v3709 = vunpack.c.l.b16 %v2140
        %v3710 = vunpack.c.l.b16 %v2141
        %v3711 = vunpack.c.l.b16 %v2142
        %v3712 = vunpack.c.l.b16 %v2143
        %v3713 = vunpack.c.l.b16 %v2144
        %v3714 = vunpack.c.l.b16 %v2145
        %v3715 = vunpack.c.l.b16 %v2146
        %v3716 = vunpack.c.l.b16 %v2147
        %v3717 = vunpack.c.l.b16 %v2148
        %v3718 = vunpack.c.l.b16 %v2149
        %v3719 = vunpack.c.l.b16 %v2150
        %v3720 = vunpack.c.l.b16 %v2151
        %v3721 = vunpack.c.l.b16 %v2152
        %v3722 = vunpack.c.l.b16 %v2153
        %v3723 = vunpack.c.l.b16 %v2154
        %v3724 = vunpack.c.l.b16 %v2155
        %v3725 = vunpack.c.l.b16 %v2156
        %v3726 = vunpack.c.l.b16 %v2157
        %v3727 = vunpack.c.l.b16 %v2158
        %v3728 = vunpack.c.l.b16 %v2159
        %v3729 = vunpack.c.l.b16 %v2160
        %v3730 = vunpack.c.l.b16 %v2161
        %v3731 = vunpack.c.l.b16 %v2162
        %v3732 = vunpack.c.l.b16 %v2163
        %v3733 = vunpack.c.l.b16 %v2164
        %v3734 = vunpack.c.l.b16 %v2165
        %v3735 = vunpack.c.l.b16 %v2166
        %v3736 = vunpack.c.l.b16 %v2167
        %v3737 = vunpack.c.l.b16 %v2168
        %v3738 = vunpack.c.l.b16 %v2169
        %v3739 = vunpack.c.l.b16 %v2170
        %v3740 = vunpack.c.l.b16 %v2171
        %v3741 = vunpack.c.l.b16 %v2172
        %v3742 = vunpack.c.l.b16 %v2173
        %v3743 = vunpack.c.l.b16 %v2174
        %v3744 = vunpack.c.l.b16 %v2175
        %v3745 = vunpack.c.l.b16 %v2176
        %v3746 = vunpack.c.l.b16 %v2177
        %v3747 = vunpack.c.l.b16 %v2178
        %v3748 = vunpack.c.l.b16 %v2179
        %v3749 = vunpack.c.l.b16 %v2180
        %v3750 = vunpack.c.l.b16 %v2181
        %v3751 = vunpack.c.l.b16 %v2182
        %v3752 = vunpack.c.l.b16 %v2183
        %v3753 = vunpack.c.l.b16 %v2184
        %v3754 = vunpack.c.l.b16 %v2185
        %v3755 = vunpack.c.l.b16 %v2186
        %v3756 = vunpack.c.l.b16 %v2187
        %v3757 = vunpack.c.l.b16 %v2188
        %v3758 = vunpack.c.l.b16 %v2189
        %v3759 = vunpack.c.l.b16 %v2190
        %v3760 = vunpack.c.l.b16 %v2191
        %v3761 = vunpack.c.l.b16 %v2192
        %v3762 = vunpack.c.l.b16 %v2193
        %v3763 = vunpack.c.l.b16 %v2194
        %v3764 = vunpack.c.l.b16 %v2195
        %v3765 = vunpack.c.l.b16 %v2196
        %v3766 = vunpack.c.l.b16 %v2197
        %v3767 = vunpack.c.l.b16 %v2198
        %v3768 = vunpack.c.l.b16 %v2199
        %v3769 = vunpack.c.l.b16 %v2200
        %v3770 = vunpack.c.l.b16 %v2201
        %v3771 = vunpack.c.l.b16 %v2202
        %v3772 = vunpack.c.l.b16 %v2203
        %v3773 = vunpack.c.l.b16 %v2204
        %v3774 = vunpack.c.l.b16 %v2205
        %v3775 = vunpack.c.l.b16 %v2206
        %v3776 = vunpack.c.l.b16 %v2207
        %v3777 = vunpack.c.l.b16 %v2208
        %v3778 = vunpack.c.l.b16 %v2209
        %v3779 = vunpack.c.l.b16 %v2210
        %v3780 = vunpack.c.l.b16 %v2211
        %v3781 = vunpack.c.l.b16 %v2212
        %v3782 = vunpack.c.l.b16 %v2213
        %v3783 = vunpack.c.l.b16 %v2214
        %v3784 = vunpack.c.l.b16 %v2215
        %v3785 = vunpack.c.l.b16 %v2216
        %v3786 = vunpack.c.l.b16 %v2217
        %v3787 = vunpack.c.l.b16 %v2218
        %v3788 = vunpack.c.l.b16 %v2219
        %v3789 = vunpack.c.l.b16 %v2220
        %v3790 = vunpack.c.l.b16 %v2221
        %v3791 = vunpack.c.l.b16 %v2222
        %v3792 = vunpack.c.l.b16 %v2223
        %v3793 = vunpack.c.l.b16 %v2224
        %v3794 = vunpack.c.l.b16 %v2225
        %v3795 = vunpack.c.l.b16 %v2226
        %v3796 = vunpack.c.l.b16 %v2227
        %v3797 = vunpack.c.l.b16 %v2228
        %v3798 = vunpack.c.l.b16 %v2229
        %v3799 = vunpack.c.l.b16 %v2230
        %v3800 = vunpack.c.l.b16 %v2231
        %v3801 = vunpack.c.l.b16 %v2232
        %v3802 = vunpack.c.l.b16 %v2233
        %v3803 = vunpack.c.l.b16 %v2234
        %v3804 = vunpack.c.l.b16 %v2235
        %v3805 = vunpack.c.l.b16 %v2236
        %v3806 = vunpack.c.l.b16 %v2237
        %v3807 = vunpack.c.l.b16 %v2238
        %v3808 = vunpack.c.l.b16 %v2239
        %v3809 = vunpack.c.l.b16 %v2240
        %v3810 = vunpack.c.l.b16 %v2241
        %v3811 = vunpack.c.l.b16 %v2242
        %v3812 = vunpack.c.l.b16 %v2243
        %v3813 = vunpack.c.l.b16 %v2244
        %v3814 = vunpack.c.l.b16 %v2245
        %v3815 = vunpack.c.l.b16 %v2246
        %v3816 = vunpack.c.l.b16 %v2247
        %v3817 = vunpack.c.l.b16 %v2248
        %v3818 = vunpack.c.l.b16 %v2249
        %v3819 = vunpack.c.l.b16 %v2250
        %v3820 = vunpack.c.l.b16 %v2251
        %v3821 = vunpack.c.l.b16 %v2252
        %v3822 = vunpack.c.l.b16 %v2253
        %v3823 = vunpack.c.l.b16 %v2254
        %v3824 = vunpack.c.l.b16 %v2255
        %v3825 = vunpack.c.l.b16 %v2256
        %v3826 = vunpack.c.l.b16 %v2257
        %v3827 = vunpack.c.l.b16 %v2258
        %v3828 = vunpack.c.l.b16 %v2259
        %v3829 = vunpack.c.l.b16 %v2260
        %v3830 = vpack.c.b16 %v3047, %v3046
        %v3831 = vpack.c.b16 %v3049, %v3048
        %v3832 = vpack.c.b16 %v3051, %v3050
        %v3833 = vpack.c.b16 %v3053, %v3052
        %v3834 = vpack.c.b16 %v3055, %v3054
        %v3835 = vpack.c.b16 %v3057, %v3056
        %v3836 = vpack.c.b16 %v3059, %v3058
        %v3837 = vpack.c.b16 %v3061, %v3060
        %v3838 = vpack.c.b16 %v3063, %v3062
        %v3839 = vpack.c.b16 %v3065, %v3064
        %v3840 = vpack.c.b16 %v3067, %v3066
        %v3841 = vpack.c.b16 %v3069, %v3068
        %v3842 = vpack.c.b16 %v3071, %v3070
        %v3843 = vpack.c.b16 %v3073, %v3072
        %v3844 = vpack.c.b16 %v3075, %v3074
        %v3845 = vpack.c.b16 %v3077, %v3076
        %v3846 = vpack.c.b16 %v3079, %v3078
        %v3847 = vpack.c.b16 %v3081, %v3080
        %v3848 = vpack.c.b16 %v3083, %v3082
        %v3849 = vpack.c.b16 %v3085, %v3084
        %v3850 = vpack.c.b16 %v3087, %v3086
        %v3851 = vpack.c.b16 %v3089, %v3088
        %v3852 = vpack.c.b16 %v3091, %v3090
        %v3853 = vpack.c.b16 %v3093, %v3092
        %v3854 = vpack.c.b16 %v3095, %v3094
        %v3855 = vpack.c.b16 %v3097, %v3096
        %v3856 = vpack.c.b16 %v3099, %v3098
        %v3857 = vpack.c.b16 %v3101, %v3100
        %v3858 = vpack.c.b16 %v3103, %v3102
        %v3859 = vpack.c.b16 %v3105, %v3104
        %v3860 = vpack.c.b16 %v3107, %v3106
        %v3861 = vpack.c.b16 %v3109, %v3108
        %v3862 = vpack.c.b16 %v3111, %v3110
        %v3863 = vpack.c.b16 %v3113, %v3112
        %v3864 = vpack.c.b16 %v3115, %v3114
        %v3865 = vpack.c.b16 %v3117, %v3116
        %v3866 = vpack.c.b16 %v3119, %v3118
        %v3867 = vpack.c.b16 %v3121, %v3120
        %v3868 = vpack.c.b16 %v3123, %v3122
        %v3869 = vpack.c.b16 %v3125, %v3124
        %v3870 = vpack.c.b16 %v3127, %v3126
        %v3871 = vpack.c.b16 %v3129, %v3128
        %v3872 = vpack.c.b16 %v3131, %v3130
        %v3873 = vpack.c.b16 %v3133, %v3132
        %v3874 = vpack.c.b16 %v3135, %v3134
        %v3875 = vpack.c.b16 %v3137, %v3136
        %v3876 = vpack.c.b16 %v3139, %v3138
        %v3877 = vpack.c.b16 %v3141, %v3140
        %v3878 = vpack.c.b16 %v3143, %v3142
        %v3879 = vpack.c.b16 %v3145, %v3144
        %v3880 = vpack.c.b16 %v3147, %v3146
        %v3881 = vpack.c.b16 %v3149, %v3148
        %v3882 = vpack.c.b16 %v3151, %v3150
        %v3883 = vpack.c.b16 %v3153, %v3152
        %v3884 = vpack.c.b16 %v3155, %v3154
        %v3885 = vpack.c.b16 %v3157, %v3156
        %v3886 = vpack.c.b16 %v3159, %v3158
        %v3887 = vpack.c.b16 %v3161, %v3160
        %v3888 = vpack.c.b16 %v3163, %v3162
        %v3889 = vpack.c.b16 %v3165, %v3164
        %v3890 = vpack.c.b16 %v3167, %v3166
        %v3891 = vpack.c.b16 %v3169, %v3168
        %v3892 = vpack.c.b16 %v3171, %v3170
        %v3893 = vpack.c.b16 %v3173, %v3172
        %v3894 = vpack.c.b16 %v3175, %v3174
        %v3895 = vpack.c.b16 %v3177, %v3176
        %v3896 = vpack.c.b16 %v3179, %v3178
        %v3897 = vpack.c.b16 %v3181, %v3180
        %v3898 = vpack.c.b16 %v3183, %v3182
        %v3899 = vpack.c.b16 %v3185, %v3184
        %v3900 = vpack.c.b16 %v3187, %v3186
        %v3901 = vpack.c.b16 %v3189, %v3188
        %v3902 = vpack.c.b16 %v3191, %v3190
        %v3903 = vpack.c.b16 %v3193, %v3192
        %v3904 = vpack.c.b16 %v3195, %v3194
        %v3905 = vpack.c.b16 %v3197, %v3196
        %v3906 = vpack.c.b16 %v3199, %v3198
        %v3907 = vpack.c.b16 %v3201, %v3200
        %v3908 = vpack.c.b16 %v3203, %v3202
        %v3909 = vpack.c.b16 %v3205, %v3204
        %v3910 = vpack.c.b16 %v3207, %v3206
        %v3911 = vpack.c.b16 %v3209, %v3208
        %v3912 = vpack.c.b16 %v3211, %v3210
        %v3913 = vpack.c.b16 %v3213, %v3212
        %v3914 = vpack.c.b16 %v3215, %v3214
        %v3915 = vpack.c.b16 %v3217, %v3216
        %v3916 = vpack.c.b16 %v3219, %v3218
        %v3917 = vpack.c.b16 %v3221, %v3220
        %v3918 = vpack.c.b16 %v3223, %v3222
        %v3919 = vpack.c.b16 %v3225, %v3224
        %v3920 = vpack.c.b16 %v3227, %v3226
        %v3921 = vpack.c.b16 %v3229, %v3228
        %v3922 = vpack.c.b16 %v3231, %v3230
        %v3923 = vpack.c.b16 %v3233, %v3232
        %v3924 = vpack.c.b16 %v3235, %v3234
        %v3925 = vpack.c.b16 %v3237, %v3236
        %v3926 = vpack.c.b16 %v3239, %v3238
        %v3927 = vpack.c.b16 %v3241, %v3240
        %v3928 = vpack.c.b16 %v3243, %v3242
        %v3929 = vpack.c.b16 %v3245, %v3244
        %v3930 = vpack.c.b16 %v3247, %v3246
        %v3931 = vpack.c.b16 %v3249, %v3248
        %v3932 = vpack.c.b16 %v3251, %v3250
        %v3933 = vpack.c.b16 %v3253, %v3252
        %v3934 = vpack.c.b16 %v3255, %v3254
        %v3935 = vpack.c.b16 %v3257, %v3256
        %v3936 = vpack.c.b16 %v3259, %v3258
        %v3937 = vpack.c.b16 %v3261, %v3260
        %v3938 = vpack.c.b16 %v3263, %v3262
        %v3939 = vpack.c.b16 %v3265, %v3264
        %v3940 = vpack.c.b16 %v3267, %v3266
        %v3941 = vpack.c.b16 %v3269, %v3268
        %v3942 = vpack.c.b16 %v3271, %v3270
        %v3943 = vpack.c.b16 %v3273, %v3272
        %v3944 = vpack.c.b16 %v3275, %v3274
        %v3945 = vpack.c.b16 %v3277, %v3276
        %v3946 = vpack.c.b16 %v3279, %v3278
        %v3947 = vpack.c.b16 %v3281, %v3280
        %v3948 = vpack.c.b16 %v3283, %v3282
        %v3949 = vpack.c.b16 %v3285, %v3284
        %v3950 = vpack.c.b16 %v3287, %v3286
        %v3951 = vpack.c.b16 %v3289, %v3288
        %v3952 = vpack.c.b16 %v3291, %v3290
        %v3953 = vpack.c.b16 %v3293, %v3292
        %v3954 = vpack.c.b16 %v3295, %v3294
        %v3955 = vpack.c.b16 %v3297, %v3296
        %v3956 = vpack.c.b16 %v3299, %v3298
        %v3957 = vpack.c.b16 %v3301, %v3300
        %v3958 = vpack.c.b16 %v3303, %v3302
        %v3959 = vpack.c.b16 %v3305, %v3304
        %v3960 = vpack.c.b16 %v3307, %v3306
        %v3961 = vpack.c.b16 %v3309, %v3308
        %v3962 = vpack.c.b16 %v3311, %v3310
        %v3963 = vpack.c.b16 %v3313, %v3312
        %v3964 = vpack.c.b16 %v3315, %v3314
        %v3965 = vpack.c.b16 %v3317, %v3316
        %v3966 = vpack.c.b16 %v3319, %v3318
        %v3967 = vpack.c.b16 %v3321, %v3320
        %v3968 = vpack.c.b16 %v3323, %v3322
        %v3969 = vpack.c.b16 %v3325, %v3324
        %v3970 = vpack.c.b16 %v3327, %v3326
        %v3971 = vpack.c.b16 %v3329, %v3328
        %v3972 = vpack.c.b16 %v3331, %v3330
        %v3973 = vpack.c.b16 %v3333, %v3332
        %v3974 = vpack.c.b16 %v3335, %v3334
        %v3975 = vpack.c.b16 %v3337, %v3336
        %v3976 = vpack.c.b16 %v3339, %v3338
        %v3977 = vpack.c.b16 %v3341, %v3340
        %v3978 = vpack.c.b16 %v3343, %v3342
        %v3979 = vpack.c.b16 %v3345, %v3344
        %v3980 = vpack.c.b16 %v3347, %v3346
        %v3981 = vpack.c.b16 %v3349, %v3348
        %v3982 = vpack.c.b16 %v3351, %v3350
        %v3983 = vpack.c.b16 %v3353, %v3352
        %v3984 = vpack.c.b16 %v3355, %v3354
        %v3985 = vpack.c.b16 %v3357, %v3356
        %v3986 = vpack.c.b16 %v3359, %v3358
        %v3987 = vpack.c.b16 %v3361, %v3360
        %v3988 = vpack.c.b16 %v3363, %v3362
        %v3989 = vpack.c.b16 %v3365, %v3364
        %v3990 = vpack.c.b16 %v3367, %v3366
        %v3991 = vpack.c.b16 %v3369, %v3368
        %v3992 = vpack.c.b16 %v3371, %v3370
        %v3993 = vpack.c.b16 %v3373, %v3372
        %v3994 = vpack.c.b16 %v3375, %v3374
        %v3995 = vpack.c.b16 %v3377, %v3376
        %v3996 = vpack.c.b16 %v3379, %v3378
        %v3997 = vpack.c.b16 %v3381, %v3380
        %v3998 = vpack.c.b16 %v3383, %v3382
        %v3999 = vpack.c.b16 %v3385, %v3384
        %v4000 = vpack.c.b16 %v3387, %v3386
        %v4001 = vpack.c.b16 %v3389, %v3388
        %v4002 = vpack.c.b16 %v3391, %v3390
        %v4003 = vpack.c.b16 %v3393, %v3392
        %v4004 = vpack.c.b16 %v3395, %v3394
        %v4005 = vpack.c.b16 %v3397, %v3396
        %v4006 = vpack.c.b16 %v3399, %v3398
        %v4007 = vpack.c.b16 %v3401, %v3400
        %v4008 = vpack.c.b16 %v3403, %v3402
        %v4009 = vpack.c.b16 %v3405, %v3404
        %v4010 = vpack.c.b16 %v3407, %v3406
        %v4011 = vpack.c.b16 %v3409, %v3408
        %v4012 = vpack.c.b16 %v3411, %v3410
        %v4013 = vpack.c.b16 %v3413, %v3412
        %v4014 = vpack.c.b16 %v3415, %v3414
        %v4015 = vpack.c.b16 %v3417, %v3416
        %v4016 = vpack.c.b16 %v3419, %v3418
        %v4017 = vpack.c.b16 %v3421, %v3420
        %v4018 = vpack.c.b16 %v3423, %v3422
        %v4019 = vpack.c.b16 %v3425, %v3424
        %v4020 = vpack.c.b16 %v3427, %v3426
        %v4021 = vpack.c.b16 %v3429, %v3428
        %v4022 = vpack.c.b16 %v3431, %v3430
        %v4023 = vpack.c.b16 %v3433, %v3432
        %v4024 = vpack.c.b16 %v3435, %v3434
        %v4025 = vpack.c.b16 %v3437, %v3436
        %v4026 = vpack.c.b16 %v3439, %v3438
        %v4027 = vpack.c.b16 %v3441, %v3440
        %v4028 = vpack.c.b16 %v3443, %v3442
        %v4029 = vpack.c.b16 %v3445, %v3444
        %v4030 = vpack.c.b16 %v3447, %v3446
        %v4031 = vpack.c.b16 %v3449, %v3448
        %v4032 = vpack.c.b16 %v3451, %v3450
        %v4033 = vpack.c.b16 %v3453, %v3452
        %v4034 = vpack.c.b16 %v3455, %v3454
        %v4035 = vpack.c.b16 %v3457, %v3456
        %v4036 = vpack.c.b16 %v3459, %v3458
        %v4037 = vpack.c.b16 %v3461, %v3460
        %v4038 = vpack.c.b16 %v3463, %v3462
        %v4039 = vpack.c.b16 %v3465, %v3464
        %v4040 = vpack.c.b16 %v3467, %v3466
        %v4041 = vpack.c.b16 %v3469, %v3468
        %v4042 = vpack.c.b16 %v3471, %v3470
        %v4043 = vpack.c.b16 %v3473, %v3472
        %v4044 = vpack.c.b16 %v3475, %v3474
        %v4045 = vpack.c.b16 %v3477, %v3476
        %v4046 = vpack.c.b16 %v3479, %v3478
        %v4047 = vpack.c.b16 %v3481, %v3480
        %v4048 = vpack.c.b16 %v3483, %v3482
        %v4049 = vpack.c.b16 %v3485, %v3484
        %v4050 = vpack.c.b16 %v3487, %v3486
        %v4051 = vpack.c.b16 %v3489, %v3488
        %v4052 = vpack.c.b16 %v3491, %v3490
        %v4053 = vpack.c.b16 %v3493, %v3492
        %v4054 = vpack.c.b16 %v3495, %v3494
        %v4055 = vpack.c.b16 %v3497, %v3496
        %v4056 = vpack.c.b16 %v3499, %v3498
        %v4057 = vpack.c.b16 %v3501, %v3500
        %v4058 = vpack.c.b16 %v3503, %v3502
        %v4059 = vpack.c.b16 %v3505, %v3504
        %v4060 = vpack.c.b16 %v3507, %v3506
        %v4061 = vpack.c.b16 %v3509, %v3508
        %v4062 = vpack.c.b16 %v3511, %v3510
        %v4063 = vpack.c.b16 %v3513, %v3512
        %v4064 = vpack.c.b16 %v3515, %v3514
        %v4065 = vpack.c.b16 %v3517, %v3516
        %v4066 = vpack.c.b16 %v3519, %v3518
        %v4067 = vpack.c.b16 %v3521, %v3520
        %v4068 = vpack.c.b16 %v3523, %v3522
        %v4069 = vpack.c.b16 %v3525, %v3524
        %v4070 = vpack.c.b16 %v3527, %v3526
        %v4071 = vpack.c.b16 %v3529, %v3528
        %v4072 = vpack.c.b16 %v3531, %v3530
        %v4073 = vpack.c.b16 %v3533, %v3532
        %v4074 = vpack.c.b16 %v3535, %v3534
        %v4075 = vpack.c.b16 %v3537, %v3536
        %v4076 = vpack.c.b16 %v3539, %v3538
        %v4077 = vpack.c.b16 %v3541, %v3540
        %v4078 = vpack.c.b16 %v3543, %v3542
        %v4079 = vpack.c.b16 %v3545, %v3544
        %v4080 = vpack.c.b16 %v3547, %v3546
        %v4081 = vpack.c.b16 %v3549, %v3548
        %v4082 = vpack.c.b16 %v3551, %v3550
        %v4083 = vpack.c.b16 %v3553, %v3552
        %v4084 = vpack.c.b16 %v3555, %v3554
        %v4085 = vpack.c.b16 %v3557, %v3556
        %v4086 = vpack.c.b16 %v3559, %v3558
        %v4087 = vpack.c.b16 %v3561, %v3560
        %v4088 = vpack.c.b16 %v3563, %v3562
        %v4089 = vpack.c.b16 %v3565, %v3564
        %v4090 = vpack.c.b16 %v3567, %v3566
        %v4091 = vpack.c.b16 %v3569, %v3568
        %v4092 = vpack.c.b16 %v3571, %v3570
        %v4093 = vpack.c.b16 %v3573, %v3572
        %v4094 = vpack.c.b16 %v3575, %v3574
        %v4095 = vpack.c.b16 %v3577, %v3576
        %v4096 = vpack.c.b16 %v3579, %v3578
        %v4097 = vpack.c.b16 %v3581, %v3580
        %v4098 = vpack.c.b16 %v3583, %v3582
        %v4099 = vpack.c.b16 %v3585, %v3584
        %v4100 = vpack.c.b16 %v3587, %v3586
        %v4101 = vpack.c.b16 %v3589, %v3588
        %v4102 = vpack.c.b16 %v3591, %v3590
        %v4103 = vpack.c.b16 %v3593, %v3592
        %v4104 = vpack.c.b16 %v3595, %v3594
        %v4105 = vpack.c.b16 %v3597, %v3596
        %v4106 = vpack.c.b16 %v3599, %v3598
        %v4107 = vpack.c.b16 %v3601, %v3600
        %v4108 = vpack.c.b16 %v3603, %v3602
        %v4109 = vpack.c.b16 %v3605, %v3604
        %v4110 = vpack.c.b16 %v3607, %v3606
        %v4111 = vpack.c.b16 %v3609, %v3608
        %v4112 = vpack.c.b16 %v3611, %v3610
        %v4113 = vpack.c.b16 %v3613, %v3612
        %v4114 = vpack.c.b16 %v3615, %v3614
        %v4115 = vpack.c.b16 %v3617, %v3616
        %v4116 = vpack.c.b16 %v3619, %v3618
        %v4117 = vpack.c.b16 %v3621, %v3620
        %v4118 = vpack.c.b16 %v3623, %v3622
        %v4119 = vpack.c.b16 %v3625, %v3624
        %v4120 = vpack.c.b16 %v3627, %v3626
        %v4121 = vpack.c.b16 %v3629, %v3628
        %v4122 = vpack.c.b16 %v3631, %v3630
        %v4123 = vpack.c.b16 %v3633, %v3632
        %v4124 = vpack.c.b16 %v3635, %v3634
        %v4125 = vpack.c.b16 %v3637, %v3636
        %v4126 = vpack.c.b16 %v3639, %v3638
        %v4127 = vpack.c.b16 %v3641, %v3640
        %v4128 = vpack.c.b16 %v3643, %v3642
        %v4129 = vpack.c.b16 %v3645, %v3644
        %v4130 = vpack.c.b16 %v3647, %v3646
        %v4131 = vpack.c.b16 %v3649, %v3648
        %v4132 = vpack.c.b16 %v3651, %v3650
        %v4133 = vpack.c.b16 %v3653, %v3652
        %v4134 = vpack.c.b16 %v3655, %v3654
        %v4135 = vpack.c.b16 %v3657, %v3656
        %v4136 = vpack.c.b16 %v3659, %v3658
        %v4137 = vpack.c.b16 %v3661, %v3660
        %v4138 = vpack.c.b16 %v3663, %v3662
        %v4139 = vpack.c.b16 %v3665, %v3664
        %v4140 = vpack.c.b16 %v3667, %v3666
        %v4141 = vpack.c.b16 %v3669, %v3668
        %v4142 = vpack.c.b16 %v3671, %v3670
        %v4143 = vpack.c.b16 %v3673, %v3672
        %v4144 = vpack.c.b16 %v3675, %v3674
        %v4145 = vpack.c.b16 %v3677, %v3676
        %v4146 = vpack.c.b16 %v3679, %v3678
        %v4147 = vpack.c.b16 %v3681, %v3680
        %v4148 = vpack.c.b16 %v3683, %v3682
        %v4149 = vpack.c.b16 %v3685, %v3684
        %v4150 = vpack.c.b16 %v3687, %v3686
        %v4151 = vpack.c.b16 %v3689, %v3688
        %v4152 = vpack.c.b16 %v3691, %v3690
        %v4153 = vpack.c.b16 %v3693, %v3692
        %v4154 = vpack.c.b16 %v3695, %v3694
        %v4155 = vpack.c.b16 %v3697, %v3696
        %v4156 = vpack.c.b16 %v3699, %v3698
        %v4157 = vpack.c.b16 %v3701, %v3700
        %v4158 = vpack.c.b16 %v3703, %v3702
        %v4159 = vpack.c.b16 %v3705, %v3704
        %v4160 = vpack.c.b16 %v3707, %v3706
        %v4161 = vpack.c.b16 %v3709, %v3708
        %v4162 = vpack.c.b16 %v3711, %v3710
        %v4163 = vpack.c.b16 %v3713, %v3712
        %v4164 = vpack.c.b16 %v3715, %v3714
        %v4165 = vpack.c.b16 %v3717, %v3716
        %v4166 = vpack.c.b16 %v3719, %v3718
        %v4167 = vpack.c.b16 %v3721, %v3720
        %v4168 = vpack.c.b16 %v3723, %v3722
        %v4169 = vpack.c.b16 %v3725, %v3724
        %v4170 = vpack.c.b16 %v3727, %v3726
        %v4171 = vpack.c.b16 %v3729, %v3728
        %v4172 = vpack.c.b16 %v3731, %v3730
        %v4173 = vpack.c.b16 %v3733, %v3732
        %v4174 = vpack.c.b16 %v3735, %v3734
        %v4175 = vpack.c.b16 %v3737, %v3736
        %v4176 = vpack.c.b16 %v3739, %v3738
        %v4177 = vpack.c.b16 %v3741, %v3740
        %v4178 = vpack.c.b16 %v3743, %v3742
        %v4179 = vpack.c.b16 %v3745, %v3744
        %v4180 = vpack.c.b16 %v3747, %v3746
        %v4181 = vpack.c.b16 %v3749, %v3748
        %v4182 = vpack.c.b16 %v3751, %v3750
        %v4183 = vpack.c.b16 %v3753, %v3752
        %v4184 = vpack.c.b16 %v3755, %v3754
        %v4185 = vpack.c.b16 %v3757, %v3756
        %v4186 = vpack.c.b16 %v3759, %v3758
        %v4187 = vpack.c.b16 %v3761, %v3760
        %v4188 = vpack.c.b16 %v3763, %v3762
        %v4189 = vpack.c.b16 %v3765, %v3764
        %v4190 = vpack.c.b16 %v3767, %v3766
        %v4191 = vpack.c.b16 %v3769, %v3768
        %v4192 = vpack.c.b16 %v3771, %v3770
        %v4193 = vpack.c.b16 %v3773, %v3772
        %v4194 = vpack.c.b16 %v3775, %v3774
        %v4195 = vpack.c.b16 %v3777, %v3776
        %v4196 = vpack.c.b16 %v3779, %v3778
        %v4197 = vpack.c.b16 %v3781, %v3780
        %v4198 = vpack.c.b16 %v3783, %v3782
        %v4199 = vpack.c.b16 %v3785, %v3784
        %v4200 = vpack.c.b16 %v3787, %v3786
        %v4201 = vpack.c.b16 %v3789, %v3788
        %v4202 = vpack.c.b16 %v3791, %v3790
        %v4203 = vpack.c.b16 %v3793, %v3792
        %v4204 = vpack.c.b16 %v3795, %v3794
        %v4205 = vpack.c.b16 %v3797, %v3796
        %v4206 = vpack.c.b16 %v3799, %v3798
        %v4207 = vpack.c.b16 %v3801, %v3800
        %v4208 = vpack.c.b16 %v3803, %v3802
        %v4209 = vpack.c.b16 %v3805, %v3804
        %v4210 = vpack.c.b16 %v3807, %v3806
        %v4211 = vpack.c.b16 %v3809, %v3808
        %v4212 = vpack.c.b16 %v3811, %v3810
        %v4213 = vpack.c.b16 %v3813, %v3812
        %v4214 = vpack.c.b16 %v3815, %v3814
        %v4215 = vpack.c.b16 %v3817, %v3816
        %v4216 = vpack.c.b16 %v3819, %v3818
        %v4217 = vpack.c.b16 %v3821, %v3820
        %v4218 = vpack.c.b16 %v3823, %v3822
        %v4219 = vpack.c.b16 %v3825, %v3824
        %v4220 = vpack.c.b16 %v3827, %v3826
        %v4221 = vpack.c.b16 %v3829, %v3828
        %4614 = vmatprep.subr.bf16.mxu0 0
        %4615 = vmatpush1.bf16.msra.mxu0 %v3830
        %4616 = vmatprep.subr.bf16.mxu0 0
        %4617 = vmatpush1.bf16.msra.mxu0 %v3831
        %4618 = vmatprep.subr.bf16.mxu0 0
        %4619 = vmatpush1.bf16.msra.mxu0 %v3832
        %4620 = vmatprep.subr.bf16.mxu0 0
        %4621 = vmatpush1.bf16.msra.mxu0 %v3833
        %4622 = vmatprep.subr.bf16.mxu0 0
        %4623 = vmatpush1.bf16.msra.mxu0 %v3834
        %4624 = vmatprep.subr.bf16.mxu0 0
        %4625 = vmatpush1.bf16.msra.mxu0 %v3835
        %4626 = vmatprep.subr.bf16.mxu0 0
        %4627 = vmatpush1.bf16.msra.mxu0 %v3836
        %4628 = vmatprep.subr.bf16.mxu0 0
        %4629 = vmatpush1.bf16.msra.mxu0 %v3837
        %4630 = vmatprep.subr.bf16.mxu0 0
        %4631 = vmatpush1.bf16.msra.mxu0 %v3838
        %4632 = vmatprep.subr.bf16.mxu0 0
        %4633 = vmatpush1.bf16.msra.mxu0 %v3839
        %4634 = vmatprep.subr.bf16.mxu0 0
        %4635 = vmatpush1.bf16.msra.mxu0 %v3840
        %4636 = vmatprep.subr.bf16.mxu0 0
        %4637 = vmatpush1.bf16.msra.mxu0 %v3841
        %4638 = vmatprep.subr.bf16.mxu0 0
        %4639 = vmatpush1.bf16.msra.mxu0 %v3842
        %4640 = vmatprep.subr.bf16.mxu0 0
        %4641 = vmatpush1.bf16.msra.mxu0 %v3843
        %4642 = vmatprep.subr.bf16.mxu0 0
        %4643 = vmatpush1.bf16.msra.mxu0 %v3844
        %4644 = vmatprep.subr.bf16.mxu0 0
        %4645 = vmatpush1.bf16.msra.mxu0 %v3845
        %4646 = vmatprep.mubr.bf16.mxu0 %v1429
        %4647 = vmatmul.mubr.bf16.gmra.mrb[0].mxu0 %v1428
        %v4648 = vpop.f32.mrb[0].mxu0
        %v4649 = vadd.f32 %v2261, %v4648
        %v4650 = vpop.f32.mrb[0].mxu0
        %v4651 = vpop.f32.mrb[0].mxu0
        %v4652 = vpop.f32.mrb[0].mxu0
        %4653 = vdwg.mxu0
        %4654 = vmatprep.subr.bf16.mxu0 0
        %4655 = vmatpush1.bf16.msra.mxu0 %v3846
        %4656 = vmatprep.subr.bf16.mxu0 0
        %4657 = vmatpush1.bf16.msra.mxu0 %v3847
        %4658 = vmatprep.subr.bf16.mxu0 0
        %4659 = vmatpush1.bf16.msra.mxu0 %v3848
        %4660 = vmatprep.subr.bf16.mxu0 0
        %4661 = vmatpush1.bf16.msra.mxu0 %v3849
        %4662 = vmatprep.subr.bf16.mxu0 0
        %4663 = vmatpush1.bf16.msra.mxu0 %v3850
        %4664 = vmatprep.subr.bf16.mxu0 0
        %4665 = vmatpush1.bf16.msra.mxu0 %v3851
        %4666 = vmatprep.subr.bf16.mxu0 0
        %4667 = vmatpush1.bf16.msra.mxu0 %v3852
        %4668 = vmatprep.subr.bf16.mxu0 0
        %4669 = vmatpush1.bf16.msra.mxu0 %v3853
        %4670 = vmatprep.subr.bf16.mxu0 0
        %4671 = vmatpush1.bf16.msra.mxu0 %v3854
        %4672 = vmatprep.subr.bf16.mxu0 0
        %4673 = vmatpush1.bf16.msra.mxu0 %v3855
        %4674 = vmatprep.subr.bf16.mxu0 0
        %4675 = vmatpush1.bf16.msra.mxu0 %v3856
        %4676 = vmatprep.subr.bf16.mxu0 0
        %4677 = vmatpush1.bf16.msra.mxu0 %v3857
        %4678 = vmatprep.subr.bf16.mxu0 0
        %4679 = vmatpush1.bf16.msra.mxu0 %v3858
        %4680 = vmatprep.subr.bf16.mxu0 0
        %4681 = vmatpush1.bf16.msra.mxu0 %v3859
        %4682 = vmatprep.subr.bf16.mxu0 0
        %4683 = vmatpush1.bf16.msra.mxu0 %v3860
        %4684 = vmatprep.subr.bf16.mxu0 0
        %4685 = vmatpush1.bf16.msra.mxu0 %v3861
        %4686 = vmatprep.mubr.bf16.mxu0 %v1431
        %4687 = vmatmul.mubr.bf16.gmra.mrb[0].mxu0 %v1430
        %v4688 = vpop.f32.mrb[0].mxu0
        %v4689 = vadd.f32 %v4649, %v4688
        %v4690 = vpop.f32.mrb[0].mxu0
        %v4691 = vpop.f32.mrb[0].mxu0
        %v4692 = vpop.f32.mrb[0].mxu0
        %4693 = vdwg.mxu0
        %4694 = vmatprep.subr.bf16.mxu0 0
        %4695 = vmatpush1.bf16.msra.mxu0 %v3862
        %4696 = vmatprep.subr.bf16.mxu0 0
        %4697 = vmatpush1.bf16.msra.mxu0 %v3863
        %4698 = vmatprep.subr.bf16.mxu0 0
        %4699 = vmatpush1.bf16.msra.mxu0 %v3864
        %4700 = vmatprep.subr.bf16.mxu0 0
        %4701 = vmatpush1.bf16.msra.mxu0 %v3865
        %4702 = vmatprep.subr.bf16.mxu0 0
        %4703 = vmatpush1.bf16.msra.mxu0 %v3866
        %4704 = vmatprep.subr.bf16.mxu0 0
        %4705 = vmatpush1.bf16.msra.mxu0 %v3867
        %4706 = vmatprep.subr.bf16.mxu0 0
        %4707 = vmatpush1.bf16.msra.mxu0 %v3868
        %4708 = vmatprep.subr.bf16.mxu0 0
        %4709 = vmatpush1.bf16.msra.mxu0 %v3869
        %4710 = vmatprep.subr.bf16.mxu0 0
        %4711 = vmatpush1.bf16.msra.mxu0 %v3870
        %4712 = vmatprep.subr.bf16.mxu0 0
        %4713 = vmatpush1.bf16.msra.mxu0 %v3871
        %4714 = vmatprep.subr.bf16.mxu0 0
        %4715 = vmatpush1.bf16.msra.mxu0 %v3872
        %4716 = vmatprep.subr.bf16.mxu0 0
        %4717 = vmatpush1.bf16.msra.mxu0 %v3873
        %4718 = vmatprep.subr.bf16.mxu0 0
        %4719 = vmatpush1.bf16.msra.mxu0 %v3874
        %4720 = vmatprep.subr.bf16.mxu0 0
        %4721 = vmatpush1.bf16.msra.mxu0 %v3875
        %4722 = vmatprep.subr.bf16.mxu0 0
        %4723 = vmatpush1.bf16.msra.mxu0 %v3876
        %4724 = vmatprep.subr.bf16.mxu0 0
        %4725 = vmatpush1.bf16.msra.mxu0 %v3877
        %4726 = vmatprep.mubr.bf16.mxu0 %v1433
        %4727 = vmatmul.mubr.bf16.gmra.mrb[0].mxu0 %v1432
        %v4728 = vpop.f32.mrb[0].mxu0
        %v4729 = vadd.f32 %v4689, %v4728
        %v4730 = vpop.f32.mrb[0].mxu0
        %v4731 = vpop.f32.mrb[0].mxu0
        %v4732 = vpop.f32.mrb[0].mxu0
        %4733 = vdwg.mxu0
        %4734 = vmatprep.subr.bf16.mxu0 0
        %4735 = vmatpush1.bf16.msra.mxu0 %v3878
        %4736 = vmatprep.subr.bf16.mxu0 0
        %4737 = vmatpush1.bf16.msra.mxu0 %v3879
        %4738 = vmatprep.subr.bf16.mxu0 0
        %4739 = vmatpush1.bf16.msra.mxu0 %v3880
        %4740 = vmatprep.subr.bf16.mxu0 0
        %4741 = vmatpush1.bf16.msra.mxu0 %v3881
        %4742 = vmatprep.subr.bf16.mxu0 0
        %4743 = vmatpush1.bf16.msra.mxu0 %v3882
        %4744 = vmatprep.subr.bf16.mxu0 0
        %4745 = vmatpush1.bf16.msra.mxu0 %v3883
        %4746 = vmatprep.subr.bf16.mxu0 0
        %4747 = vmatpush1.bf16.msra.mxu0 %v3884
        %4748 = vmatprep.subr.bf16.mxu0 0
        %4749 = vmatpush1.bf16.msra.mxu0 %v3885
        %4750 = vmatprep.subr.bf16.mxu0 0
        %4751 = vmatpush1.bf16.msra.mxu0 %v3886
        %4752 = vmatprep.subr.bf16.mxu0 0
        %4753 = vmatpush1.bf16.msra.mxu0 %v3887
        %4754 = vmatprep.subr.bf16.mxu0 0
        %4755 = vmatpush1.bf16.msra.mxu0 %v3888
        %4756 = vmatprep.subr.bf16.mxu0 0
        %4757 = vmatpush1.bf16.msra.mxu0 %v3889
        %4758 = vmatprep.subr.bf16.mxu0 0
        %4759 = vmatpush1.bf16.msra.mxu0 %v3890
        %4760 = vmatprep.subr.bf16.mxu0 0
        %4761 = vmatpush1.bf16.msra.mxu0 %v3891
        %4762 = vmatprep.subr.bf16.mxu0 0
        %4763 = vmatpush1.bf16.msra.mxu0 %v3892
        %4764 = vmatprep.subr.bf16.mxu0 0
        %4765 = vmatpush1.bf16.msra.mxu0 %v3893
        %4766 = vmatprep.mubr.bf16.mxu0 %v1435
        %4767 = vmatmul.mubr.bf16.gmra.mrb[0].mxu0 %v1434
        %v4768 = vpop.f32.mrb[0].mxu0
        %v4769 = vadd.f32 %v4729, %v4768
        %v4770 = vpop.f32.mrb[0].mxu0
        %v4771 = vpop.f32.mrb[0].mxu0
        %v4772 = vpop.f32.mrb[0].mxu0
        %4773 = vdwg.mxu0
        %4774 = vmatprep.subr.bf16.mxu0 0
        %4775 = vmatpush1.bf16.msra.mxu0 %v3894
        %4776 = vmatprep.subr.bf16.mxu0 0
        %4777 = vmatpush1.bf16.msra.mxu0 %v3895
        %4778 = vmatprep.subr.bf16.mxu0 0
        %4779 = vmatpush1.bf16.msra.mxu0 %v3896
        %4780 = vmatprep.subr.bf16.mxu0 0
        %4781 = vmatpush1.bf16.msra.mxu0 %v3897
        %4782 = vmatprep.subr.bf16.mxu0 0
        %4783 = vmatpush1.bf16.msra.mxu0 %v3898
        %4784 = vmatprep.subr.bf16.mxu0 0
        %4785 = vmatpush1.bf16.msra.mxu0 %v3899
        %4786 = vmatprep.subr.bf16.mxu0 0
        %4787 = vmatpush1.bf16.msra.mxu0 %v3900
        %4788 = vmatprep.subr.bf16.mxu0 0
        %4789 = vmatpush1.bf16.msra.mxu0 %v3901
        %4790 = vmatprep.subr.bf16.mxu0 0
        %4791 = vmatpush1.bf16.msra.mxu0 %v3902
        %4792 = vmatprep.subr.bf16.mxu0 0
        %4793 = vmatpush1.bf16.msra.mxu0 %v3903
        %4794 = vmatprep.subr.bf16.mxu0 0
        %4795 = vmatpush1.bf16.msra.mxu0 %v3904
        %4796 = vmatprep.subr.bf16.mxu0 0
        %4797 = vmatpush1.bf16.msra.mxu0 %v3905
        %4798 = vmatprep.subr.bf16.mxu0 0
        %4799 = vmatpush1.bf16.msra.mxu0 %v3906
        %4800 = vmatprep.subr.bf16.mxu0 0
        %4801 = vmatpush1.bf16.msra.mxu0 %v3907
        %4802 = vmatprep.subr.bf16.mxu0 0
        %4803 = vmatpush1.bf16.msra.mxu0 %v3908
        %4804 = vmatprep.subr.bf16.mxu0 0
        %4805 = vmatpush1.bf16.msra.mxu0 %v3909
        %4806 = vmatprep.mubr.bf16.mxu0 %v1437
        %4807 = vmatmul.mubr.bf16.gmra.mrb[0].mxu0 %v1436
        %v4808 = vpop.f32.mrb[0].mxu0
        %v4809 = vadd.f32 %v4769, %v4808
        %v4810 = vpop.f32.mrb[0].mxu0
        %v4811 = vpop.f32.mrb[0].mxu0
        %v4812 = vpop.f32.mrb[0].mxu0
        %4813 = vdwg.mxu0
        %4814 = vmatprep.subr.bf16.mxu0 0
        %4815 = vmatpush1.bf16.msra.mxu0 %v3910
        %4816 = vmatprep.subr.bf16.mxu0 0
        %4817 = vmatpush1.bf16.msra.mxu0 %v3911
        %4818 = vmatprep.subr.bf16.mxu0 0
        %4819 = vmatpush1.bf16.msra.mxu0 %v3912
        %4820 = vmatprep.subr.bf16.mxu0 0
        %4821 = vmatpush1.bf16.msra.mxu0 %v3913
        %4822 = vmatprep.subr.bf16.mxu0 0
        %4823 = vmatpush1.bf16.msra.mxu0 %v3914
        %4824 = vmatprep.subr.bf16.mxu0 0
        %4825 = vmatpush1.bf16.msra.mxu0 %v3915
        %4826 = vmatprep.subr.bf16.mxu0 0
        %4827 = vmatpush1.bf16.msra.mxu0 %v3916
        %4828 = vmatprep.subr.bf16.mxu0 0
        %4829 = vmatpush1.bf16.msra.mxu0 %v3917
        %4830 = vmatprep.subr.bf16.mxu0 0
        %4831 = vmatpush1.bf16.msra.mxu0 %v3918
        %4832 = vmatprep.subr.bf16.mxu0 0
        %4833 = vmatpush1.bf16.msra.mxu0 %v3919
        %4834 = vmatprep.subr.bf16.mxu0 0
        %4835 = vmatpush1.bf16.msra.mxu0 %v3920
        %4836 = vmatprep.subr.bf16.mxu0 0
        %4837 = vmatpush1.bf16.msra.mxu0 %v3921
        %4838 = vmatprep.subr.bf16.mxu0 0
        %4839 = vmatpush1.bf16.msra.mxu0 %v3922
        %4840 = vmatprep.subr.bf16.mxu0 0
        %4841 = vmatpush1.bf16.msra.mxu0 %v3923
        %4842 = vmatprep.subr.bf16.mxu0 0
        %4843 = vmatpush1.bf16.msra.mxu0 %v3924
        %4844 = vmatprep.subr.bf16.mxu0 0
        %4845 = vmatpush1.bf16.msra.mxu0 %v3925
        %4846 = vmatprep.mubr.bf16.mxu0 %v1439
        %4847 = vmatmul.mubr.bf16.gmra.mrb[0].mxu0 %v1438
        %v4848 = vpop.f32.mrb[0].mxu0
        %v4849 = vadd.f32 %v4809, %v4848
        %v4850 = vpop.f32.mrb[0].mxu0
        %v4851 = vpop.f32.mrb[0].mxu0
        %v4852 = vpop.f32.mrb[0].mxu0
        %4853 = vdwg.mxu0
        %4854 = vmatprep.subr.bf16.mxu0 0
        %4855 = vmatpush1.bf16.msra.mxu0 %v3926
        %4856 = vmatprep.subr.bf16.mxu0 0
        %4857 = vmatpush1.bf16.msra.mxu0 %v3927
        %4858 = vmatprep.subr.bf16.mxu0 0
        %4859 = vmatpush1.bf16.msra.mxu0 %v3928
        %4860 = vmatprep.subr.bf16.mxu0 0
        %4861 = vmatpush1.bf16.msra.mxu0 %v3929
        %4862 = vmatprep.subr.bf16.mxu0 0
        %4863 = vmatpush1.bf16.msra.mxu0 %v3930
        %4864 = vmatprep.subr.bf16.mxu0 0
        %4865 = vmatpush1.bf16.msra.mxu0 %v3931
        %4866 = vmatprep.subr.bf16.mxu0 0
        %4867 = vmatpush1.bf16.msra.mxu0 %v3932
        %4868 = vmatprep.subr.bf16.mxu0 0
        %4869 = vmatpush1.bf16.msra.mxu0 %v3933
        %4870 = vmatprep.subr.bf16.mxu0 0
        %4871 = vmatpush1.bf16.msra.mxu0 %v3934
        %4872 = vmatprep.subr.bf16.mxu0 0
        %4873 = vmatpush1.bf16.msra.mxu0 %v3935
        %4874 = vmatprep.subr.bf16.mxu0 0
        %4875 = vmatpush1.bf16.msra.mxu0 %v3936
        %4876 = vmatprep.subr.bf16.mxu0 0
        %4877 = vmatpush1.bf16.msra.mxu0 %v3937
        %4878 = vmatprep.subr.bf16.mxu0 0
        %4879 = vmatpush1.bf16.msra.mxu0 %v3938
        %4880 = vmatprep.subr.bf16.mxu0 0
        %4881 = vmatpush1.bf16.msra.mxu0 %v3939
        %4882 = vmatprep.subr.bf16.mxu0 0
        %4883 = vmatpush1.bf16.msra.mxu0 %v3940
        %4884 = vmatprep.subr.bf16.mxu0 0
        %4885 = vmatpush1.bf16.msra.mxu0 %v3941
        %4886 = vmatprep.mubr.bf16.mxu0 %v1441
        %4887 = vmatmul.mubr.bf16.gmra.mrb[0].mxu0 %v1440
        %v4888 = vpop.f32.mrb[0].mxu0
        %v4889 = vadd.f32 %v4849, %v4888
        %v4890 = vpop.f32.mrb[0].mxu0
        %v4891 = vpop.f32.mrb[0].mxu0
        %v4892 = vpop.f32.mrb[0].mxu0
        %4893 = vdwg.mxu0
        %4894 = vmatprep.subr.bf16.mxu0 0
        %4895 = vmatpush1.bf16.msra.mxu0 %v3942
        %4896 = vmatprep.subr.bf16.mxu0 0
        %4897 = vmatpush1.bf16.msra.mxu0 %v3943
        %4898 = vmatprep.subr.bf16.mxu0 0
        %4899 = vmatpush1.bf16.msra.mxu0 %v3944
        %4900 = vmatprep.subr.bf16.mxu0 0
        %4901 = vmatpush1.bf16.msra.mxu0 %v3945
        %4902 = vmatprep.subr.bf16.mxu0 0
        %4903 = vmatpush1.bf16.msra.mxu0 %v3946
        %4904 = vmatprep.subr.bf16.mxu0 0
        %4905 = vmatpush1.bf16.msra.mxu0 %v3947
        %4906 = vmatprep.subr.bf16.mxu0 0
        %4907 = vmatpush1.bf16.msra.mxu0 %v3948
        %4908 = vmatprep.subr.bf16.mxu0 0
        %4909 = vmatpush1.bf16.msra.mxu0 %v3949
        %4910 = vmatprep.subr.bf16.mxu0 0
        %4911 = vmatpush1.bf16.msra.mxu0 %v3950
        %4912 = vmatprep.subr.bf16.mxu0 0
        %4913 = vmatpush1.bf16.msra.mxu0 %v3951
        %4914 = vmatprep.subr.bf16.mxu0 0
        %4915 = vmatpush1.bf16.msra.mxu0 %v3952
        %4916 = vmatprep.subr.bf16.mxu0 0
        %4917 = vmatpush1.bf16.msra.mxu0 %v3953
        %4918 = vmatprep.subr.bf16.mxu0 0
        %4919 = vmatpush1.bf16.msra.mxu0 %v3954
        %4920 = vmatprep.subr.bf16.mxu0 0
        %4921 = vmatpush1.bf16.msra.mxu0 %v3955
        %4922 = vmatprep.subr.bf16.mxu0 0
        %4923 = vmatpush1.bf16.msra.mxu0 %v3956
        %4924 = vmatprep.subr.bf16.mxu0 0
        %4925 = vmatpush1.bf16.msra.mxu0 %v3957
        %4926 = vmatprep.mubr.bf16.mxu0 %v1443
        %4927 = vmatmul.mubr.bf16.gmra.mrb[0].mxu0 %v1442
        %v4928 = vpop.f32.mrb[0].mxu0
        %v4929 = vadd.f32 %v4889, %v4928
        %v4930 = vpop.f32.mrb[0].mxu0
        %v4931 = vpop.f32.mrb[0].mxu0
        %v4932 = vpop.f32.mrb[0].mxu0
        %4933 = vdwg.mxu0
        %4934 = vmatprep.subr.bf16.mxu0 0
        %4935 = vmatpush1.bf16.msra.mxu0 %v3958
        %4936 = vmatprep.subr.bf16.mxu0 0
        %4937 = vmatpush1.bf16.msra.mxu0 %v3959
        %4938 = vmatprep.subr.bf16.mxu0 0
        %4939 = vmatpush1.bf16.msra.mxu0 %v3960
        %4940 = vmatprep.subr.bf16.mxu0 0
        %4941 = vmatpush1.bf16.msra.mxu0 %v3961
        %4942 = vmatprep.subr.bf16.mxu0 0
        %4943 = vmatpush1.bf16.msra.mxu0 %v3962
        %4944 = vmatprep.subr.bf16.mxu0 0
        %4945 = vmatpush1.bf16.msra.mxu0 %v3963
        %4946 = vmatprep.subr.bf16.mxu0 0
        %4947 = vmatpush1.bf16.msra.mxu0 %v3964
        %4948 = vmatprep.subr.bf16.mxu0 0
        %4949 = vmatpush1.bf16.msra.mxu0 %v3965
        %4950 = vmatprep.subr.bf16.mxu0 0
        %4951 = vmatpush1.bf16.msra.mxu0 %v3966
        %4952 = vmatprep.subr.bf16.mxu0 0
        %4953 = vmatpush1.bf16.msra.mxu0 %v3967
        %4954 = vmatprep.subr.bf16.mxu0 0
        %4955 = vmatpush1.bf16.msra.mxu0 %v3968
        %4956 = vmatprep.subr.bf16.mxu0 0
        %4957 = vmatpush1.bf16.msra.mxu0 %v3969
        %4958 = vmatprep.subr.bf16.mxu0 0
        %4959 = vmatpush1.bf16.msra.mxu0 %v3970
        %4960 = vmatprep.subr.bf16.mxu0 0
        %4961 = vmatpush1.bf16.msra.mxu0 %v3971
        %4962 = vmatprep.subr.bf16.mxu0 0
        %4963 = vmatpush1.bf16.msra.mxu0 %v3972
        %4964 = vmatprep.subr.bf16.mxu0 0
        %4965 = vmatpush1.bf16.msra.mxu0 %v3973
        %4966 = vmatprep.mubr.bf16.mxu0 %v1445
        %4967 = vmatmul.mubr.bf16.gmra.mrb[0].mxu0 %v1444
        %v4968 = vpop.f32.mrb[0].mxu0
        %v4969 = vadd.f32 %v4929, %v4968
        %v4970 = vpop.f32.mrb[0].mxu0
        %v4971 = vpop.f32.mrb[0].mxu0
        %v4972 = vpop.f32.mrb[0].mxu0
        %4973 = vdwg.mxu0
        %4974 = vmatprep.subr.bf16.mxu0 0
        %4975 = vmatpush1.bf16.msra.mxu0 %v3974
        %4976 = vmatprep.subr.bf16.mxu0 0
        %4977 = vmatpush1.bf16.msra.mxu0 %v3975
        %4978 = vmatprep.subr.bf16.mxu0 0
        %4979 = vmatpush1.bf16.msra.mxu0 %v3976
        %4980 = vmatprep.subr.bf16.mxu0 0
        %4981 = vmatpush1.bf16.msra.mxu0 %v3977
        %4982 = vmatprep.subr.bf16.mxu0 0
        %4983 = vmatpush1.bf16.msra.mxu0 %v3978
        %4984 = vmatprep.subr.bf16.mxu0 0
        %4985 = vmatpush1.bf16.msra.mxu0 %v3979
        %4986 = vmatprep.subr.bf16.mxu0 0
        %4987 = vmatpush1.bf16.msra.mxu0 %v3980
        %4988 = vmatprep.subr.bf16.mxu0 0
        %4989 = vmatpush1.bf16.msra.mxu0 %v3981
        %4990 = vmatprep.subr.bf16.mxu0 0
        %4991 = vmatpush1.bf16.msra.mxu0 %v3982
        %4992 = vmatprep.subr.bf16.mxu0 0
        %4993 = vmatpush1.bf16.msra.mxu0 %v3983
        %4994 = vmatprep.subr.bf16.mxu0 0
        %4995 = vmatpush1.bf16.msra.mxu0 %v3984
        %4996 = vmatprep.subr.bf16.mxu0 0
        %4997 = vmatpush1.bf16.msra.mxu0 %v3985
        %4998 = vmatprep.subr.bf16.mxu0 0
        %4999 = vmatpush1.bf16.msra.mxu0 %v3986
        %5000 = vmatprep.subr.bf16.mxu0 0
        %5001 = vmatpush1.bf16.msra.mxu0 %v3987
        %5002 = vmatprep.subr.bf16.mxu0 0
        %5003 = vmatpush1.bf16.msra.mxu0 %v3988
        %5004 = vmatprep.subr.bf16.mxu0 0
        %5005 = vmatpush1.bf16.msra.mxu0 %v3989
        %5006 = vmatprep.mubr.bf16.mxu0 %v1447
        %5007 = vmatmul.mubr.bf16.gmra.mrb[0].mxu0 %v1446
        %v5008 = vpop.f32.mrb[0].mxu0
        %v5009 = vadd.f32 %v4969, %v5008
        %v5010 = vpop.f32.mrb[0].mxu0
        %v5011 = vpop.f32.mrb[0].mxu0
        %v5012 = vpop.f32.mrb[0].mxu0
        %5013 = vdwg.mxu0
        %5014 = vmatprep.subr.bf16.mxu0 0
        %5015 = vmatpush1.bf16.msra.mxu0 %v3990
        %5016 = vmatprep.subr.bf16.mxu0 0
        %5017 = vmatpush1.bf16.msra.mxu0 %v3991
        %5018 = vmatprep.subr.bf16.mxu0 0
        %5019 = vmatpush1.bf16.msra.mxu0 %v3992
        %5020 = vmatprep.subr.bf16.mxu0 0
        %5021 = vmatpush1.bf16.msra.mxu0 %v3993
        %5022 = vmatprep.subr.bf16.mxu0 0
        %5023 = vmatpush1.bf16.msra.mxu0 %v3994
        %5024 = vmatprep.subr.bf16.mxu0 0
        %5025 = vmatpush1.bf16.msra.mxu0 %v3995
        %5026 = vmatprep.subr.bf16.mxu0 0
        %5027 = vmatpush1.bf16.msra.mxu0 %v3996
        %5028 = vmatprep.subr.bf16.mxu0 0
        %5029 = vmatpush1.bf16.msra.mxu0 %v3997
        %5030 = vmatprep.subr.bf16.mxu0 0
        %5031 = vmatpush1.bf16.msra.mxu0 %v3998
        %5032 = vmatprep.subr.bf16.mxu0 0
        %5033 = vmatpush1.bf16.msra.mxu0 %v3999
        %5034 = vmatprep.subr.bf16.mxu0 0
        %5035 = vmatpush1.bf16.msra.mxu0 %v4000
        %5036 = vmatprep.subr.bf16.mxu0 0
        %5037 = vmatpush1.bf16.msra.mxu0 %v4001
        %5038 = vmatprep.subr.bf16.mxu0 0
        %5039 = vmatpush1.bf16.msra.mxu0 %v4002
        %5040 = vmatprep.subr.bf16.mxu0 0
        %5041 = vmatpush1.bf16.msra.mxu0 %v4003
        %5042 = vmatprep.subr.bf16.mxu0 0
        %5043 = vmatpush1.bf16.msra.mxu0 %v4004
        %5044 = vmatprep.subr.bf16.mxu0 0
        %5045 = vmatpush1.bf16.msra.mxu0 %v4005
        %5046 = vmatprep.mubr.bf16.mxu0 %v1449
        %5047 = vmatmul.mubr.bf16.gmra.mrb[0].mxu0 %v1448
        %v5048 = vpop.f32.mrb[0].mxu0
        %v5049 = vadd.f32 %v5009, %v5048
        %v5050 = vpop.f32.mrb[0].mxu0
        %v5051 = vpop.f32.mrb[0].mxu0
        %v5052 = vpop.f32.mrb[0].mxu0
        %5053 = vdwg.mxu0
        %5054 = vmatprep.subr.bf16.mxu0 0
        %5055 = vmatpush1.bf16.msra.mxu0 %v4006
        %5056 = vmatprep.subr.bf16.mxu0 0
        %5057 = vmatpush1.bf16.msra.mxu0 %v4007
        %5058 = vmatprep.subr.bf16.mxu0 0
        %5059 = vmatpush1.bf16.msra.mxu0 %v4008
        %5060 = vmatprep.subr.bf16.mxu0 0
        %5061 = vmatpush1.bf16.msra.mxu0 %v4009
        %5062 = vmatprep.subr.bf16.mxu0 0
        %5063 = vmatpush1.bf16.msra.mxu0 %v4010
        %5064 = vmatprep.subr.bf16.mxu0 0
        %5065 = vmatpush1.bf16.msra.mxu0 %v4011
        %5066 = vmatprep.subr.bf16.mxu0 0
        %5067 = vmatpush1.bf16.msra.mxu0 %v4012
        %5068 = vmatprep.subr.bf16.mxu0 0
        %5069 = vmatpush1.bf16.msra.mxu0 %v4013
        %5070 = vmatprep.subr.bf16.mxu0 0
        %5071 = vmatpush1.bf16.msra.mxu0 %v4014
        %5072 = vmatprep.subr.bf16.mxu0 0
        %5073 = vmatpush1.bf16.msra.mxu0 %v4015
        %5074 = vmatprep.subr.bf16.mxu0 0
        %5075 = vmatpush1.bf16.msra.mxu0 %v4016
        %5076 = vmatprep.subr.bf16.mxu0 0
        %5077 = vmatpush1.bf16.msra.mxu0 %v4017
        %5078 = vmatprep.subr.bf16.mxu0 0
        %5079 = vmatpush1.bf16.msra.mxu0 %v4018
        %5080 = vmatprep.subr.bf16.mxu0 0
        %5081 = vmatpush1.bf16.msra.mxu0 %v4019
        %5082 = vmatprep.subr.bf16.mxu0 0
        %5083 = vmatpush1.bf16.msra.mxu0 %v4020
        %5084 = vmatprep.subr.bf16.mxu0 0
        %5085 = vmatpush1.bf16.msra.mxu0 %v4021
        %5086 = vmatprep.mubr.bf16.mxu0 %v1451
        %5087 = vmatmul.mubr.bf16.gmra.mrb[0].mxu0 %v1450
        %v5088 = vpop.f32.mrb[0].mxu0
        %v5089 = vadd.f32 %v5049, %v5088
        %v5090 = vpop.f32.mrb[0].mxu0
        %v5091 = vpop.f32.mrb[0].mxu0
        %v5092 = vpop.f32.mrb[0].mxu0
        %5093 = vdwg.mxu0
        %5094 = vmatprep.subr.bf16.mxu0 0
        %5095 = vmatpush1.bf16.msra.mxu0 %v4022
        %5096 = vmatprep.subr.bf16.mxu0 0
        %5097 = vmatpush1.bf16.msra.mxu0 %v4023
        %5098 = vmatprep.subr.bf16.mxu0 0
        %5099 = vmatpush1.bf16.msra.mxu0 %v4024
        %5100 = vmatprep.subr.bf16.mxu0 0
        %5101 = vmatpush1.bf16.msra.mxu0 %v4025
        %5102 = vmatprep.subr.bf16.mxu0 0
        %5103 = vmatpush1.bf16.msra.mxu0 %v4026
        %5104 = vmatprep.subr.bf16.mxu0 0
        %5105 = vmatpush1.bf16.msra.mxu0 %v4027
        %5106 = vmatprep.subr.bf16.mxu0 0
        %5107 = vmatpush1.bf16.msra.mxu0 %v4028
        %5108 = vmatprep.subr.bf16.mxu0 0
        %5109 = vmatpush1.bf16.msra.mxu0 %v4029
        %5110 = vmatprep.subr.bf16.mxu0 0
        %5111 = vmatpush1.bf16.msra.mxu0 %v4030
        %5112 = vmatprep.subr.bf16.mxu0 0
        %5113 = vmatpush1.bf16.msra.mxu0 %v4031
        %5114 = vmatprep.subr.bf16.mxu0 0
        %5115 = vmatpush1.bf16.msra.mxu0 %v4032
        %5116 = vmatprep.subr.bf16.mxu0 0
        %5117 = vmatpush1.bf16.msra.mxu0 %v4033
        %5118 = vmatprep.subr.bf16.mxu0 0
        %5119 = vmatpush1.bf16.msra.mxu0 %v4034
        %5120 = vmatprep.subr.bf16.mxu0 0
        %5121 = vmatpush1.bf16.msra.mxu0 %v4035
        %5122 = vmatprep.subr.bf16.mxu0 0
        %5123 = vmatpush1.bf16.msra.mxu0 %v4036
        %5124 = vmatprep.subr.bf16.mxu0 0
        %5125 = vmatpush1.bf16.msra.mxu0 %v4037
        %5126 = vmatprep.mubr.bf16.mxu0 %v1453
        %5127 = vmatmul.mubr.bf16.gmra.mrb[0].mxu0 %v1452
        %v5128 = vpop.f32.mrb[0].mxu0
        %v5129 = vadd.f32 %v5089, %v5128
        %v5130 = vpop.f32.mrb[0].mxu0
        %v5131 = vpop.f32.mrb[0].mxu0
        %v5132 = vpop.f32.mrb[0].mxu0
        %5133 = vdwg.mxu0
        %5134 = vmatprep.subr.bf16.mxu0 0
        %5135 = vmatpush1.bf16.msra.mxu0 %v4038
        %5136 = vmatprep.subr.bf16.mxu0 0
        %5137 = vmatpush1.bf16.msra.mxu0 %v4039
        %5138 = vmatprep.subr.bf16.mxu0 0
        %5139 = vmatpush1.bf16.msra.mxu0 %v4040
        %5140 = vmatprep.subr.bf16.mxu0 0
        %5141 = vmatpush1.bf16.msra.mxu0 %v4041
        %5142 = vmatprep.subr.bf16.mxu0 0
        %5143 = vmatpush1.bf16.msra.mxu0 %v4042
        %5144 = vmatprep.subr.bf16.mxu0 0
        %5145 = vmatpush1.bf16.msra.mxu0 %v4043
        %5146 = vmatprep.subr.bf16.mxu0 0
        %5147 = vmatpush1.bf16.msra.mxu0 %v4044
        %5148 = vmatprep.subr.bf16.mxu0 0
        %5149 = vmatpush1.bf16.msra.mxu0 %v4045
        %5150 = vmatprep.subr.bf16.mxu0 0
        %5151 = vmatpush1.bf16.msra.mxu0 %v4046
        %5152 = vmatprep.subr.bf16.mxu0 0
        %5153 = vmatpush1.bf16.msra.mxu0 %v4047
        %5154 = vmatprep.subr.bf16.mxu0 0
        %5155 = vmatpush1.bf16.msra.mxu0 %v4048
        %5156 = vmatprep.subr.bf16.mxu0 0
        %5157 = vmatpush1.bf16.msra.mxu0 %v4049
        %5158 = vmatprep.subr.bf16.mxu0 0
        %5159 = vmatpush1.bf16.msra.mxu0 %v4050
        %5160 = vmatprep.subr.bf16.mxu0 0
        %5161 = vmatpush1.bf16.msra.mxu0 %v4051
        %5162 = vmatprep.subr.bf16.mxu0 0
        %5163 = vmatpush1.bf16.msra.mxu0 %v4052
        %5164 = vmatprep.subr.bf16.mxu0 0
        %5165 = vmatpush1.bf16.msra.mxu0 %v4053
        %5166 = vmatprep.mubr.bf16.mxu0 %v1455
        %5167 = vmatmul.mubr.bf16.gmra.mrb[0].mxu0 %v1454
        %v5168 = vpop.f32.mrb[0].mxu0
        %v5169 = vadd.f32 %v5129, %v5168
        %v5170 = vpop.f32.mrb[0].mxu0
        %v5171 = vpop.f32.mrb[0].mxu0
        %v5172 = vpop.f32.mrb[0].mxu0
        %5173 = vdwg.mxu0
        %5174 = vmatprep.subr.bf16.mxu0 0
        %5175 = vmatpush1.bf16.msra.mxu0 %v4054
        %5176 = vmatprep.subr.bf16.mxu0 0
        %5177 = vmatpush1.bf16.msra.mxu0 %v4055
        %5178 = vmatprep.subr.bf16.mxu0 0
        %5179 = vmatpush1.bf16.msra.mxu0 %v4056
        %5180 = vmatprep.subr.bf16.mxu0 0
        %5181 = vmatpush1.bf16.msra.mxu0 %v4057
        %5182 = vmatprep.subr.bf16.mxu0 0
        %5183 = vmatpush1.bf16.msra.mxu0 %v4058
        %5184 = vmatprep.subr.bf16.mxu0 0
        %5185 = vmatpush1.bf16.msra.mxu0 %v4059
        %5186 = vmatprep.subr.bf16.mxu0 0
        %5187 = vmatpush1.bf16.msra.mxu0 %v4060
        %5188 = vmatprep.subr.bf16.mxu0 0
        %5189 = vmatpush1.bf16.msra.mxu0 %v4061
        %5190 = vmatprep.subr.bf16.mxu0 0
        %5191 = vmatpush1.bf16.msra.mxu0 %v4062
        %5192 = vmatprep.subr.bf16.mxu0 0
        %5193 = vmatpush1.bf16.msra.mxu0 %v4063
        %5194 = vmatprep.subr.bf16.mxu0 0
        %5195 = vmatpush1.bf16.msra.mxu0 %v4064
        %5196 = vmatprep.subr.bf16.mxu0 0
        %5197 = vmatpush1.bf16.msra.mxu0 %v4065
        %5198 = vmatprep.subr.bf16.mxu0 0
        %5199 = vmatpush1.bf16.msra.mxu0 %v4066
        %5200 = vmatprep.subr.bf16.mxu0 0
        %5201 = vmatpush1.bf16.msra.mxu0 %v4067
        %5202 = vmatprep.subr.bf16.mxu0 0
        %5203 = vmatpush1.bf16.msra.mxu0 %v4068
        %5204 = vmatprep.subr.bf16.mxu0 0
        %5205 = vmatpush1.bf16.msra.mxu0 %v4069
        %5206 = vmatprep.mubr.bf16.mxu0 %v1457
        %5207 = vmatmul.mubr.bf16.gmra.mrb[0].mxu0 %v1456
        %v5208 = vpop.f32.mrb[0].mxu0
        %v5209 = vadd.f32 %v5169, %v5208
        %v5210 = vpop.f32.mrb[0].mxu0
        %v5211 = vpop.f32.mrb[0].mxu0
        %v5212 = vpop.f32.mrb[0].mxu0
        %5213 = vdwg.mxu0
        %5214 = vmatprep.subr.bf16.mxu0 0
        %5215 = vmatpush1.bf16.msra.mxu0 %v4070
        %5216 = vmatprep.subr.bf16.mxu0 0
        %5217 = vmatpush1.bf16.msra.mxu0 %v4071
        %5218 = vmatprep.subr.bf16.mxu0 0
        %5219 = vmatpush1.bf16.msra.mxu0 %v4072
        %5220 = vmatprep.subr.bf16.mxu0 0
        %5221 = vmatpush1.bf16.msra.mxu0 %v4073
        %5222 = vmatprep.subr.bf16.mxu0 0
        %5223 = vmatpush1.bf16.msra.mxu0 %v4074
        %5224 = vmatprep.subr.bf16.mxu0 0
        %5225 = vmatpush1.bf16.msra.mxu0 %v4075
        %5226 = vmatprep.subr.bf16.mxu0 0
        %5227 = vmatpush1.bf16.msra.mxu0 %v4076
        %5228 = vmatprep.subr.bf16.mxu0 0
        %5229 = vmatpush1.bf16.msra.mxu0 %v4077
        %5230 = vmatprep.subr.bf16.mxu0 0
        %5231 = vmatpush1.bf16.msra.mxu0 %v4078
        %5232 = vmatprep.subr.bf16.mxu0 0
        %5233 = vmatpush1.bf16.msra.mxu0 %v4079
        %5234 = vmatprep.subr.bf16.mxu0 0
        %5235 = vmatpush1.bf16.msra.mxu0 %v4080
        %5236 = vmatprep.subr.bf16.mxu0 0
        %5237 = vmatpush1.bf16.msra.mxu0 %v4081
        %5238 = vmatprep.subr.bf16.mxu0 0
        %5239 = vmatpush1.bf16.msra.mxu0 %v4082
        %5240 = vmatprep.subr.bf16.mxu0 0
        %5241 = vmatpush1.bf16.msra.mxu0 %v4083
        %5242 = vmatprep.subr.bf16.mxu0 0
        %5243 = vmatpush1.bf16.msra.mxu0 %v4084
        %5244 = vmatprep.subr.bf16.mxu0 0
        %5245 = vmatpush1.bf16.msra.mxu0 %v4085
        %5246 = vmatprep.mubr.bf16.mxu0 %v1459
        %5247 = vmatmul.mubr.bf16.gmra.mrb[0].mxu0 %v1458
        %v5248 = vpop.f32.mrb[0].mxu0
        %v5249 = vadd.f32 %v5209, %v5248
        %v5250 = vpop.f32.mrb[0].mxu0
        %v5251 = vpop.f32.mrb[0].mxu0
        %v5252 = vpop.f32.mrb[0].mxu0
        %5253 = vdwg.mxu0
        %5254 = vmatprep.subr.bf16.mxu0 0
        %5255 = vmatpush1.bf16.msra.mxu0 %v4086
        %5256 = vmatprep.subr.bf16.mxu0 0
        %5257 = vmatpush1.bf16.msra.mxu0 %v4087
        %5258 = vmatprep.subr.bf16.mxu0 0
        %5259 = vmatpush1.bf16.msra.mxu0 %v4088
        %5260 = vmatprep.subr.bf16.mxu0 0
        %5261 = vmatpush1.bf16.msra.mxu0 %v4089
        %5262 = vmatprep.subr.bf16.mxu0 0
        %5263 = vmatpush1.bf16.msra.mxu0 %v4090
        %5264 = vmatprep.subr.bf16.mxu0 0
        %5265 = vmatpush1.bf16.msra.mxu0 %v4091
        %5266 = vmatprep.subr.bf16.mxu0 0
        %5267 = vmatpush1.bf16.msra.mxu0 %v4092
        %5268 = vmatprep.subr.bf16.mxu0 0
        %5269 = vmatpush1.bf16.msra.mxu0 %v4093
        %5270 = vmatprep.subr.bf16.mxu0 0
        %5271 = vmatpush1.bf16.msra.mxu0 %v4094
        %5272 = vmatprep.subr.bf16.mxu0 0
        %5273 = vmatpush1.bf16.msra.mxu0 %v4095
        %5274 = vmatprep.subr.bf16.mxu0 0
        %5275 = vmatpush1.bf16.msra.mxu0 %v4096
        %5276 = vmatprep.subr.bf16.mxu0 0
        %5277 = vmatpush1.bf16.msra.mxu0 %v4097
        %5278 = vmatprep.subr.bf16.mxu0 0
        %5279 = vmatpush1.bf16.msra.mxu0 %v4098
        %5280 = vmatprep.subr.bf16.mxu0 0
        %5281 = vmatpush1.bf16.msra.mxu0 %v4099
        %5282 = vmatprep.subr.bf16.mxu0 0
        %5283 = vmatpush1.bf16.msra.mxu0 %v4100
        %5284 = vmatprep.subr.bf16.mxu0 0
        %5285 = vmatpush1.bf16.msra.mxu0 %v4101
        %5286 = vmatprep.mubr.bf16.mxu0 %v1461
        %5287 = vmatmul.mubr.bf16.gmra.mrb[0].mxu0 %v1460
        %v5288 = vpop.f32.mrb[0].mxu0
        %v5289 = vadd.f32 %v5249, %v5288
        %v5290 = vpop.f32.mrb[0].mxu0
        %v5291 = vpop.f32.mrb[0].mxu0
        %v5292 = vpop.f32.mrb[0].mxu0
        %5293 = vdwg.mxu0
        %5294 = vmatprep.subr.bf16.mxu0 0
        %5295 = vmatpush1.bf16.msra.mxu0 %v4102
        %5296 = vmatprep.subr.bf16.mxu0 0
        %5297 = vmatpush1.bf16.msra.mxu0 %v4103
        %5298 = vmatprep.subr.bf16.mxu0 0
        %5299 = vmatpush1.bf16.msra.mxu0 %v4104
        %5300 = vmatprep.subr.bf16.mxu0 0
        %5301 = vmatpush1.bf16.msra.mxu0 %v4105
        %5302 = vmatprep.subr.bf16.mxu0 0
        %5303 = vmatpush1.bf16.msra.mxu0 %v4106
        %5304 = vmatprep.subr.bf16.mxu0 0
        %5305 = vmatpush1.bf16.msra.mxu0 %v4107
        %5306 = vmatprep.subr.bf16.mxu0 0
        %5307 = vmatpush1.bf16.msra.mxu0 %v4108
        %5308 = vmatprep.subr.bf16.mxu0 0
        %5309 = vmatpush1.bf16.msra.mxu0 %v4109
        %5310 = vmatprep.subr.bf16.mxu0 0
        %5311 = vmatpush1.bf16.msra.mxu0 %v4110
        %5312 = vmatprep.subr.bf16.mxu0 0
        %5313 = vmatpush1.bf16.msra.mxu0 %v4111
        %5314 = vmatprep.subr.bf16.mxu0 0
        %5315 = vmatpush1.bf16.msra.mxu0 %v4112
        %5316 = vmatprep.subr.bf16.mxu0 0
        %5317 = vmatpush1.bf16.msra.mxu0 %v4113
        %5318 = vmatprep.subr.bf16.mxu0 0
        %5319 = vmatpush1.bf16.msra.mxu0 %v4114
        %5320 = vmatprep.subr.bf16.mxu0 0
        %5321 = vmatpush1.bf16.msra.mxu0 %v4115
        %5322 = vmatprep.subr.bf16.mxu0 0
        %5323 = vmatpush1.bf16.msra.mxu0 %v4116
        %5324 = vmatprep.subr.bf16.mxu0 0
        %5325 = vmatpush1.bf16.msra.mxu0 %v4117
        %5326 = vmatprep.mubr.bf16.mxu0 %v1463
        %5327 = vmatmul.mubr.bf16.gmra.mrb[0].mxu0 %v1462
        %v5328 = vpop.f32.mrb[0].mxu0
        %v5329 = vadd.f32 %v5289, %v5328
        %v5330 = vpop.f32.mrb[0].mxu0
        %v5331 = vpop.f32.mrb[0].mxu0
        %v5332 = vpop.f32.mrb[0].mxu0
        %5333 = vdwg.mxu0
        %5334 = vmatprep.subr.bf16.mxu0 0
        %5335 = vmatpush1.bf16.msra.mxu0 %v4118
        %5336 = vmatprep.subr.bf16.mxu0 0
        %5337 = vmatpush1.bf16.msra.mxu0 %v4119
        %5338 = vmatprep.subr.bf16.mxu0 0
        %5339 = vmatpush1.bf16.msra.mxu0 %v4120
        %5340 = vmatprep.subr.bf16.mxu0 0
        %5341 = vmatpush1.bf16.msra.mxu0 %v4121
        %5342 = vmatprep.subr.bf16.mxu0 0
        %5343 = vmatpush1.bf16.msra.mxu0 %v4122
        %5344 = vmatprep.subr.bf16.mxu0 0
        %5345 = vmatpush1.bf16.msra.mxu0 %v4123
        %5346 = vmatprep.subr.bf16.mxu0 0
        %5347 = vmatpush1.bf16.msra.mxu0 %v4124
        %5348 = vmatprep.subr.bf16.mxu0 0
        %5349 = vmatpush1.bf16.msra.mxu0 %v4125
        %5350 = vmatprep.subr.bf16.mxu0 0
        %5351 = vmatpush1.bf16.msra.mxu0 %v4126
        %5352 = vmatprep.subr.bf16.mxu0 0
        %5353 = vmatpush1.bf16.msra.mxu0 %v4127
        %5354 = vmatprep.subr.bf16.mxu0 0
        %5355 = vmatpush1.bf16.msra.mxu0 %v4128
        %5356 = vmatprep.subr.bf16.mxu0 0
        %5357 = vmatpush1.bf16.msra.mxu0 %v4129
        %5358 = vmatprep.subr.bf16.mxu0 0
        %5359 = vmatpush1.bf16.msra.mxu0 %v4130
        %5360 = vmatprep.subr.bf16.mxu0 0
        %5361 = vmatpush1.bf16.msra.mxu0 %v4131
        %5362 = vmatprep.subr.bf16.mxu0 0
        %5363 = vmatpush1.bf16.msra.mxu0 %v4132
        %5364 = vmatprep.subr.bf16.mxu0 0
        %5365 = vmatpush1.bf16.msra.mxu0 %v4133
        %5366 = vmatprep.mubr.bf16.mxu0 %v1465
        %5367 = vmatmul.mubr.bf16.gmra.mrb[0].mxu0 %v1464
        %v5368 = vpop.f32.mrb[0].mxu0
        %v5369 = vadd.f32 %v5329, %v5368
        %v5370 = vpop.f32.mrb[0].mxu0
        %v5371 = vpop.f32.mrb[0].mxu0
        %v5372 = vpop.f32.mrb[0].mxu0
        %5373 = vdwg.mxu0
        %5374 = vmatprep.subr.bf16.mxu0 0
        %5375 = vmatpush1.bf16.msra.mxu0 %v4134
        %5376 = vmatprep.subr.bf16.mxu0 0
        %5377 = vmatpush1.bf16.msra.mxu0 %v4135
        %5378 = vmatprep.subr.bf16.mxu0 0
        %5379 = vmatpush1.bf16.msra.mxu0 %v4136
        %5380 = vmatprep.subr.bf16.mxu0 0
        %5381 = vmatpush1.bf16.msra.mxu0 %v4137
        %5382 = vmatprep.subr.bf16.mxu0 0
        %5383 = vmatpush1.bf16.msra.mxu0 %v4138
        %5384 = vmatprep.subr.bf16.mxu0 0
        %5385 = vmatpush1.bf16.msra.mxu0 %v4139
        %5386 = vmatprep.subr.bf16.mxu0 0
        %5387 = vmatpush1.bf16.msra.mxu0 %v4140
        %5388 = vmatprep.subr.bf16.mxu0 0
        %5389 = vmatpush1.bf16.msra.mxu0 %v4141
        %5390 = vmatprep.subr.bf16.mxu0 0
        %5391 = vmatpush1.bf16.msra.mxu0 %v4142
        %5392 = vmatprep.subr.bf16.mxu0 0
        %5393 = vmatpush1.bf16.msra.mxu0 %v4143
        %5394 = vmatprep.subr.bf16.mxu0 0
        %5395 = vmatpush1.bf16.msra.mxu0 %v4144
        %5396 = vmatprep.subr.bf16.mxu0 0
        %5397 = vmatpush1.bf16.msra.mxu0 %v4145
        %5398 = vmatprep.subr.bf16.mxu0 0
        %5399 = vmatpush1.bf16.msra.mxu0 %v4146
        %5400 = vmatprep.subr.bf16.mxu0 0
        %5401 = vmatpush1.bf16.msra.mxu0 %v4147
        %5402 = vmatprep.subr.bf16.mxu0 0
        %5403 = vmatpush1.bf16.msra.mxu0 %v4148
        %5404 = vmatprep.subr.bf16.mxu0 0
        %5405 = vmatpush1.bf16.msra.mxu0 %v4149
        %5406 = vmatprep.mubr.bf16.mxu0 %v1467
        %5407 = vmatmul.mubr.bf16.gmra.mrb[0].mxu0 %v1466
        %v5408 = vpop.f32.mrb[0].mxu0
        %v5409 = vadd.f32 %v5369, %v5408
        %v5410 = vpop.f32.mrb[0].mxu0
        %v5411 = vpop.f32.mrb[0].mxu0
        %v5412 = vpop.f32.mrb[0].mxu0
        %5413 = vdwg.mxu0
        %5414 = vmatprep.subr.bf16.mxu0 0
        %5415 = vmatpush1.bf16.msra.mxu0 %v4150
        %5416 = vmatprep.subr.bf16.mxu0 0
        %5417 = vmatpush1.bf16.msra.mxu0 %v4151
        %5418 = vmatprep.subr.bf16.mxu0 0
        %5419 = vmatpush1.bf16.msra.mxu0 %v4152
        %5420 = vmatprep.subr.bf16.mxu0 0
        %5421 = vmatpush1.bf16.msra.mxu0 %v4153
        %5422 = vmatprep.subr.bf16.mxu0 0
        %5423 = vmatpush1.bf16.msra.mxu0 %v4154
        %5424 = vmatprep.subr.bf16.mxu0 0
        %5425 = vmatpush1.bf16.msra.mxu0 %v4155
        %5426 = vmatprep.subr.bf16.mxu0 0
        %5427 = vmatpush1.bf16.msra.mxu0 %v4156
        %5428 = vmatprep.subr.bf16.mxu0 0
        %5429 = vmatpush1.bf16.msra.mxu0 %v4157
        %5430 = vmatprep.subr.bf16.mxu0 0
        %5431 = vmatpush1.bf16.msra.mxu0 %v4158
        %5432 = vmatprep.subr.bf16.mxu0 0
        %5433 = vmatpush1.bf16.msra.mxu0 %v4159
        %5434 = vmatprep.subr.bf16.mxu0 0
        %5435 = vmatpush1.bf16.msra.mxu0 %v4160
        %5436 = vmatprep.subr.bf16.mxu0 0
        %5437 = vmatpush1.bf16.msra.mxu0 %v4161
        %5438 = vmatprep.subr.bf16.mxu0 0
        %5439 = vmatpush1.bf16.msra.mxu0 %v4162
        %5440 = vmatprep.subr.bf16.mxu0 0
        %5441 = vmatpush1.bf16.msra.mxu0 %v4163
        %5442 = vmatprep.subr.bf16.mxu0 0
        %5443 = vmatpush1.bf16.msra.mxu0 %v4164
        %5444 = vmatprep.subr.bf16.mxu0 0
        %5445 = vmatpush1.bf16.msra.mxu0 %v4165
        %5446 = vmatprep.mubr.bf16.mxu0 %v1469
        %5447 = vmatmul.mubr.bf16.gmra.mrb[0].mxu0 %v1468
        %v5448 = vpop.f32.mrb[0].mxu0
        %v5449 = vadd.f32 %v5409, %v5448
        %v5450 = vpop.f32.mrb[0].mxu0
        %v5451 = vpop.f32.mrb[0].mxu0
        %v5452 = vpop.f32.mrb[0].mxu0
        %5453 = vdwg.mxu0
        %5454 = vmatprep.subr.bf16.mxu0 0
        %5455 = vmatpush1.bf16.msra.mxu0 %v4166
        %5456 = vmatprep.subr.bf16.mxu0 0
        %5457 = vmatpush1.bf16.msra.mxu0 %v4167
        %5458 = vmatprep.subr.bf16.mxu0 0
        %5459 = vmatpush1.bf16.msra.mxu0 %v4168
        %5460 = vmatprep.subr.bf16.mxu0 0
        %5461 = vmatpush1.bf16.msra.mxu0 %v4169
        %5462 = vmatprep.subr.bf16.mxu0 0
        %5463 = vmatpush1.bf16.msra.mxu0 %v4170
        %5464 = vmatprep.subr.bf16.mxu0 0
        %5465 = vmatpush1.bf16.msra.mxu0 %v4171
        %5466 = vmatprep.subr.bf16.mxu0 0
        %5467 = vmatpush1.bf16.msra.mxu0 %v4172
        %5468 = vmatprep.subr.bf16.mxu0 0
        %5469 = vmatpush1.bf16.msra.mxu0 %v4173
        %5470 = vmatprep.subr.bf16.mxu0 0
        %5471 = vmatpush1.bf16.msra.mxu0 %v4174
        %5472 = vmatprep.subr.bf16.mxu0 0
        %5473 = vmatpush1.bf16.msra.mxu0 %v4175
        %5474 = vmatprep.subr.bf16.mxu0 0
        %5475 = vmatpush1.bf16.msra.mxu0 %v4176
        %5476 = vmatprep.subr.bf16.mxu0 0
        %5477 = vmatpush1.bf16.msra.mxu0 %v4177
        %5478 = vmatprep.subr.bf16.mxu0 0
        %5479 = vmatpush1.bf16.msra.mxu0 %v4178
        %5480 = vmatprep.subr.bf16.mxu0 0
        %5481 = vmatpush1.bf16.msra.mxu0 %v4179
        %5482 = vmatprep.subr.bf16.mxu0 0
        %5483 = vmatpush1.bf16.msra.mxu0 %v4180
        %5484 = vmatprep.subr.bf16.mxu0 0
        %5485 = vmatpush1.bf16.msra.mxu0 %v4181
        %5486 = vmatprep.mubr.bf16.mxu0 %v1471
        %5487 = vmatmul.mubr.bf16.gmra.mrb[0].mxu0 %v1470
        %v5488 = vpop.f32.mrb[0].mxu0
        %v5489 = vadd.f32 %v5449, %v5488
        %v5490 = vpop.f32.mrb[0].mxu0
        %v5491 = vpop.f32.mrb[0].mxu0
        %v5492 = vpop.f32.mrb[0].mxu0
        %5493 = vdwg.mxu0
        %5494 = vmatprep.subr.bf16.mxu0 0
        %5495 = vmatpush1.bf16.msra.mxu0 %v4182
        %5496 = vmatprep.subr.bf16.mxu0 0
        %5497 = vmatpush1.bf16.msra.mxu0 %v4183
        %5498 = vmatprep.subr.bf16.mxu0 0
        %5499 = vmatpush1.bf16.msra.mxu0 %v4184
        %5500 = vmatprep.subr.bf16.mxu0 0
        %5501 = vmatpush1.bf16.msra.mxu0 %v4185
        %5502 = vmatprep.subr.bf16.mxu0 0
        %5503 = vmatpush1.bf16.msra.mxu0 %v4186
        %5504 = vmatprep.subr.bf16.mxu0 0
        %5505 = vmatpush1.bf16.msra.mxu0 %v4187
        %5506 = vmatprep.subr.bf16.mxu0 0
        %5507 = vmatpush1.bf16.msra.mxu0 %v4188
        %5508 = vmatprep.subr.bf16.mxu0 0
        %5509 = vmatpush1.bf16.msra.mxu0 %v4189
        %5510 = vmatprep.subr.bf16.mxu0 0
        %5511 = vmatpush1.bf16.msra.mxu0 %v4190
        %5512 = vmatprep.subr.bf16.mxu0 0
        %5513 = vmatpush1.bf16.msra.mxu0 %v4191
        %5514 = vmatprep.subr.bf16.mxu0 0
        %5515 = vmatpush1.bf16.msra.mxu0 %v4192
        %5516 = vmatprep.subr.bf16.mxu0 0
        %5517 = vmatpush1.bf16.msra.mxu0 %v4193
        %5518 = vmatprep.subr.bf16.mxu0 0
        %5519 = vmatpush1.bf16.msra.mxu0 %v4194
        %5520 = vmatprep.subr.bf16.mxu0 0
        %5521 = vmatpush1.bf16.msra.mxu0 %v4195
        %5522 = vmatprep.subr.bf16.mxu0 0
        %5523 = vmatpush1.bf16.msra.mxu0 %v4196
        %5524 = vmatprep.subr.bf16.mxu0 0
        %5525 = vmatpush1.bf16.msra.mxu0 %v4197
        %5526 = vmatprep.mubr.bf16.mxu0 %v1473
        %5527 = vmatmul.mubr.bf16.gmra.mrb[0].mxu0 %v1472
        %v5528 = vpop.f32.mrb[0].mxu0
        %v5529 = vadd.f32 %v5489, %v5528
        %v5530 = vpop.f32.mrb[0].mxu0
        %v5531 = vpop.f32.mrb[0].mxu0
        %v5532 = vpop.f32.mrb[0].mxu0
        %5533 = vdwg.mxu0
        %5534 = vmatprep.subr.bf16.mxu0 0
        %5535 = vmatpush1.bf16.msra.mxu0 %v4198
        %5536 = vmatprep.subr.bf16.mxu0 0
        %5537 = vmatpush1.bf16.msra.mxu0 %v4199
        %5538 = vmatprep.subr.bf16.mxu0 0
        %5539 = vmatpush1.bf16.msra.mxu0 %v4200
        %5540 = vmatprep.subr.bf16.mxu0 0
        %5541 = vmatpush1.bf16.msra.mxu0 %v4201
        %5542 = vmatprep.subr.bf16.mxu0 0
        %5543 = vmatpush1.bf16.msra.mxu0 %v4202
        %5544 = vmatprep.subr.bf16.mxu0 0
        %5545 = vmatpush1.bf16.msra.mxu0 %v4203
        %5546 = vmatprep.subr.bf16.mxu0 0
        %5547 = vmatpush1.bf16.msra.mxu0 %v4204
        %5548 = vmatprep.subr.bf16.mxu0 0
        %5549 = vmatpush1.bf16.msra.mxu0 %v4205
        %5550 = vmatprep.subr.bf16.mxu0 0
        %5551 = vmatpush1.bf16.msra.mxu0 %v4206
        %5552 = vmatprep.subr.bf16.mxu0 0
        %5553 = vmatpush1.bf16.msra.mxu0 %v4207
        %5554 = vmatprep.subr.bf16.mxu0 0
        %5555 = vmatpush1.bf16.msra.mxu0 %v4208
        %5556 = vmatprep.subr.bf16.mxu0 0
        %5557 = vmatpush1.bf16.msra.mxu0 %v4209
        %5558 = vmatprep.subr.bf16.mxu0 0
        %5559 = vmatpush1.bf16.msra.mxu0 %v4210
        %5560 = vmatprep.subr.bf16.mxu0 0
        %5561 = vmatpush1.bf16.msra.mxu0 %v4211
        %5562 = vmatprep.subr.bf16.mxu0 0
        %5563 = vmatpush1.bf16.msra.mxu0 %v4212
        %5564 = vmatprep.subr.bf16.mxu0 0
        %5565 = vmatpush1.bf16.msra.mxu0 %v4213
        %5566 = vmatprep.mubr.bf16.mxu0 %v1475
        %5567 = vmatmul.mubr.bf16.gmra.mrb[0].mxu0 %v1474
        %v5568 = vpop.f32.mrb[0].mxu0
        %v5569 = vadd.f32 %v5529, %v5568
        %v5570 = vpop.f32.mrb[0].mxu0
        %v5571 = vpop.f32.mrb[0].mxu0
        %v5572 = vpop.f32.mrb[0].mxu0
        %5573 = vdwg.mxu0
        %5574 = vmatprep.subr.bf16.mxu0 0
        %5575 = vmatpush1.bf16.msra.mxu0 %v4214
        %5576 = vmatprep.subr.bf16.mxu0 0
        %5577 = vmatpush1.bf16.msra.mxu0 %v4215
        %5578 = vmatprep.subr.bf16.mxu0 0
        %5579 = vmatpush1.bf16.msra.mxu0 %v4216
        %5580 = vmatprep.subr.bf16.mxu0 0
        %5581 = vmatpush1.bf16.msra.mxu0 %v4217
        %5582 = vmatprep.subr.bf16.mxu0 0
        %5583 = vmatpush1.bf16.msra.mxu0 %v4218
        %5584 = vmatprep.subr.bf16.mxu0 0
        %5585 = vmatpush1.bf16.msra.mxu0 %v4219
        %5586 = vmatprep.subr.bf16.mxu0 0
        %5587 = vmatpush1.bf16.msra.mxu0 %v4220
        %5588 = vmatprep.subr.bf16.mxu0 0
        %5589 = vmatpush1.bf16.msra.mxu0 %v4221
        %5590 = vmatprep.subr.bf16.mxu0 0
        %5591 = vmatpush1.bf16.msra.mxu0 0
        %5592 = vmatprep.subr.bf16.mxu0 0
        %5593 = vmatpush1.bf16.msra.mxu0 0
        %5594 = vmatprep.subr.bf16.mxu0 0
        %5595 = vmatpush1.bf16.msra.mxu0 0
        %5596 = vmatprep.subr.bf16.mxu0 0
        %5597 = vmatpush1.bf16.msra.mxu0 0
        %5598 = vmatprep.subr.bf16.mxu0 0
        %5599 = vmatpush1.bf16.msra.mxu0 0
        %5600 = vmatprep.subr.bf16.mxu0 0
        %5601 = vmatpush1.bf16.msra.mxu0 0
        %5602 = vmatprep.subr.bf16.mxu0 0
        %5603 = vmatpush1.bf16.msra.mxu0 0
        %5604 = vmatprep.subr.bf16.mxu0 0
        %5605 = vmatpush1.bf16.msra.mxu0 0
        %5606 = vmatprep.mubr.bf16.mxu0 0
        %5607 = vmatmul.mubr.bf16.gmra.mrb[0].mxu0 %v1476
        %v5608 = vpop.f32.mrb[0].mxu0
        %v5609 = vadd.f32 %v5569, %v5608
        %v5610 = vpop.f32.mrb[0].mxu0
        %v5611 = vpop.f32.mrb[0].mxu0
        %v5612 = vpop.f32.mrb[0].mxu0
        %5613 = vdwg.mxu0
        %v5614 = vmax.f32 %v5609, 0.0
        %v5615 = vld [vmem:[%s5] sm:$0xff]
        %v5616 = vld [vmem:[%s5 + $0x8] sm:$0xff]
        %v5617 = vld [vmem:[%s5 + $0x10] sm:$0xff]
        %v5618 = vld [vmem:[%s5 + $0x18] sm:$0xff]
        %v5619 = vld [vmem:[%s5 + $0x20] sm:$0xff]
        %v5620 = vld [vmem:[%s5 + $0x28] sm:$0xff]
        %v5621 = vld [vmem:[%s5 + $0x30] sm:$0xff]
        %v5622 = vld [vmem:[%s5 + $0x38] sm:$0xff]
        %v5623 = vld [vmem:[%s5 + $0x40] sm:$0xff]
        %v5624 = vld [vmem:[%s5 + $0x48] sm:$0xff]
        %v5625 = vld [vmem:[%s5 + $0x50] sm:$0xff]
        %v5626 = vld [vmem:[%s5 + $0x58] sm:$0xff]
        %v5627 = vld [vmem:[%s5 + $0x60] sm:$0xff]
        %v5628 = vld [vmem:[%s5 + $0x68] sm:$0xff]
        %v5629 = vld [vmem:[%s5 + $0x70] sm:$0xff]
        %v5630 = vld [vmem:[%s5 + $0x78] sm:$0xff]
        %v5631 = vld [vmem:[%s6] sm:$0x1]
        %5632 = vmatprep.subr.mxu0 0.0
        %5633 = vmatpush1.msra.mxu0 %v5615
        %5634 = vmatprep.subr.mxu0 0.0
        %5635 = vmatpush1.msra.mxu0 %v5616
        %5636 = vmatprep.subr.mxu0 0.0
        %5637 = vmatpush1.msra.mxu0 %v5617
        %5638 = vmatprep.subr.mxu0 0.0
        %5639 = vmatpush1.msra.mxu0 %v5618
        %5640 = vmatprep.subr.mxu0 0.0
        %5641 = vmatpush1.msra.mxu0 %v5619
        %5642 = vmatprep.subr.mxu0 0.0
        %5643 = vmatpush1.msra.mxu0 %v5620
        %5644 = vmatprep.subr.mxu0 0.0
        %5645 = vmatpush1.msra.mxu0 %v5621
        %5646 = vmatprep.subr.mxu0 0.0
        %5647 = vmatpush1.msra.mxu0 %v5622
        %5648 = vmatprep.subr.mxu0 0.0
        %5649 = vmatpush1.msra.mxu0 %v5623
        %5650 = vmatprep.subr.mxu0 0.0
        %5651 = vmatpush1.msra.mxu0 %v5624
        %5652 = vmatprep.subr.mxu0 0.0
        %5653 = vmatpush1.msra.mxu0 %v5625
        %5654 = vmatprep.subr.mxu0 0.0
        %5655 = vmatpush1.msra.mxu0 %v5626
        %5656 = vmatprep.subr.mxu0 0.0
        %5657 = vmatpush1.msra.mxu0 %v5627
        %5658 = vmatprep.subr.mxu0 0.0
        %5659 = vmatpush1.msra.mxu0 %v5628
        %5660 = vmatprep.subr.mxu0 0.0
        %5661 = vmatpush1.msra.mxu0 %v5629
        %5662 = vmatprep.subr.mxu0 0.0
        %5663 = vmatpush1.msra.mxu0 %v5630
        %5664 = vmatprep.subr.mxu0 0.0
        %5665 = vmatpush1.msra.mxu0 0.0
        %5666 = vmatprep.subr.mxu0 0.0
        %5667 = vmatpush1.msra.mxu0 0.0
        %5668 = vmatprep.subr.mxu0 0.0
        %5669 = vmatpush1.msra.mxu0 0.0
        %5670 = vmatprep.subr.mxu0 0.0
        %5671 = vmatpush1.msra.mxu0 0.0
        %5672 = vmatprep.subr.mxu0 0.0
        %5673 = vmatpush1.msra.mxu0 0.0
        %5674 = vmatprep.subr.mxu0 0.0
        %5675 = vmatpush1.msra.mxu0 0.0
        %5676 = vmatprep.subr.mxu0 0.0
        %5677 = vmatpush1.msra.mxu0 0.0
        %5678 = vmatprep.subr.mxu0 0.0
        %5679 = vmatpush1.msra.mxu0 0.0
        %5680 = vmatprep.subr.mxu0 0.0
        %5681 = vmatpush1.msra.mxu0 0.0
        %5682 = vmatprep.subr.mxu0 0.0
        %5683 = vmatpush1.msra.mxu0 0.0
        %5684 = vmatprep.subr.mxu0 0.0
        %5685 = vmatpush1.msra.mxu0 0.0
        %5686 = vmatprep.subr.mxu0 0.0
        %5687 = vmatpush1.msra.mxu0 0.0
        %5688 = vmatprep.subr.mxu0 0.0
        %5689 = vmatpush1.msra.mxu0 0.0
        %5690 = vmatprep.subr.mxu0 0.0
        %5691 = vmatpush1.msra.mxu0 0.0
        %5692 = vmatprep.subr.mxu0 0.0
        %5693 = vmatpush1.msra.mxu0 0.0
        %5694 = vmatprep.subr.mxu0 0.0
        %5695 = vmatpush1.msra.mxu0 0.0
        %5696 = vmatprep.mubr.f32.mxu0 0.0
        %5697 = vmatmul.mubr.f32.gmra.mrb[0].mxu0 %v5614
        %v5698 = vpop.f32.mrb[0].mxu0
        %v5699 = vadd.f32 %v5631, %v5698
        %v5700 = vpop.f32.mrb[0].mxu0
        %5701 = vdwg.mxu0
        %vm5702 = vcmask 73728
        %5703 = vst.msk [vmem:[%s270] sm:$0x1] %vm5702, %v5699
        %s5704 = sand.u32 %s181, 1
        %s5705 = scalar_lea.sflag [#allocation4], %s5704
        %s5706 = sand.u32 %s181, 1
        %s5707 = scalar_lea.vmem [#allocation3], %s5706
        // Predicated region
        $region49: #{simple_cnn_forward.1} parent=47 // pred_check
          %p5708 = pneg %p191
        $region50: #{simple_cnn_forward.1} parent=47 // pred_check_branch
          %5710 = sbr.rel (%p5708) target = $region52
        $region51: #{simple_cnn_forward.1} parent=47 // pred_region
          %s5712 = ssub.s32 16, 16
          %5713 = vsyncadd %s5705, %s5712
          %s5714 = smul.addr %s21, 16
          %s5715 = scalar_lea.hbm %s7, %s5714
          %s5717 = sshll.u32 %s5707, 4
          %s5718 = int_to_ptr.vmem [resolvable:$true] %s5717
          %5720 = dma.vmem_to_hbm [thread:$0]  %s5718, 16, %s5715, %s5705
        $region52: #{simple_cnn_forward.1} parent=47 // pred_fallthru
          _
      $region48: #{simple_cnn_forward.1} parent=5 // pred_fallthru
        _
      %p5721 = scmp.le.s32.totalorder 2, %s16
      // Predicated region
      $region53: #{simple_cnn_forward.1} parent=5 // pred_check
        %p5722 = pneg %p5721
      $region54: #{simple_cnn_forward.1} parent=5 // pred_check_branch
        %5724 = sbr.rel (%p5722) target = $region56
      $region55: #{simple_cnn_forward.1} parent=5 // pred_region
        %s5725 = ssub.s32 %s16, 2
        // Predicated region
        $region57: #{simple_cnn_forward.1} parent=55 // pred_check
          %p5726 = pneg %p197
        $region58: #{simple_cnn_forward.1} parent=55 // pred_check_branch
          %5728 = sbr.rel (%p5726) target = $region60
        $region59: #{simple_cnn_forward.1} parent=55 // pred_region
          %s5729 = sand.u32 %s182, 1
          %s5730 = scalar_lea.sflag [#allocation4], %s5729
          %s5731 = sand.u32 %s182, 1
          %s5732 = scalar_lea.vmem [#allocation3], %s5731
          %5733 = dma.done %s5730, 16
        $region60: #{simple_cnn_forward.1} parent=55 // pred_fallthru
          _
      $region56: #{simple_cnn_forward.1} parent=5 // pred_fallthru
        _
    $region6: #{simple_cnn_forward.1} parent=1 // loop_footer
      %s20 = sadd.s32 1, %s16
    $region7: #{simple_cnn_forward.1} parent=1 // loop_footer_branch
      %15 = sbr.rel target = $region3
    $region8: #{simple_cnn_forward.1} parent=1 // loop_exit
      _
    %5734 = vsyncpa [#allocation4], 1
    %s5735 = scalar_lea.sflag [#allocation4], 1
    %5736 = vsyncpa %s5735, 1

</llo_original>
